<compile_context>
chip_gen: v6e
topology: v6e:2x2x1
jax: 0.10.0
libtpu: 0.0.40
codegen_flags: <defaults>
</compile_context>

<pallas_src>
import jax
import jax.numpy as jnp
from jax import lax
from jax.experimental import pallas as pl
from jax.experimental.pallas import tpu as pltpu

# ----- model dimensions (scaled-down but structure-faithful) -----------------
TEXT_DIM   = 64            # stands in for config.hidden_size (e.g. 768)
IMG_DIM    = 64            # stands in for resnet50's 2048-d feature
D_MODEL    = TEXT_DIM + IMG_DIM    # transformer_dim = text_dim + img_dim
N_HEADS    = 8             # nhead=8 (D_MODEL % 8 == 0)
D_FF       = 256           # stands in for dim_feedforward=2048
N_LAYERS   = 6             # num_layers=6
CLS_HIDDEN = 512           # Linear(transformer_dim, 512)
N_CLASSES  = 2             # Linear(512, 2)
C_PAD      = 128           # lane-dense padded class dim
LN_EPS     = 1e-5

# packed per-layer vector table layout ([L, 1024] f32, all slices lane-aligned)
_OFF_B_ATTN = 0      # 128
_OFF_G1     = 128    # 128
_OFF_BE1    = 256    # 128
_OFF_G2     = 384    # 128
_OFF_BE2    = 512    # 128
_OFF_B2     = 640    # 128
_OFF_B1     = 768    # 256
_VEC_WIDTH  = 1024


# ----------------------------- Pallas kernel ---------------------------------
def _layernorm(x, gamma, beta):
    # f32 one-pass LayerNorm, biased variance (matches torch.nn.LayerNorm).
    inv_n = 1.0 / x.shape[-1]
    s1 = jnp.sum(x, axis=-1, keepdims=True)
    s2 = jnp.sum(x * x, axis=-1, keepdims=True)
    mu = s1 * inv_n
    var = s2 * inv_n - mu * mu
    return (x - mu) * lax.rsqrt(var + LN_EPS) * gamma + beta


def _mxu(x_f32, w_bf16):
    # bf16 in, f32 accumulate on the MXU.
    return jnp.dot(x_f32.astype(jnp.bfloat16), w_bf16,
                   preferred_element_type=jnp.float32)


def fused_forward_kernel(text_ref, img_ref,
                         wattn_ref, w1_ref, w2_ref, vec_ref,
                         cw1_ref, cw2_ref, cbias_ref,
                         o_ref):
    """concat(text, img) -> 6x TransformerEncoderLayer (post-norm, ReLU,
    eval-mode dropout) -> Linear(D,512)-ReLU-Linear(512,2 padded to 128)
    -> Softmax, all in one grid-less invocation with weights resident in VMEM."""
    # combined_features = cat(text, img); seq_len == 1 handled exactly below.
    x = jnp.concatenate([text_ref[...], img_ref[...]], axis=-1)   # [B, D] f32

    # ---- encoder layers, fully unrolled; all weights already resident ------
    for l in range(N_LAYERS):
        # S==1 self-attention == out_proj(v_proj(x)); Wv@Wo fused in wrapper.
        attn = _mxu(x, wattn_ref[l]) \
            + vec_ref[l:l + 1, _OFF_B_ATTN:_OFF_B_ATTN + D_MODEL]
        x = _layernorm(x + attn,
                       vec_ref[l:l + 1, _OFF_G1:_OFF_G1 + D_MODEL],
                       vec_ref[l:l + 1, _OFF_BE1:_OFF_BE1 + D_MODEL])

        # feed-forward: linear2(relu(linear1(x))), then add & norm.
        h = jnp.maximum(
            _mxu(x, w1_ref[l]) + vec_ref[l:l + 1, _OFF_B1:_OFF_B1 + D_FF], 0.0)
        ff = _mxu(h, w2_ref[l]) + vec_ref[l:l + 1, _OFF_B2:_OFF_B2 + D_MODEL]
        x = _layernorm(x + ff,
                       vec_ref[l:l + 1, _OFF_G2:_OFF_G2 + D_MODEL],
                       vec_ref[l:l + 1, _OFF_BE2:_OFF_BE2 + D_MODEL])

    # ---- classifier head (lane-dense, class dim padded to 128) -------------
    h = jnp.maximum(_mxu(x, cw1_ref[...]) + cbias_ref[:, 0:CLS_HIDDEN], 0.0)
    # padded bias columns are -1e30 -> padded classes vanish in the softmax.
    logits = _mxu(h, cw2_ref[...]) \
        + cbias_ref[:, CLS_HIDDEN:CLS_HIDDEN + C_PAD]                # [B, 128]

    m = jnp.max(logits, axis=-1, keepdims=True)
    e = jnp.exp(logits - m)
    o_ref[...] = e / jnp.sum(e, axis=-1, keepdims=True)   # exact divide


# ----------------------------- kernel wrapper ---------------------------------
def fused_head(text_features, img_features, p):
    """text_features: [B, TEXT_DIM] f32, img_features: [B, IMG_DIM] f32,
    p: prepared (fused / packed / padded / bf16) parameters."""
    B = text_features.shape[0]
    args = (text_features, img_features,
            p["w_attn"], p["w1"], p["w2"], p["vecs"],
            p["cw1"], p["cw2"], p["cbias"])

    vmem = pl.BlockSpec(memory_space=pltpu.MemorySpace.VMEM)
    probs = pl.pallas_call(
        fused_forward_kernel,
        out_shape=jax.ShapeDtypeStruct((B, C_PAD), jnp.float32),
        in_specs=[vmem] * len(args),
        out_specs=vmem,
        compiler_params=pltpu.CompilerParams(
            vmem_limit_bytes=32 * 1024 * 1024),
    )(*args)
    return probs[:, :N_CLASSES]


# ----------------------------- backbone stubs ---------------------------------
def text_encoder_stub(input_ids, attention_mask, emb_table):
    # TODO(synk): pretrained AutoModel (BERT-style) text backbone has no clean
    # Pallas equivalent; deterministic stand-in: embedding lookup + CLS
    # (position 0) extraction, mirroring text_features[:, 0, :].
    del attention_mask
    tok = emb_table[input_ids]          # [B, S, TEXT_DIM]
    return tok[:, 0, :]                 # [B, TEXT_DIM]


def image_encoder_stub(images, img_proj):
    # TODO(synk): pretrained resnet50 backbone has no clean Pallas equivalent;
    # deterministic stand-in: global average pool over (H, W) + linear
    # projection to IMG_DIM, then mean over the per-item image list, mirroring
    # torch.stack(img_features).mean(dim=0) per batch item.
    pooled = images.mean(axis=(-2, -1))                    # [B, n_imgs, C]
    feats = jnp.einsum("bnc,cd->bnd", pooled, img_proj)    # [B, n_imgs, IMG_DIM]
    return feats.mean(axis=1)                              # [B, IMG_DIM]


# ----------------------------- parameter init ---------------------------------
def init_params(key):
    ks = jax.random.split(key, 16)
    s = 0.05
    L, D, F = N_LAYERS, D_MODEL, D_FF
    enc = {
        # attention (only V and out-proj matter for seq_len == 1)
        "wv": s * jax.random.normal(ks[0], (L, D, D), jnp.float32),
        "bv": jnp.zeros((L, D), jnp.float32),
        "wo": s * jax.random.normal(ks[1], (L, D, D), jnp.float32),
        "bo": jnp.zeros((L, D), jnp.float32),
        # feed-forward
        "w1": s * jax.random.normal(ks[2], (L, D, F), jnp.float32),
        "b1": jnp.zeros((L, F), jnp.float32),
        "w2": s * jax.random.normal(ks[3], (L, F, D), jnp.float32),
        "b2": jnp.zeros((L, D), jnp.float32),
        # layer norms
        "g1": jnp.ones((L, D), jnp.float32),
        "be1": jnp.zeros((L, D), jnp.float32),
        "g2": jnp.ones((L, D), jnp.float32),
        "be2": jnp.zeros((L, D), jnp.float32),
    }
    cls = {
        "w1": s * jax.random.normal(ks[4], (D, CLS_HIDDEN), jnp.float32),
        "b1": jnp.zeros((1, CLS_HIDDEN), jnp.float32),
        "w2": s * jax.random.normal(ks[5], (CLS_HIDDEN, N_CLASSES), jnp.float32),
        "b2": jnp.zeros((1, N_CLASSES), jnp.float32),
    }
    stubs = {
        "emb_table": s * jax.random.normal(ks[6], (100, TEXT_DIM), jnp.float32),
        "img_proj": s * jax.random.normal(ks[7], (3, IMG_DIM), jnp.float32),
    }
    return enc, cls, stubs


def prepare_inference_params(enc, cls):
    """Fuse Wv@Wo (exact for S==1), pack the small f32 vectors into one
    [L, 1024] table, pad the class head to 128 lanes with the softmax mask
    baked into the bias (-1e30), and cast matmul weights to bf16."""
    w_attn = jnp.einsum("lde,lef->ldf", enc["wv"], enc["wo"])
    b_attn = jnp.einsum("ld,lde->le", enc["bv"], enc["wo"]) + enc["bo"]

    # [L, 1024] packed per-layer vector table (lane-aligned 128/256 slices).
    vecs = jnp.concatenate(
        [b_attn, enc["g1"], enc["be1"], enc["g2"], enc["be2"],
         enc["b2"], enc["b1"]], axis=1)
    assert vecs.shape == (N_LAYERS, _VEC_WIDTH)

    # classifier: pad weight columns with 0, bias columns with -1e30 (mask).
    cw2 = jnp.pad(cls["w2"], ((0, 0), (0, C_PAD - N_CLASSES)))
    cb2 = jnp.concatenate(
        [cls["b2"], jnp.full((1, C_PAD - N_CLASSES), -1e30, jnp.float32)],
        axis=1)
    cbias = jnp.concatenate([cls["b1"], cb2], axis=1)        # [1, 640]

    bf = lambda a: a.astype(jnp.bfloat16)
    return {
        "w_attn": bf(w_attn),
        "w1": bf(enc["w1"]),
        "w2": bf(enc["w2"]),
        "vecs": vecs,
        "cw1": bf(cls["w1"]),
        "cw2": bf(cw2),
        "cbias": cbias,
    }


# ----------------------------- full forward -----------------------------------
@jax.jit
def multimodal_forward(input_ids, attention_mask, images, params, stubs):
    text_features = text_encoder_stub(input_ids, attention_mask,
                                      stubs["emb_table"])         # [B, TEXT_DIM]
    img_features = image_encoder_stub(images, stubs["img_proj"])  # [B, IMG_DIM]
    # .unsqueeze(0) -> seq_len == 1; concat + transformer + classifier all
    # happen exactly inside the fused kernel.
    return fused_head(text_features, img_features, params)        # [B, 2]


if __name__ == "__main__":
    B, SEQ, N_IMGS, C, H, W = 2, 8, 3, 3, 16, 16
    VOCAB = 100

    key = jax.random.PRNGKey(0)
    k_ids, k_img, k_par = jax.random.split(key, 3)

    input_ids = jax.random.randint(k_ids, (B, SEQ), 0, VOCAB, dtype=jnp.int32)
    attention_mask = jnp.ones((B, SEQ), jnp.int32)
    images = jax.random.normal(k_img, (B, N_IMGS, C, H, W), jnp.float32)

    enc_params, cls_params, stub_params = init_params(k_par)
    params = prepare_inference_params(enc_params, cls_params)

    probs = multimodal_forward(input_ids, attention_mask, images,
                               params, stub_params)
    probs = jax.block_until_ready(probs)

    assert probs.shape == (B, N_CLASSES)
    assert bool(jnp.all(jnp.isfinite(probs)))
    assert bool(jnp.allclose(jnp.sum(probs, axis=1), 1.0, atol=1e-5))
    print("KERNEL_OK")
</pallas_src>

<mosaic_0001>
module attributes {stable_mosaic.version = 11 : i64} {
  func.func @fused_forward_kernel(%arg0: memref<2x64xf32, #tpu.memory_space<vmem>>, %arg1: memref<2x64xf32, #tpu.memory_space<vmem>>, %arg2: memref<6x128x128xbf16, #tpu.memory_space<vmem>>, %arg3: memref<6x128x256xbf16, #tpu.memory_space<vmem>>, %arg4: memref<6x256x128xbf16, #tpu.memory_space<vmem>>, %arg5: memref<6x1024xf32, #tpu.memory_space<vmem>>, %arg6: memref<128x512xbf16, #tpu.memory_space<vmem>>, %arg7: memref<512x128xbf16, #tpu.memory_space<vmem>>, %arg8: memref<1x640xf32, #tpu.memory_space<vmem>>, %arg9: memref<2x128xf32, #tpu.memory_space<vmem>>) attributes {dimension_semantics = [], scalar_prefetch = 0 : i64, scratch_operands = 0 : i64, tpu.core_type = #tpu.core_type<tc>} {
    %c0 = arith.constant 0 : index
    %c0_0 = arith.constant 0 : index
    %0 = vector.load %arg0[%c0, %c0_0] : memref<2x64xf32, #tpu.memory_space<vmem>>, vector<2x64xf32>
    %c0_1 = arith.constant 0 : index
    %c0_2 = arith.constant 0 : index
    %1 = vector.load %arg1[%c0_1, %c0_2] : memref<2x64xf32, #tpu.memory_space<vmem>>, vector<2x64xf32>
    %2 = tpu.concatenate %0, %1 in 1 : vector<2x64xf32>, vector<2x64xf32> -> vector<2x128xf32>
    %c0_3 = arith.constant 0 : index
    %c0_4 = arith.constant 0 : index
    %c0_5 = arith.constant 0 : index
    %3 = vector.load %arg2[%c0_3, %c0_4, %c0_5] : memref<6x128x128xbf16, #tpu.memory_space<vmem>>, vector<1x128x128xbf16>
    %4 = vector.shape_cast %3 : vector<1x128x128xbf16> to vector<128x128xbf16>
    %5 = arith.truncf %2 : vector<2x128xf32> to vector<2x128xbf16>
    %cst = arith.constant dense<0.000000e+00> : vector<2x128xf32>
    %6 = tpu.matmul %5, %4, %cst {dimension_numbers = #tpu.dot_dimension_numbers<[1], [0], [0], [1], [0, 0, 1, 1], [], []>} : vector<2x128xbf16>, vector<128x128xbf16>, vector<2x128xf32> -> vector<2x128xf32>
    %c0_6 = arith.constant 0 : index
    %c0_7 = arith.constant 0 : index
    %7 = vector.load %arg5[%c0_6, %c0_7] : memref<6x1024xf32, #tpu.memory_space<vmem>>, vector<1x128xf32>
    %8 = vector.broadcast %7 : vector<1x128xf32> to vector<2x128xf32>
    %9 = arith.addf %6, %8 : vector<2x128xf32>
    %10 = arith.addf %2, %9 : vector<2x128xf32>
    %c0_8 = arith.constant 0 : index
    %c128 = arith.constant 128 : index
    %11 = vector.load %arg5[%c0_8, %c128] : memref<6x1024xf32, #tpu.memory_space<vmem>>, vector<1x128xf32>
    %c0_9 = arith.constant 0 : index
    %c256 = arith.constant 256 : index
    %12 = vector.load %arg5[%c0_9, %c256] : memref<6x1024xf32, #tpu.memory_space<vmem>>, vector<1x128xf32>
    %cst_10 = arith.constant dense<0.000000e+00> : vector<2xf32>
    %13 = vector.multi_reduction <add>, %10, %cst_10 [1] : vector<2x128xf32> to vector<2xf32>
    %14 = vector.shape_cast %13 : vector<2xf32> to vector<2x1xf32>
    %15 = arith.mulf %10, %10 : vector<2x128xf32>
    %cst_11 = arith.constant dense<0.000000e+00> : vector<2xf32>
    %16 = vector.multi_reduction <add>, %15, %cst_11 [1] : vector<2x128xf32> to vector<2xf32>
    %17 = vector.shape_cast %16 : vector<2xf32> to vector<2x1xf32>
    %cst_12 = arith.constant 7.812500e-03 : f32
    %18 = vector.broadcast %cst_12 : f32 to vector<2x1xf32>
    %19 = arith.mulf %14, %18 : vector<2x1xf32>
    %cst_13 = arith.constant 7.812500e-03 : f32
    %20 = vector.broadcast %cst_13 : f32 to vector<2x1xf32>
    %21 = arith.mulf %17, %20 : vector<2x1xf32>
    %22 = arith.mulf %19, %19 : vector<2x1xf32>
    %23 = arith.subf %21, %22 : vector<2x1xf32>
    %24 = vector.broadcast %19 : vector<2x1xf32> to vector<2x128xf32>
    %25 = arith.subf %10, %24 : vector<2x128xf32>
    %cst_14 = arith.constant 9.99999974E-6 : f32
    %26 = vector.broadcast %cst_14 : f32 to vector<2x1xf32>
    %27 = arith.addf %23, %26 : vector<2x1xf32>
    %28 = math.rsqrt %27 : vector<2x1xf32>
    %29 = vector.broadcast %28 : vector<2x1xf32> to vector<2x128xf32>
    %30 = arith.mulf %25, %29 : vector<2x128xf32>
    %31 = vector.broadcast %11 : vector<1x128xf32> to vector<2x128xf32>
    %32 = arith.mulf %30, %31 : vector<2x128xf32>
    %33 = vector.broadcast %12 : vector<1x128xf32> to vector<2x128xf32>
    %34 = arith.addf %32, %33 : vector<2x128xf32>
    %c0_15 = arith.constant 0 : index
    %c0_16 = arith.constant 0 : index
    %c0_17 = arith.constant 0 : index
    %35 = vector.load %arg3[%c0_15, %c0_16, %c0_17] : memref<6x128x256xbf16, #tpu.memory_space<vmem>>, vector<1x128x256xbf16>
    %36 = vector.shape_cast %35 : vector<1x128x256xbf16> to vector<128x256xbf16>
    %37 = arith.truncf %34 : vector<2x128xf32> to vector<2x128xbf16>
    %cst_18 = arith.constant dense<0.000000e+00> : vector<2x256xf32>
    %38 = tpu.matmul %37, %36, %cst_18 {dimension_numbers = #tpu.dot_dimension_numbers<[1], [0], [0], [1], [0, 0, 1, 1], [], []>} : vector<2x128xbf16>, vector<128x256xbf16>, vector<2x256xf32> -> vector<2x256xf32>
    %c0_19 = arith.constant 0 : index
    %c768 = arith.constant 768 : index
    %39 = vector.load %arg5[%c0_19, %c768] : memref<6x1024xf32, #tpu.memory_space<vmem>>, vector<1x256xf32>
    %40 = vector.broadcast %39 : vector<1x256xf32> to vector<2x256xf32>
    %41 = arith.addf %38, %40 : vector<2x256xf32>
    %cst_20 = arith.constant 0.000000e+00 : f32
    %42 = vector.broadcast %cst_20 : f32 to vector<2x256xf32>
    %43 = arith.maximumf %41, %42 : vector<2x256xf32>
    %c0_21 = arith.constant 0 : index
    %c0_22 = arith.constant 0 : index
    %c0_23 = arith.constant 0 : index
    %44 = vector.load %arg4[%c0_21, %c0_22, %c0_23] : memref<6x256x128xbf16, #tpu.memory_space<vmem>>, vector<1x256x128xbf16>
    %45 = vector.shape_cast %44 : vector<1x256x128xbf16> to vector<256x128xbf16>
    %46 = arith.truncf %43 : vector<2x256xf32> to vector<2x256xbf16>
    %cst_24 = arith.constant dense<0.000000e+00> : vector<2x128xf32>
    %47 = tpu.matmul %46, %45, %cst_24 {dimension_numbers = #tpu.dot_dimension_numbers<[1], [0], [0], [1], [0, 0, 1, 1], [], []>} : vector<2x256xbf16>, vector<256x128xbf16>, vector<2x128xf32> -> vector<2x128xf32>
    %c0_25 = arith.constant 0 : index
    %c640 = arith.constant 640 : index
    %48 = vector.load %arg5[%c0_25, %c640] : memref<6x1024xf32, #tpu.memory_space<vmem>>, vector<1x128xf32>
    %49 = vector.broadcast %48 : vector<1x128xf32> to vector<2x128xf32>
    %50 = arith.addf %47, %49 : vector<2x128xf32>
    %51 = arith.addf %34, %50 : vector<2x128xf32>
    %c0_26 = arith.constant 0 : index
    %c384 = arith.constant 384 : index
    %52 = vector.load %arg5[%c0_26, %c384] : memref<6x1024xf32, #tpu.memory_space<vmem>>, vector<1x128xf32>
    %c0_27 = arith.constant 0 : index
    %c512 = arith.constant 512 : index
    %53 = vector.load %arg5[%c0_27, %c512] : memref<6x1024xf32, #tpu.memory_space<vmem>>, vector<1x128xf32>
    %cst_28 = arith.constant dense<0.000000e+00> : vector<2xf32>
    %54 = vector.multi_reduction <add>, %51, %cst_28 [1] : vector<2x128xf32> to vector<2xf32>
    %55 = vector.shape_cast %54 : vector<2xf32> to vector<2x1xf32>
    %56 = arith.mulf %51, %51 : vector<2x128xf32>
    %cst_29 = arith.constant dense<0.000000e+00> : vector<2xf32>
    %57 = vector.multi_reduction <add>, %56, %cst_29 [1] : vector<2x128xf32> to vector<2xf32>
    %58 = vector.shape_cast %57 : vector<2xf32> to vector<2x1xf32>
    %cst_30 = arith.constant 7.812500e-03 : f32
    %59 = vector.broadcast %cst_30 : f32 to vector<2x1xf32>
    %60 = arith.mulf %55, %59 : vector<2x1xf32>
    %cst_31 = arith.constant 7.812500e-03 : f32
    %61 = vector.broadcast %cst_31 : f32 to vector<2x1xf32>
    %62 = arith.mulf %58, %61 : vector<2x1xf32>
    %63 = arith.mulf %60, %60 : vector<2x1xf32>
    %64 = arith.subf %62, %63 : vector<2x1xf32>
    %65 = vector.broadcast %60 : vector<2x1xf32> to vector<2x128xf32>
    %66 = arith.subf %51, %65 : vector<2x128xf32>
    %cst_32 = arith.constant 9.99999974E-6 : f32
    %67 = vector.broadcast %cst_32 : f32 to vector<2x1xf32>
    %68 = arith.addf %64, %67 : vector<2x1xf32>
    %69 = math.rsqrt %68 : vector<2x1xf32>
    %70 = vector.broadcast %69 : vector<2x1xf32> to vector<2x128xf32>
    %71 = arith.mulf %66, %70 : vector<2x128xf32>
    %72 = vector.broadcast %52 : vector<1x128xf32> to vector<2x128xf32>
    %73 = arith.mulf %71, %72 : vector<2x128xf32>
    %74 = vector.broadcast %53 : vector<1x128xf32> to vector<2x128xf32>
    %75 = arith.addf %73, %74 : vector<2x128xf32>
    %c1 = arith.constant 1 : index
    %c0_33 = arith.constant 0 : index
    %c0_34 = arith.constant 0 : index
    %76 = vector.load %arg2[%c1, %c0_33, %c0_34] : memref<6x128x128xbf16, #tpu.memory_space<vmem>>, vector<1x128x128xbf16>
    %77 = vector.shape_cast %76 : vector<1x128x128xbf16> to vector<128x128xbf16>
    %78 = arith.truncf %75 : vector<2x128xf32> to vector<2x128xbf16>
    %cst_35 = arith.constant dense<0.000000e+00> : vector<2x128xf32>
    %79 = tpu.matmul %78, %77, %cst_35 {dimension_numbers = #tpu.dot_dimension_numbers<[1], [0], [0], [1], [0, 0, 1, 1], [], []>} : vector<2x128xbf16>, vector<128x128xbf16>, vector<2x128xf32> -> vector<2x128xf32>
    %c1_36 = arith.constant 1 : index
    %c0_37 = arith.constant 0 : index
    %80 = vector.load %arg5[%c1_36, %c0_37] : memref<6x1024xf32, #tpu.memory_space<vmem>>, vector<1x128xf32>
    %81 = vector.broadcast %80 : vector<1x128xf32> to vector<2x128xf32>
    %82 = arith.addf %79, %81 : vector<2x128xf32>
    %83 = arith.addf %75, %82 : vector<2x128xf32>
    %c1_38 = arith.constant 1 : index
    %c128_39 = arith.constant 128 : index
    %84 = vector.load %arg5[%c1_38, %c128_39] : memref<6x1024xf32, #tpu.memory_space<vmem>>, vector<1x128xf32>
    %c1_40 = arith.constant 1 : index
    %c256_41 = arith.constant 256 : index
    %85 = vector.load %arg5[%c1_40, %c256_41] : memref<6x1024xf32, #tpu.memory_space<vmem>>, vector<1x128xf32>
    %cst_42 = arith.constant dense<0.000000e+00> : vector<2xf32>
    %86 = vector.multi_reduction <add>, %83, %cst_42 [1] : vector<2x128xf32> to vector<2xf32>
    %87 = vector.shape_cast %86 : vector<2xf32> to vector<2x1xf32>
    %88 = arith.mulf %83, %83 : vector<2x128xf32>
    %cst_43 = arith.constant dense<0.000000e+00> : vector<2xf32>
    %89 = vector.multi_reduction <add>, %88, %cst_43 [1] : vector<2x128xf32> to vector<2xf32>
    %90 = vector.shape_cast %89 : vector<2xf32> to vector<2x1xf32>
    %cst_44 = arith.constant 7.812500e-03 : f32
    %91 = vector.broadcast %cst_44 : f32 to vector<2x1xf32>
    %92 = arith.mulf %87, %91 : vector<2x1xf32>
    %cst_45 = arith.constant 7.812500e-03 : f32
    %93 = vector.broadcast %cst_45 : f32 to vector<2x1xf32>
    %94 = arith.mulf %90, %93 : vector<2x1xf32>
    %95 = arith.mulf %92, %92 : vector<2x1xf32>
    %96 = arith.subf %94, %95 : vector<2x1xf32>
    %97 = vector.broadcast %92 : vector<2x1xf32> to vector<2x128xf32>
    %98 = arith.subf %83, %97 : vector<2x128xf32>
    %cst_46 = arith.constant 9.99999974E-6 : f32
    %99 = vector.broadcast %cst_46 : f32 to vector<2x1xf32>
    %100 = arith.addf %96, %99 : vector<2x1xf32>
    %101 = math.rsqrt %100 : vector<2x1xf32>
    %102 = vector.broadcast %101 : vector<2x1xf32> to vector<2x128xf32>
    %103 = arith.mulf %98, %102 : vector<2x128xf32>
    %104 = vector.broadcast %84 : vector<1x128xf32> to vector<2x128xf32>
    %105 = arith.mulf %103, %104 : vector<2x128xf32>
    %106 = vector.broadcast %85 : vector<1x128xf32> to vector<2x128xf32>
    %107 = arith.addf %105, %106 : vector<2x128xf32>
    %c1_47 = arith.constant 1 : index
    %c0_48 = arith.constant 0 : index
    %c0_49 = arith.constant 0 : index
    %108 = vector.load %arg3[%c1_47, %c0_48, %c0_49] : memref<6x128x256xbf16, #tpu.memory_space<vmem>>, vector<1x128x256xbf16>
    %109 = vector.shape_cast %108 : vector<1x128x256xbf16> to vector<128x256xbf16>
    %110 = arith.truncf %107 : vector<2x128xf32> to vector<2x128xbf16>
    %cst_50 = arith.constant dense<0.000000e+00> : vector<2x256xf32>
    %111 = tpu.matmul %110, %109, %cst_50 {dimension_numbers = #tpu.dot_dimension_numbers<[1], [0], [0], [1], [0, 0, 1, 1], [], []>} : vector<2x128xbf16>, vector<128x256xbf16>, vector<2x256xf32> -> vector<2x256xf32>
    %c1_51 = arith.constant 1 : index
    %c768_52 = arith.constant 768 : index
    %112 = vector.load %arg5[%c1_51, %c768_52] : memref<6x1024xf32, #tpu.memory_space<vmem>>, vector<1x256xf32>
    %113 = vector.broadcast %112 : vector<1x256xf32> to vector<2x256xf32>
    %114 = arith.addf %111, %113 : vector<2x256xf32>
    %cst_53 = arith.constant 0.000000e+00 : f32
    %115 = vector.broadcast %cst_53 : f32 to vector<2x256xf32>
    %116 = arith.maximumf %114, %115 : vector<2x256xf32>
    %c1_54 = arith.constant 1 : index
    %c0_55 = arith.constant 0 : index
    %c0_56 = arith.constant 0 : index
    %117 = vector.load %arg4[%c1_54, %c0_55, %c0_56] : memref<6x256x128xbf16, #tpu.memory_space<vmem>>, vector<1x256x128xbf16>
    %118 = vector.shape_cast %117 : vector<1x256x128xbf16> to vector<256x128xbf16>
    %119 = arith.truncf %116 : vector<2x256xf32> to vector<2x256xbf16>
    %cst_57 = arith.constant dense<0.000000e+00> : vector<2x128xf32>
    %120 = tpu.matmul %119, %118, %cst_57 {dimension_numbers = #tpu.dot_dimension_numbers<[1], [0], [0], [1], [0, 0, 1, 1], [], []>} : vector<2x256xbf16>, vector<256x128xbf16>, vector<2x128xf32> -> vector<2x128xf32>
    %c1_58 = arith.constant 1 : index
    %c640_59 = arith.constant 640 : index
    %121 = vector.load %arg5[%c1_58, %c640_59] : memref<6x1024xf32, #tpu.memory_space<vmem>>, vector<1x128xf32>
    %122 = vector.broadcast %121 : vector<1x128xf32> to vector<2x128xf32>
    %123 = arith.addf %120, %122 : vector<2x128xf32>
    %124 = arith.addf %107, %123 : vector<2x128xf32>
    %c1_60 = arith.constant 1 : index
    %c384_61 = arith.constant 384 : index
    %125 = vector.load %arg5[%c1_60, %c384_61] : memref<6x1024xf32, #tpu.memory_space<vmem>>, vector<1x128xf32>
    %c1_62 = arith.constant 1 : index
    %c512_63 = arith.constant 512 : index
    %126 = vector.load %arg5[%c1_62, %c512_63] : memref<6x1024xf32, #tpu.memory_space<vmem>>, vector<1x128xf32>
    %cst_64 = arith.constant dense<0.000000e+00> : vector<2xf32>
    %127 = vector.multi_reduction <add>, %124, %cst_64 [1] : vector<2x128xf32> to vector<2xf32>
    %128 = vector.shape_cast %127 : vector<2xf32> to vector<2x1xf32>
    %129 = arith.mulf %124, %124 : vector<2x128xf32>
    %cst_65 = arith.constant dense<0.000000e+00> : vector<2xf32>
    %130 = vector.multi_reduction <add>, %129, %cst_65 [1] : vector<2x128xf32> to vector<2xf32>
    %131 = vector.shape_cast %130 : vector<2xf32> to vector<2x1xf32>
    %cst_66 = arith.constant 7.812500e-03 : f32
    %132 = vector.broadcast %cst_66 : f32 to vector<2x1xf32>
    %133 = arith.mulf %128, %132 : vector<2x1xf32>
    %cst_67 = arith.constant 7.812500e-03 : f32
    %134 = vector.broadcast %cst_67 : f32 to vector<2x1xf32>
    %135 = arith.mulf %131, %134 : vector<2x1xf32>
    %136 = arith.mulf %133, %133 : vector<2x1xf32>
    %137 = arith.subf %135, %136 : vector<2x1xf32>
    %138 = vector.broadcast %133 : vector<2x1xf32> to vector<2x128xf32>
    %139 = arith.subf %124, %138 : vector<2x128xf32>
    %cst_68 = arith.constant 9.99999974E-6 : f32
    %140 = vector.broadcast %cst_68 : f32 to vector<2x1xf32>
    %141 = arith.addf %137, %140 : vector<2x1xf32>
    %142 = math.rsqrt %141 : vector<2x1xf32>
    %143 = vector.broadcast %142 : vector<2x1xf32> to vector<2x128xf32>
    %144 = arith.mulf %139, %143 : vector<2x128xf32>
    %145 = vector.broadcast %125 : vector<1x128xf32> to vector<2x128xf32>
    %146 = arith.mulf %144, %145 : vector<2x128xf32>
    %147 = vector.broadcast %126 : vector<1x128xf32> to vector<2x128xf32>
    %148 = arith.addf %146, %147 : vector<2x128xf32>
    %c2 = arith.constant 2 : index
    %c0_69 = arith.constant 0 : index
    %c0_70 = arith.constant 0 : index
    %149 = vector.load %arg2[%c2, %c0_69, %c0_70] : memref<6x128x128xbf16, #tpu.memory_space<vmem>>, vector<1x128x128xbf16>
    %150 = vector.shape_cast %149 : vector<1x128x128xbf16> to vector<128x128xbf16>
    %151 = arith.truncf %148 : vector<2x128xf32> to vector<2x128xbf16>
    %cst_71 = arith.constant dense<0.000000e+00> : vector<2x128xf32>
    %152 = tpu.matmul %151, %150, %cst_71 {dimension_numbers = #tpu.dot_dimension_numbers<[1], [0], [0], [1], [0, 0, 1, 1], [], []>} : vector<2x128xbf16>, vector<128x128xbf16>, vector<2x128xf32> -> vector<2x128xf32>
    %c2_72 = arith.constant 2 : index
    %c0_73 = arith.constant 0 : index
    %153 = vector.load %arg5[%c2_72, %c0_73] : memref<6x1024xf32, #tpu.memory_space<vmem>>, vector<1x128xf32>
    %154 = vector.broadcast %153 : vector<1x128xf32> to vector<2x128xf32>
    %155 = arith.addf %152, %154 : vector<2x128xf32>
    %156 = arith.addf %148, %155 : vector<2x128xf32>
    %c2_74 = arith.constant 2 : index
    %c128_75 = arith.constant 128 : index
    %157 = vector.load %arg5[%c2_74, %c128_75] : memref<6x1024xf32, #tpu.memory_space<vmem>>, vector<1x128xf32>
    %c2_76 = arith.constant 2 : index
    %c256_77 = arith.constant 256 : index
    %158 = vector.load %arg5[%c2_76, %c256_77] : memref<6x1024xf32, #tpu.memory_space<vmem>>, vector<1x128xf32>
    %cst_78 = arith.constant dense<0.000000e+00> : vector<2xf32>
    %159 = vector.multi_reduction <add>, %156, %cst_78 [1] : vector<2x128xf32> to vector<2xf32>
    %160 = vector.shape_cast %159 : vector<2xf32> to vector<2x1xf32>
    %161 = arith.mulf %156, %156 : vector<2x128xf32>
    %cst_79 = arith.constant dense<0.000000e+00> : vector<2xf32>
    %162 = vector.multi_reduction <add>, %161, %cst_79 [1] : vector<2x128xf32> to vector<2xf32>
    %163 = vector.shape_cast %162 : vector<2xf32> to vector<2x1xf32>
    %cst_80 = arith.constant 7.812500e-03 : f32
    %164 = vector.broadcast %cst_80 : f32 to vector<2x1xf32>
    %165 = arith.mulf %160, %164 : vector<2x1xf32>
    %cst_81 = arith.constant 7.812500e-03 : f32
    %166 = vector.broadcast %cst_81 : f32 to vector<2x1xf32>
    %167 = arith.mulf %163, %166 : vector<2x1xf32>
    %168 = arith.mulf %165, %165 : vector<2x1xf32>
    %169 = arith.subf %167, %168 : vector<2x1xf32>
    %170 = vector.broadcast %165 : vector<2x1xf32> to vector<2x128xf32>
    %171 = arith.subf %156, %170 : vector<2x128xf32>
    %cst_82 = arith.constant 9.99999974E-6 : f32
    %172 = vector.broadcast %cst_82 : f32 to vector<2x1xf32>
    %173 = arith.addf %169, %172 : vector<2x1xf32>
    %174 = math.rsqrt %173 : vector<2x1xf32>
    %175 = vector.broadcast %174 : vector<2x1xf32> to vector<2x128xf32>
    %176 = arith.mulf %171, %175 : vector<2x128xf32>
    %177 = vector.broadcast %157 : vector<1x128xf32> to vector<2x128xf32>
    %178 = arith.mulf %176, %177 : vector<2x128xf32>
    %179 = vector.broadcast %158 : vector<1x128xf32> to vector<2x128xf32>
    %180 = arith.addf %178, %179 : vector<2x128xf32>
    %c2_83 = arith.constant 2 : index
    %c0_84 = arith.constant 0 : index
    %c0_85 = arith.constant 0 : index
    %181 = vector.load %arg3[%c2_83, %c0_84, %c0_85] : memref<6x128x256xbf16, #tpu.memory_space<vmem>>, vector<1x128x256xbf16>
    %182 = vector.shape_cast %181 : vector<1x128x256xbf16> to vector<128x256xbf16>
    %183 = arith.truncf %180 : vector<2x128xf32> to vector<2x128xbf16>
    %cst_86 = arith.constant dense<0.000000e+00> : vector<2x256xf32>
    %184 = tpu.matmul %183, %182, %cst_86 {dimension_numbers = #tpu.dot_dimension_numbers<[1], [0], [0], [1], [0, 0, 1, 1], [], []>} : vector<2x128xbf16>, vector<128x256xbf16>, vector<2x256xf32> -> vector<2x256xf32>
    %c2_87 = arith.constant 2 : index
    %c768_88 = arith.constant 768 : index
    %185 = vector.load %arg5[%c2_87, %c768_88] : memref<6x1024xf32, #tpu.memory_space<vmem>>, vector<1x256xf32>
    %186 = vector.broadcast %185 : vector<1x256xf32> to vector<2x256xf32>
    %187 = arith.addf %184, %186 : vector<2x256xf32>
    %cst_89 = arith.constant 0.000000e+00 : f32
    %188 = vector.broadcast %cst_89 : f32 to vector<2x256xf32>
    %189 = arith.maximumf %187, %188 : vector<2x256xf32>
    %c2_90 = arith.constant 2 : index
    %c0_91 = arith.constant 0 : index
    %c0_92 = arith.constant 0 : index
    %190 = vector.load %arg4[%c2_90, %c0_91, %c0_92] : memref<6x256x128xbf16, #tpu.memory_space<vmem>>, vector<1x256x128xbf16>
    %191 = vector.shape_cast %190 : vector<1x256x128xbf16> to vector<256x128xbf16>
    %192 = arith.truncf %189 : vector<2x256xf32> to vector<2x256xbf16>
    %cst_93 = arith.constant dense<0.000000e+00> : vector<2x128xf32>
    %193 = tpu.matmul %192, %191, %cst_93 {dimension_numbers = #tpu.dot_dimension_numbers<[1], [0], [0], [1], [0, 0, 1, 1], [], []>} : vector<2x256xbf16>, vector<256x128xbf16>, vector<2x128xf32> -> vector<2x128xf32>
    %c2_94 = arith.constant 2 : index
    %c640_95 = arith.constant 640 : index
    %194 = vector.load %arg5[%c2_94, %c640_95] : memref<6x1024xf32, #tpu.memory_space<vmem>>, vector<1x128xf32>
    %195 = vector.broadcast %194 : vector<1x128xf32> to vector<2x128xf32>
    %196 = arith.addf %193, %195 : vector<2x128xf32>
    %197 = arith.addf %180, %196 : vector<2x128xf32>
    %c2_96 = arith.constant 2 : index
    %c384_97 = arith.constant 384 : index
    %198 = vector.load %arg5[%c2_96, %c384_97] : memref<6x1024xf32, #tpu.memory_space<vmem>>, vector<1x128xf32>
    %c2_98 = arith.constant 2 : index
    %c512_99 = arith.constant 512 : index
    %199 = vector.load %arg5[%c2_98, %c512_99] : memref<6x1024xf32, #tpu.memory_space<vmem>>, vector<1x128xf32>
    %cst_100 = arith.constant dense<0.000000e+00> : vector<2xf32>
    %200 = vector.multi_reduction <add>, %197, %cst_100 [1] : vector<2x128xf32> to vector<2xf32>
    %201 = vector.shape_cast %200 : vector<2xf32> to vector<2x1xf32>
    %202 = arith.mulf %197, %197 : vector<2x128xf32>
    %cst_101 = arith.constant dense<0.000000e+00> : vector<2xf32>
    %203 = vector.multi_reduction <add>, %202, %cst_101 [1] : vector<2x128xf32> to vector<2xf32>
    %204 = vector.shape_cast %203 : vector<2xf32> to vector<2x1xf32>
    %cst_102 = arith.constant 7.812500e-03 : f32
    %205 = vector.broadcast %cst_102 : f32 to vector<2x1xf32>
    %206 = arith.mulf %201, %205 : vector<2x1xf32>
    %cst_103 = arith.constant 7.812500e-03 : f32
    %207 = vector.broadcast %cst_103 : f32 to vector<2x1xf32>
    %208 = arith.mulf %204, %207 : vector<2x1xf32>
    %209 = arith.mulf %206, %206 : vector<2x1xf32>
    %210 = arith.subf %208, %209 : vector<2x1xf32>
    %211 = vector.broadcast %206 : vector<2x1xf32> to vector<2x128xf32>
    %212 = arith.subf %197, %211 : vector<2x128xf32>
    %cst_104 = arith.constant 9.99999974E-6 : f32
    %213 = vector.broadcast %cst_104 : f32 to vector<2x1xf32>
    %214 = arith.addf %210, %213 : vector<2x1xf32>
    %215 = math.rsqrt %214 : vector<2x1xf32>
    %216 = vector.broadcast %215 : vector<2x1xf32> to vector<2x128xf32>
    %217 = arith.mulf %212, %216 : vector<2x128xf32>
    %218 = vector.broadcast %198 : vector<1x128xf32> to vector<2x128xf32>
    %219 = arith.mulf %217, %218 : vector<2x128xf32>
    %220 = vector.broadcast %199 : vector<1x128xf32> to vector<2x128xf32>
    %221 = arith.addf %219, %220 : vector<2x128xf32>
    %c3 = arith.constant 3 : index
    %c0_105 = arith.constant 0 : index
    %c0_106 = arith.constant 0 : index
    %222 = vector.load %arg2[%c3, %c0_105, %c0_106] : memref<6x128x128xbf16, #tpu.memory_space<vmem>>, vector<1x128x128xbf16>
    %223 = vector.shape_cast %222 : vector<1x128x128xbf16> to vector<128x128xbf16>
    %224 = arith.truncf %221 : vector<2x128xf32> to vector<2x128xbf16>
    %cst_107 = arith.constant dense<0.000000e+00> : vector<2x128xf32>
    %225 = tpu.matmul %224, %223, %cst_107 {dimension_numbers = #tpu.dot_dimension_numbers<[1], [0], [0], [1], [0, 0, 1, 1], [], []>} : vector<2x128xbf16>, vector<128x128xbf16>, vector<2x128xf32> -> vector<2x128xf32>
    %c3_108 = arith.constant 3 : index
    %c0_109 = arith.constant 0 : index
    %226 = vector.load %arg5[%c3_108, %c0_109] : memref<6x1024xf32, #tpu.memory_space<vmem>>, vector<1x128xf32>
    %227 = vector.broadcast %226 : vector<1x128xf32> to vector<2x128xf32>
    %228 = arith.addf %225, %227 : vector<2x128xf32>
    %229 = arith.addf %221, %228 : vector<2x128xf32>
    %c3_110 = arith.constant 3 : index
    %c128_111 = arith.constant 128 : index
    %230 = vector.load %arg5[%c3_110, %c128_111] : memref<6x1024xf32, #tpu.memory_space<vmem>>, vector<1x128xf32>
    %c3_112 = arith.constant 3 : index
    %c256_113 = arith.constant 256 : index
    %231 = vector.load %arg5[%c3_112, %c256_113] : memref<6x1024xf32, #tpu.memory_space<vmem>>, vector<1x128xf32>
    %cst_114 = arith.constant dense<0.000000e+00> : vector<2xf32>
    %232 = vector.multi_reduction <add>, %229, %cst_114 [1] : vector<2x128xf32> to vector<2xf32>
    %233 = vector.shape_cast %232 : vector<2xf32> to vector<2x1xf32>
    %234 = arith.mulf %229, %229 : vector<2x128xf32>
    %cst_115 = arith.constant dense<0.000000e+00> : vector<2xf32>
    %235 = vector.multi_reduction <add>, %234, %cst_115 [1] : vector<2x128xf32> to vector<2xf32>
    %236 = vector.shape_cast %235 : vector<2xf32> to vector<2x1xf32>
    %cst_116 = arith.constant 7.812500e-03 : f32
    %237 = vector.broadcast %cst_116 : f32 to vector<2x1xf32>
    %238 = arith.mulf %233, %237 : vector<2x1xf32>
    %cst_117 = arith.constant 7.812500e-03 : f32
    %239 = vector.broadcast %cst_117 : f32 to vector<2x1xf32>
    %240 = arith.mulf %236, %239 : vector<2x1xf32>
    %241 = arith.mulf %238, %238 : vector<2x1xf32>
    %242 = arith.subf %240, %241 : vector<2x1xf32>
    %243 = vector.broadcast %238 : vector<2x1xf32> to vector<2x128xf32>
    %244 = arith.subf %229, %243 : vector<2x128xf32>
    %cst_118 = arith.constant 9.99999974E-6 : f32
    %245 = vector.broadcast %cst_118 : f32 to vector<2x1xf32>
    %246 = arith.addf %242, %245 : vector<2x1xf32>
    %247 = math.rsqrt %246 : vector<2x1xf32>
    %248 = vector.broadcast %247 : vector<2x1xf32> to vector<2x128xf32>
    %249 = arith.mulf %244, %248 : vector<2x128xf32>
    %250 = vector.broadcast %230 : vector<1x128xf32> to vector<2x128xf32>
    %251 = arith.mulf %249, %250 : vector<2x128xf32>
    %252 = vector.broadcast %231 : vector<1x128xf32> to vector<2x128xf32>
    %253 = arith.addf %251, %252 : vector<2x128xf32>
    %c3_119 = arith.constant 3 : index
    %c0_120 = arith.constant 0 : index
    %c0_121 = arith.constant 0 : index
    %254 = vector.load %arg3[%c3_119, %c0_120, %c0_121] : memref<6x128x256xbf16, #tpu.memory_space<vmem>>, vector<1x128x256xbf16>
    %255 = vector.shape_cast %254 : vector<1x128x256xbf16> to vector<128x256xbf16>
    %256 = arith.truncf %253 : vector<2x128xf32> to vector<2x128xbf16>
    %cst_122 = arith.constant dense<0.000000e+00> : vector<2x256xf32>
    %257 = tpu.matmul %256, %255, %cst_122 {dimension_numbers = #tpu.dot_dimension_numbers<[1], [0], [0], [1], [0, 0, 1, 1], [], []>} : vector<2x128xbf16>, vector<128x256xbf16>, vector<2x256xf32> -> vector<2x256xf32>
    %c3_123 = arith.constant 3 : index
    %c768_124 = arith.constant 768 : index
    %258 = vector.load %arg5[%c3_123, %c768_124] : memref<6x1024xf32, #tpu.memory_space<vmem>>, vector<1x256xf32>
    %259 = vector.broadcast %258 : vector<1x256xf32> to vector<2x256xf32>
    %260 = arith.addf %257, %259 : vector<2x256xf32>
    %cst_125 = arith.constant 0.000000e+00 : f32
    %261 = vector.broadcast %cst_125 : f32 to vector<2x256xf32>
    %262 = arith.maximumf %260, %261 : vector<2x256xf32>
    %c3_126 = arith.constant 3 : index
    %c0_127 = arith.constant 0 : index
    %c0_128 = arith.constant 0 : index
    %263 = vector.load %arg4[%c3_126, %c0_127, %c0_128] : memref<6x256x128xbf16, #tpu.memory_space<vmem>>, vector<1x256x128xbf16>
    %264 = vector.shape_cast %263 : vector<1x256x128xbf16> to vector<256x128xbf16>
    %265 = arith.truncf %262 : vector<2x256xf32> to vector<2x256xbf16>
    %cst_129 = arith.constant dense<0.000000e+00> : vector<2x128xf32>
    %266 = tpu.matmul %265, %264, %cst_129 {dimension_numbers = #tpu.dot_dimension_numbers<[1], [0], [0], [1], [0, 0, 1, 1], [], []>} : vector<2x256xbf16>, vector<256x128xbf16>, vector<2x128xf32> -> vector<2x128xf32>
    %c3_130 = arith.constant 3 : index
    %c640_131 = arith.constant 640 : index
    %267 = vector.load %arg5[%c3_130, %c640_131] : memref<6x1024xf32, #tpu.memory_space<vmem>>, vector<1x128xf32>
    %268 = vector.broadcast %267 : vector<1x128xf32> to vector<2x128xf32>
    %269 = arith.addf %266, %268 : vector<2x128xf32>
    %270 = arith.addf %253, %269 : vector<2x128xf32>
    %c3_132 = arith.constant 3 : index
    %c384_133 = arith.constant 384 : index
    %271 = vector.load %arg5[%c3_132, %c384_133] : memref<6x1024xf32, #tpu.memory_space<vmem>>, vector<1x128xf32>
    %c3_134 = arith.constant 3 : index
    %c512_135 = arith.constant 512 : index
    %272 = vector.load %arg5[%c3_134, %c512_135] : memref<6x1024xf32, #tpu.memory_space<vmem>>, vector<1x128xf32>
    %cst_136 = arith.constant dense<0.000000e+00> : vector<2xf32>
    %273 = vector.multi_reduction <add>, %270, %cst_136 [1] : vector<2x128xf32> to vector<2xf32>
    %274 = vector.shape_cast %273 : vector<2xf32> to vector<2x1xf32>
    %275 = arith.mulf %270, %270 : vector<2x128xf32>
    %cst_137 = arith.constant dense<0.000000e+00> : vector<2xf32>
    %276 = vector.multi_reduction <add>, %275, %cst_137 [1] : vector<2x128xf32> to vector<2xf32>
    %277 = vector.shape_cast %276 : vector<2xf32> to vector<2x1xf32>
    %cst_138 = arith.constant 7.812500e-03 : f32
    %278 = vector.broadcast %cst_138 : f32 to vector<2x1xf32>
    %279 = arith.mulf %274, %278 : vector<2x1xf32>
    %cst_139 = arith.constant 7.812500e-03 : f32
    %280 = vector.broadcast %cst_139 : f32 to vector<2x1xf32>
    %281 = arith.mulf %277, %280 : vector<2x1xf32>
    %282 = arith.mulf %279, %279 : vector<2x1xf32>
    %283 = arith.subf %281, %282 : vector<2x1xf32>
    %284 = vector.broadcast %279 : vector<2x1xf32> to vector<2x128xf32>
    %285 = arith.subf %270, %284 : vector<2x128xf32>
    %cst_140 = arith.constant 9.99999974E-6 : f32
    %286 = vector.broadcast %cst_140 : f32 to vector<2x1xf32>
    %287 = arith.addf %283, %286 : vector<2x1xf32>
    %288 = math.rsqrt %287 : vector<2x1xf32>
    %289 = vector.broadcast %288 : vector<2x1xf32> to vector<2x128xf32>
    %290 = arith.mulf %285, %289 : vector<2x128xf32>
    %291 = vector.broadcast %271 : vector<1x128xf32> to vector<2x128xf32>
    %292 = arith.mulf %290, %291 : vector<2x128xf32>
    %293 = vector.broadcast %272 : vector<1x128xf32> to vector<2x128xf32>
    %294 = arith.addf %292, %293 : vector<2x128xf32>
    %c4 = arith.constant 4 : index
    %c0_141 = arith.constant 0 : index
    %c0_142 = arith.constant 0 : index
    %295 = vector.load %arg2[%c4, %c0_141, %c0_142] : memref<6x128x128xbf16, #tpu.memory_space<vmem>>, vector<1x128x128xbf16>
    %296 = vector.shape_cast %295 : vector<1x128x128xbf16> to vector<128x128xbf16>
    %297 = arith.truncf %294 : vector<2x128xf32> to vector<2x128xbf16>
    %cst_143 = arith.constant dense<0.000000e+00> : vector<2x128xf32>
    %298 = tpu.matmul %297, %296, %cst_143 {dimension_numbers = #tpu.dot_dimension_numbers<[1], [0], [0], [1], [0, 0, 1, 1], [], []>} : vector<2x128xbf16>, vector<128x128xbf16>, vector<2x128xf32> -> vector<2x128xf32>
    %c4_144 = arith.constant 4 : index
    %c0_145 = arith.constant 0 : index
    %299 = vector.load %arg5[%c4_144, %c0_145] : memref<6x1024xf32, #tpu.memory_space<vmem>>, vector<1x128xf32>
    %300 = vector.broadcast %299 : vector<1x128xf32> to vector<2x128xf32>
    %301 = arith.addf %298, %300 : vector<2x128xf32>
    %302 = arith.addf %294, %301 : vector<2x128xf32>
    %c4_146 = arith.constant 4 : index
    %c128_147 = arith.constant 128 : index
    %303 = vector.load %arg5[%c4_146, %c128_147] : memref<6x1024xf32, #tpu.memory_space<vmem>>, vector<1x128xf32>
    %c4_148 = arith.constant 4 : index
    %c256_149 = arith.constant 256 : index
    %304 = vector.load %arg5[%c4_148, %c256_149] : memref<6x1024xf32, #tpu.memory_space<vmem>>, vector<1x128xf32>
    %cst_150 = arith.constant dense<0.000000e+00> : vector<2xf32>
    %305 = vector.multi_reduction <add>, %302, %cst_150 [1] : vector<2x128xf32> to vector<2xf32>
    %306 = vector.shape_cast %305 : vector<2xf32> to vector<2x1xf32>
    %307 = arith.mulf %302, %302 : vector<2x128xf32>
    %cst_151 = arith.constant dense<0.000000e+00> : vector<2xf32>
    %308 = vector.multi_reduction <add>, %307, %cst_151 [1] : vector<2x128xf32> to vector<2xf32>
    %309 = vector.shape_cast %308 : vector<2xf32> to vector<2x1xf32>
    %cst_152 = arith.constant 7.812500e-03 : f32
    %310 = vector.broadcast %cst_152 : f32 to vector<2x1xf32>
    %311 = arith.mulf %306, %310 : vector<2x1xf32>
    %cst_153 = arith.constant 7.812500e-03 : f32
    %312 = vector.broadcast %cst_153 : f32 to vector<2x1xf32>
    %313 = arith.mulf %309, %312 : vector<2x1xf32>
    %314 = arith.mulf %311, %311 : vector<2x1xf32>
    %315 = arith.subf %313, %314 : vector<2x1xf32>
    %316 = vector.broadcast %311 : vector<2x1xf32> to vector<2x128xf32>
    %317 = arith.subf %302, %316 : vector<2x128xf32>
    %cst_154 = arith.constant 9.99999974E-6 : f32
    %318 = vector.broadcast %cst_154 : f32 to vector<2x1xf32>
    %319 = arith.addf %315, %318 : vector<2x1xf32>
    %320 = math.rsqrt %319 : vector<2x1xf32>
    %321 = vector.broadcast %320 : vector<2x1xf32> to vector<2x128xf32>
    %322 = arith.mulf %317, %321 : vector<2x128xf32>
    %323 = vector.broadcast %303 : vector<1x128xf32> to vector<2x128xf32>
    %324 = arith.mulf %322, %323 : vector<2x128xf32>
    %325 = vector.broadcast %304 : vector<1x128xf32> to vector<2x128xf32>
    %326 = arith.addf %324, %325 : vector<2x128xf32>
    %c4_155 = arith.constant 4 : index
    %c0_156 = arith.constant 0 : index
    %c0_157 = arith.constant 0 : index
    %327 = vector.load %arg3[%c4_155, %c0_156, %c0_157] : memref<6x128x256xbf16, #tpu.memory_space<vmem>>, vector<1x128x256xbf16>
    %328 = vector.shape_cast %327 : vector<1x128x256xbf16> to vector<128x256xbf16>
    %329 = arith.truncf %326 : vector<2x128xf32> to vector<2x128xbf16>
    %cst_158 = arith.constant dense<0.000000e+00> : vector<2x256xf32>
    %330 = tpu.matmul %329, %328, %cst_158 {dimension_numbers = #tpu.dot_dimension_numbers<[1], [0], [0], [1], [0, 0, 1, 1], [], []>} : vector<2x128xbf16>, vector<128x256xbf16>, vector<2x256xf32> -> vector<2x256xf32>
    %c4_159 = arith.constant 4 : index
    %c768_160 = arith.constant 768 : index
    %331 = vector.load %arg5[%c4_159, %c768_160] : memref<6x1024xf32, #tpu.memory_space<vmem>>, vector<1x256xf32>
    %332 = vector.broadcast %331 : vector<1x256xf32> to vector<2x256xf32>
    %333 = arith.addf %330, %332 : vector<2x256xf32>
    %cst_161 = arith.constant 0.000000e+00 : f32
    %334 = vector.broadcast %cst_161 : f32 to vector<2x256xf32>
    %335 = arith.maximumf %333, %334 : vector<2x256xf32>
    %c4_162 = arith.constant 4 : index
    %c0_163 = arith.constant 0 : index
    %c0_164 = arith.constant 0 : index
    %336 = vector.load %arg4[%c4_162, %c0_163, %c0_164] : memref<6x256x128xbf16, #tpu.memory_space<vmem>>, vector<1x256x128xbf16>
    %337 = vector.shape_cast %336 : vector<1x256x128xbf16> to vector<256x128xbf16>
    %338 = arith.truncf %335 : vector<2x256xf32> to vector<2x256xbf16>
    %cst_165 = arith.constant dense<0.000000e+00> : vector<2x128xf32>
    %339 = tpu.matmul %338, %337, %cst_165 {dimension_numbers = #tpu.dot_dimension_numbers<[1], [0], [0], [1], [0, 0, 1, 1], [], []>} : vector<2x256xbf16>, vector<256x128xbf16>, vector<2x128xf32> -> vector<2x128xf32>
    %c4_166 = arith.constant 4 : index
    %c640_167 = arith.constant 640 : index
    %340 = vector.load %arg5[%c4_166, %c640_167] : memref<6x1024xf32, #tpu.memory_space<vmem>>, vector<1x128xf32>
    %341 = vector.broadcast %340 : vector<1x128xf32> to vector<2x128xf32>
    %342 = arith.addf %339, %341 : vector<2x128xf32>
    %343 = arith.addf %326, %342 : vector<2x128xf32>
    %c4_168 = arith.constant 4 : index
    %c384_169 = arith.constant 384 : index
    %344 = vector.load %arg5[%c4_168, %c384_169] : memref<6x1024xf32, #tpu.memory_space<vmem>>, vector<1x128xf32>
    %c4_170 = arith.constant 4 : index
    %c512_171 = arith.constant 512 : index
    %345 = vector.load %arg5[%c4_170, %c512_171] : memref<6x1024xf32, #tpu.memory_space<vmem>>, vector<1x128xf32>
    %cst_172 = arith.constant dense<0.000000e+00> : vector<2xf32>
    %346 = vector.multi_reduction <add>, %343, %cst_172 [1] : vector<2x128xf32> to vector<2xf32>
    %347 = vector.shape_cast %346 : vector<2xf32> to vector<2x1xf32>
    %348 = arith.mulf %343, %343 : vector<2x128xf32>
    %cst_173 = arith.constant dense<0.000000e+00> : vector<2xf32>
    %349 = vector.multi_reduction <add>, %348, %cst_173 [1] : vector<2x128xf32> to vector<2xf32>
    %350 = vector.shape_cast %349 : vector<2xf32> to vector<2x1xf32>
    %cst_174 = arith.constant 7.812500e-03 : f32
    %351 = vector.broadcast %cst_174 : f32 to vector<2x1xf32>
    %352 = arith.mulf %347, %351 : vector<2x1xf32>
    %cst_175 = arith.constant 7.812500e-03 : f32
    %353 = vector.broadcast %cst_175 : f32 to vector<2x1xf32>
    %354 = arith.mulf %350, %353 : vector<2x1xf32>
    %355 = arith.mulf %352, %352 : vector<2x1xf32>
    %356 = arith.subf %354, %355 : vector<2x1xf32>
    %357 = vector.broadcast %352 : vector<2x1xf32> to vector<2x128xf32>
    %358 = arith.subf %343, %357 : vector<2x128xf32>
    %cst_176 = arith.constant 9.99999974E-6 : f32
    %359 = vector.broadcast %cst_176 : f32 to vector<2x1xf32>
    %360 = arith.addf %356, %359 : vector<2x1xf32>
    %361 = math.rsqrt %360 : vector<2x1xf32>
    %362 = vector.broadcast %361 : vector<2x1xf32> to vector<2x128xf32>
    %363 = arith.mulf %358, %362 : vector<2x128xf32>
    %364 = vector.broadcast %344 : vector<1x128xf32> to vector<2x128xf32>
    %365 = arith.mulf %363, %364 : vector<2x128xf32>
    %366 = vector.broadcast %345 : vector<1x128xf32> to vector<2x128xf32>
    %367 = arith.addf %365, %366 : vector<2x128xf32>
    %c5 = arith.constant 5 : index
    %c0_177 = arith.constant 0 : index
    %c0_178 = arith.constant 0 : index
    %368 = vector.load %arg2[%c5, %c0_177, %c0_178] : memref<6x128x128xbf16, #tpu.memory_space<vmem>>, vector<1x128x128xbf16>
    %369 = vector.shape_cast %368 : vector<1x128x128xbf16> to vector<128x128xbf16>
    %370 = arith.truncf %367 : vector<2x128xf32> to vector<2x128xbf16>
    %cst_179 = arith.constant dense<0.000000e+00> : vector<2x128xf32>
    %371 = tpu.matmul %370, %369, %cst_179 {dimension_numbers = #tpu.dot_dimension_numbers<[1], [0], [0], [1], [0, 0, 1, 1], [], []>} : vector<2x128xbf16>, vector<128x128xbf16>, vector<2x128xf32> -> vector<2x128xf32>
    %c5_180 = arith.constant 5 : index
    %c0_181 = arith.constant 0 : index
    %372 = vector.load %arg5[%c5_180, %c0_181] : memref<6x1024xf32, #tpu.memory_space<vmem>>, vector<1x128xf32>
    %373 = vector.broadcast %372 : vector<1x128xf32> to vector<2x128xf32>
    %374 = arith.addf %371, %373 : vector<2x128xf32>
    %375 = arith.addf %367, %374 : vector<2x128xf32>
    %c5_182 = arith.constant 5 : index
    %c128_183 = arith.constant 128 : index
    %376 = vector.load %arg5[%c5_182, %c128_183] : memref<6x1024xf32, #tpu.memory_space<vmem>>, vector<1x128xf32>
    %c5_184 = arith.constant 5 : index
    %c256_185 = arith.constant 256 : index
    %377 = vector.load %arg5[%c5_184, %c256_185] : memref<6x1024xf32, #tpu.memory_space<vmem>>, vector<1x128xf32>
    %cst_186 = arith.constant dense<0.000000e+00> : vector<2xf32>
    %378 = vector.multi_reduction <add>, %375, %cst_186 [1] : vector<2x128xf32> to vector<2xf32>
    %379 = vector.shape_cast %378 : vector<2xf32> to vector<2x1xf32>
    %380 = arith.mulf %375, %375 : vector<2x128xf32>
    %cst_187 = arith.constant dense<0.000000e+00> : vector<2xf32>
    %381 = vector.multi_reduction <add>, %380, %cst_187 [1] : vector<2x128xf32> to vector<2xf32>
    %382 = vector.shape_cast %381 : vector<2xf32> to vector<2x1xf32>
    %cst_188 = arith.constant 7.812500e-03 : f32
    %383 = vector.broadcast %cst_188 : f32 to vector<2x1xf32>
    %384 = arith.mulf %379, %383 : vector<2x1xf32>
    %cst_189 = arith.constant 7.812500e-03 : f32
    %385 = vector.broadcast %cst_189 : f32 to vector<2x1xf32>
    %386 = arith.mulf %382, %385 : vector<2x1xf32>
    %387 = arith.mulf %384, %384 : vector<2x1xf32>
    %388 = arith.subf %386, %387 : vector<2x1xf32>
    %389 = vector.broadcast %384 : vector<2x1xf32> to vector<2x128xf32>
    %390 = arith.subf %375, %389 : vector<2x128xf32>
    %cst_190 = arith.constant 9.99999974E-6 : f32
    %391 = vector.broadcast %cst_190 : f32 to vector<2x1xf32>
    %392 = arith.addf %388, %391 : vector<2x1xf32>
    %393 = math.rsqrt %392 : vector<2x1xf32>
    %394 = vector.broadcast %393 : vector<2x1xf32> to vector<2x128xf32>
    %395 = arith.mulf %390, %394 : vector<2x128xf32>
    %396 = vector.broadcast %376 : vector<1x128xf32> to vector<2x128xf32>
    %397 = arith.mulf %395, %396 : vector<2x128xf32>
    %398 = vector.broadcast %377 : vector<1x128xf32> to vector<2x128xf32>
    %399 = arith.addf %397, %398 : vector<2x128xf32>
    %c5_191 = arith.constant 5 : index
    %c0_192 = arith.constant 0 : index
    %c0_193 = arith.constant 0 : index
    %400 = vector.load %arg3[%c5_191, %c0_192, %c0_193] : memref<6x128x256xbf16, #tpu.memory_space<vmem>>, vector<1x128x256xbf16>
    %401 = vector.shape_cast %400 : vector<1x128x256xbf16> to vector<128x256xbf16>
    %402 = arith.truncf %399 : vector<2x128xf32> to vector<2x128xbf16>
    %cst_194 = arith.constant dense<0.000000e+00> : vector<2x256xf32>
    %403 = tpu.matmul %402, %401, %cst_194 {dimension_numbers = #tpu.dot_dimension_numbers<[1], [0], [0], [1], [0, 0, 1, 1], [], []>} : vector<2x128xbf16>, vector<128x256xbf16>, vector<2x256xf32> -> vector<2x256xf32>
    %c5_195 = arith.constant 5 : index
    %c768_196 = arith.constant 768 : index
    %404 = vector.load %arg5[%c5_195, %c768_196] : memref<6x1024xf32, #tpu.memory_space<vmem>>, vector<1x256xf32>
    %405 = vector.broadcast %404 : vector<1x256xf32> to vector<2x256xf32>
    %406 = arith.addf %403, %405 : vector<2x256xf32>
    %cst_197 = arith.constant 0.000000e+00 : f32
    %407 = vector.broadcast %cst_197 : f32 to vector<2x256xf32>
    %408 = arith.maximumf %406, %407 : vector<2x256xf32>
    %c5_198 = arith.constant 5 : index
    %c0_199 = arith.constant 0 : index
    %c0_200 = arith.constant 0 : index
    %409 = vector.load %arg4[%c5_198, %c0_199, %c0_200] : memref<6x256x128xbf16, #tpu.memory_space<vmem>>, vector<1x256x128xbf16>
    %410 = vector.shape_cast %409 : vector<1x256x128xbf16> to vector<256x128xbf16>
    %411 = arith.truncf %408 : vector<2x256xf32> to vector<2x256xbf16>
    %cst_201 = arith.constant dense<0.000000e+00> : vector<2x128xf32>
    %412 = tpu.matmul %411, %410, %cst_201 {dimension_numbers = #tpu.dot_dimension_numbers<[1], [0], [0], [1], [0, 0, 1, 1], [], []>} : vector<2x256xbf16>, vector<256x128xbf16>, vector<2x128xf32> -> vector<2x128xf32>
    %c5_202 = arith.constant 5 : index
    %c640_203 = arith.constant 640 : index
    %413 = vector.load %arg5[%c5_202, %c640_203] : memref<6x1024xf32, #tpu.memory_space<vmem>>, vector<1x128xf32>
    %414 = vector.broadcast %413 : vector<1x128xf32> to vector<2x128xf32>
    %415 = arith.addf %412, %414 : vector<2x128xf32>
    %416 = arith.addf %399, %415 : vector<2x128xf32>
    %c5_204 = arith.constant 5 : index
    %c384_205 = arith.constant 384 : index
    %417 = vector.load %arg5[%c5_204, %c384_205] : memref<6x1024xf32, #tpu.memory_space<vmem>>, vector<1x128xf32>
    %c5_206 = arith.constant 5 : index
    %c512_207 = arith.constant 512 : index
    %418 = vector.load %arg5[%c5_206, %c512_207] : memref<6x1024xf32, #tpu.memory_space<vmem>>, vector<1x128xf32>
    %cst_208 = arith.constant dense<0.000000e+00> : vector<2xf32>
    %419 = vector.multi_reduction <add>, %416, %cst_208 [1] : vector<2x128xf32> to vector<2xf32>
    %420 = vector.shape_cast %419 : vector<2xf32> to vector<2x1xf32>
    %421 = arith.mulf %416, %416 : vector<2x128xf32>
    %cst_209 = arith.constant dense<0.000000e+00> : vector<2xf32>
    %422 = vector.multi_reduction <add>, %421, %cst_209 [1] : vector<2x128xf32> to vector<2xf32>
    %423 = vector.shape_cast %422 : vector<2xf32> to vector<2x1xf32>
    %cst_210 = arith.constant 7.812500e-03 : f32
    %424 = vector.broadcast %cst_210 : f32 to vector<2x1xf32>
    %425 = arith.mulf %420, %424 : vector<2x1xf32>
    %cst_211 = arith.constant 7.812500e-03 : f32
    %426 = vector.broadcast %cst_211 : f32 to vector<2x1xf32>
    %427 = arith.mulf %423, %426 : vector<2x1xf32>
    %428 = arith.mulf %425, %425 : vector<2x1xf32>
    %429 = arith.subf %427, %428 : vector<2x1xf32>
    %430 = vector.broadcast %425 : vector<2x1xf32> to vector<2x128xf32>
    %431 = arith.subf %416, %430 : vector<2x128xf32>
    %cst_212 = arith.constant 9.99999974E-6 : f32
    %432 = vector.broadcast %cst_212 : f32 to vector<2x1xf32>
    %433 = arith.addf %429, %432 : vector<2x1xf32>
    %434 = math.rsqrt %433 : vector<2x1xf32>
    %435 = vector.broadcast %434 : vector<2x1xf32> to vector<2x128xf32>
    %436 = arith.mulf %431, %435 : vector<2x128xf32>
    %437 = vector.broadcast %417 : vector<1x128xf32> to vector<2x128xf32>
    %438 = arith.mulf %436, %437 : vector<2x128xf32>
    %439 = vector.broadcast %418 : vector<1x128xf32> to vector<2x128xf32>
    %440 = arith.addf %438, %439 : vector<2x128xf32>
    %c0_213 = arith.constant 0 : index
    %c0_214 = arith.constant 0 : index
    %441 = vector.load %arg6[%c0_213, %c0_214] : memref<128x512xbf16, #tpu.memory_space<vmem>>, vector<128x512xbf16>
    %442 = arith.truncf %440 : vector<2x128xf32> to vector<2x128xbf16>
    %cst_215 = arith.constant dense<0.000000e+00> : vector<2x512xf32>
    %443 = tpu.matmul %442, %441, %cst_215 {dimension_numbers = #tpu.dot_dimension_numbers<[1], [0], [0], [1], [0, 0, 1, 1], [], []>} : vector<2x128xbf16>, vector<128x512xbf16>, vector<2x512xf32> -> vector<2x512xf32>
    %c0_216 = arith.constant 0 : index
    %c0_217 = arith.constant 0 : index
    %444 = vector.load %arg8[%c0_216, %c0_217] : memref<1x640xf32, #tpu.memory_space<vmem>>, vector<1x512xf32>
    %445 = vector.broadcast %444 : vector<1x512xf32> to vector<2x512xf32>
    %446 = arith.addf %443, %445 : vector<2x512xf32>
    %cst_218 = arith.constant 0.000000e+00 : f32
    %447 = vector.broadcast %cst_218 : f32 to vector<2x512xf32>
    %448 = arith.maximumf %446, %447 : vector<2x512xf32>
    %c0_219 = arith.constant 0 : index
    %c0_220 = arith.constant 0 : index
    %449 = vector.load %arg7[%c0_219, %c0_220] : memref<512x128xbf16, #tpu.memory_space<vmem>>, vector<512x128xbf16>
    %450 = arith.truncf %448 : vector<2x512xf32> to vector<2x512xbf16>
    %cst_221 = arith.constant dense<0.000000e+00> : vector<2x128xf32>
    %451 = tpu.matmul %450, %449, %cst_221 {dimension_numbers = #tpu.dot_dimension_numbers<[1], [0], [0], [1], [0, 0, 1, 1], [], []>} : vector<2x512xbf16>, vector<512x128xbf16>, vector<2x128xf32> -> vector<2x128xf32>
    %c0_222 = arith.constant 0 : index
    %c512_223 = arith.constant 512 : index
    %452 = vector.load %arg8[%c0_222, %c512_223] : memref<1x640xf32, #tpu.memory_space<vmem>>, vector<1x128xf32>
    %453 = vector.broadcast %452 : vector<1x128xf32> to vector<2x128xf32>
    %454 = arith.addf %451, %453 : vector<2x128xf32>
    %cst_224 = arith.constant dense<0xFF800000> : vector<2xf32>
    %455 = vector.multi_reduction <maximumf>, %454, %cst_224 [1] : vector<2x128xf32> to vector<2xf32>
    %456 = vector.shape_cast %455 : vector<2xf32> to vector<2x1xf32>
    %457 = vector.broadcast %456 : vector<2x1xf32> to vector<2x128xf32>
    %458 = arith.subf %454, %457 : vector<2x128xf32>
    %459 = math.exp %458 : vector<2x128xf32>
    %cst_225 = arith.constant dense<0.000000e+00> : vector<2xf32>
    %460 = vector.multi_reduction <add>, %459, %cst_225 [1] : vector<2x128xf32> to vector<2xf32>
    %461 = vector.shape_cast %460 : vector<2xf32> to vector<2x1xf32>
    %462 = vector.broadcast %461 : vector<2x1xf32> to vector<2x128xf32>
    %463 = arith.divf %459, %462 : vector<2x128xf32>
    %c0_226 = arith.constant 0 : index
    %c0_227 = arith.constant 0 : index
    %464 = vector.load %arg9[%c0_226, %c0_227] : memref<2x128xf32, #tpu.memory_space<vmem>>, vector<2x128xf32>
    tpu.vector_store %arg9[%c0_226, %c0_227], %463 {strides = array<i32>} : memref<2x128xf32, #tpu.memory_space<vmem>>, vector<2x128xf32>,
    return
  }
}

</mosaic_0001>

<llo_original>
// kernel: multimodal_forward.1
$region0: #{multimodal_forward.1}
  #allocation0 [shape = 'u32[]', space=smem, size = 0x4, offset = 0x4, fixed_abs, tag = 'smem constant byte address 0x4 - core index']
  #allocation1 [shape = 'u32[144,128]{1,0:T(1,128)}', space=vmem, size = 0x12000, scoped, tag = 'internal scratch']
  %s0 = inlined_call_operand.vmem [shape: f32[2,64], index: 0, kind: input, shape index: {}]
  %s1 = inlined_call_operand.vmem [shape: f32[2,64], index: 1, kind: input, shape index: {}]
  %s2 = inlined_call_operand.vmem [shape: bf16[6,128,128], index: 2, kind: input, shape index: {}]
  %s3 = inlined_call_operand.hbm [shape: bf16[6,128,256], index: 3, kind: input, shape index: {}]
  %s4 = inlined_call_operand.hbm [shape: bf16[6,256,128], index: 4, kind: input, shape index: {}]
  %s5 = inlined_call_operand.hbm [shape: f32[6,1024], index: 5, kind: input, shape index: {}]
  %s6 = inlined_call_operand.vmem [shape: bf16[128,512], index: 6, kind: input, shape index: {}]
  %s7 = inlined_call_operand.hbm [shape: bf16[512,128], index: 7, kind: input, shape index: {}]
  %s8 = inlined_call_operand.vmem [shape: f32[1,640], index: 8, kind: input, shape index: {}]
  %s9 = inlined_call_operand.hbm [shape: f32[2,128], index: 9, kind: output, shape index: {}]
  %s10 = sld [smem:[#allocation0]]
  $region62: #{multimodal_forward.1} parent=0
    _
  %s12 = ssub.s32 1, %s10
  %s13 = scalar_select 0, %s12, %s10
  $region1: #{multimodal_forward.1} parent=0
    #allocation2 [shape = 'u8[393216]{0}', space=vmem, size = 0x60000, scoped, tag = 'input window, operand 3, single buffered']
    #allocation3 [shape = 's32[1]{0}', space=sflag, size = 0x4, scoped, tag = 'scoped memory for multimodal_forward.1']
    #allocation4 [shape = 's32[1]{0}', space=sflag, size = 0x4, scoped, tag = 'scoped memory for multimodal_forward.1']
    #allocation5 [shape = 'u8[393216]{0}', space=vmem, size = 0x60000, scoped, tag = 'input window, operand 4, single buffered']
    #allocation6 [shape = 's32[1]{0}', space=sflag, size = 0x4, scoped, tag = 'scoped memory for multimodal_forward.1']
    #allocation7 [shape = 'u8[32768]{0}', space=vmem, size = 0x8000, scoped, tag = 'input window, operand 5, single buffered']
    #allocation8 [shape = 'u8[131072]{0}', space=vmem, size = 0x20000, scoped, tag = 'input window, operand 7, single buffered']
    #allocation9 [shape = 's32[1]{0}', space=sflag, size = 0x4, scoped, tag = 'scoped memory for multimodal_forward.1']
    #allocation10 [shape = 'u8[1024]{0}', space=vmem, size = 0x400, scoped, tag = 'output window, operand 0, single buffered']
    %14 = vsyncpa [#allocation3], 0
    %15 = vsyncpa [#allocation6], 0
    %16 = vsyncpa [#allocation9], 0
    %17 = vsyncpa [#allocation4], 0
    // Predicated region
    $region2: #{multimodal_forward.1} parent=1 // pred_check
      _
    $region3: #{multimodal_forward.1} parent=1 // pred_check_branch
      %19 = sbr.rel (0) target = $region5
    $region4: #{multimodal_forward.1} parent=1 // pred_region
      _
    $region5: #{multimodal_forward.1} parent=1 // pred_fallthru
      _
    // Predicated region
    $region6: #{multimodal_forward.1} parent=1 // pred_check
      _
    $region7: #{multimodal_forward.1} parent=1 // pred_check_branch
      %21 = sbr.rel (0) target = $region9
    $region8: #{multimodal_forward.1} parent=1 // pred_region
      _
    $region9: #{multimodal_forward.1} parent=1 // pred_fallthru
      _
    // Predicated region
    $region10: #{multimodal_forward.1} parent=1 // pred_check
      _
    $region11: #{multimodal_forward.1} parent=1 // pred_check_branch
      %23 = sbr.rel (0) target = $region13
    $region12: #{multimodal_forward.1} parent=1 // pred_region
      _
    $region13: #{multimodal_forward.1} parent=1 // pred_fallthru
      _
    // Predicated region
    $region14: #{multimodal_forward.1} parent=1 // pred_check
      _
    $region15: #{multimodal_forward.1} parent=1 // pred_check_branch
      %25 = sbr.rel (0) target = $region17
    $region16: #{multimodal_forward.1} parent=1 // pred_region
      %s27 = ssub.s32 12288, 12288
      %28 = vsyncadd [#allocation3], %s27
      %s29 = sshll.u32 [#allocation2], 4
      %s30 = int_to_ptr.vmem [resolvable:$true] %s29
      %35 = dma.hbm_to_vmem [thread:$0]  %s3, 12288, %s30, [#allocation3], 128, 128, 8
    $region17: #{multimodal_forward.1} parent=1 // pred_fallthru
      _
    // Predicated region
    $region18: #{multimodal_forward.1} parent=1 // pred_check
      _
    $region19: #{multimodal_forward.1} parent=1 // pred_check_branch
      %37 = sbr.rel (0) target = $region21
    $region20: #{multimodal_forward.1} parent=1 // pred_region
      %s39 = ssub.s32 12288, 12288
      %40 = vsyncadd [#allocation6], %s39
      %s41 = sshll.u32 [#allocation5], 4
      %s42 = int_to_ptr.vmem [resolvable:$true] %s41
      %47 = dma.hbm_to_vmem [thread:$0]  %s4, 12288, %s42, [#allocation6], 64, 64, 4
    $region21: #{multimodal_forward.1} parent=1 // pred_fallthru
      _
    // Predicated region
    $region22: #{multimodal_forward.1} parent=1 // pred_check
      _
    $region23: #{multimodal_forward.1} parent=1 // pred_check_branch
      %49 = sbr.rel (0) target = $region25
    $region24: #{multimodal_forward.1} parent=1 // pred_region
      %s51 = ssub.s32 1024, 1024
      %52 = vsyncadd [#allocation6], %s51
      %s54 = sshll.u32 [#allocation7], 4
      %s55 = int_to_ptr.vmem [resolvable:$true] %s54
      %57 = dma.hbm_to_vmem [thread:$0]  %s5, 1024, %s55, [#allocation6]
    $region25: #{multimodal_forward.1} parent=1 // pred_fallthru
      _
    // Predicated region
    $region26: #{multimodal_forward.1} parent=1 // pred_check
      _
    $region27: #{multimodal_forward.1} parent=1 // pred_check_branch
      %59 = sbr.rel (0) target = $region29
    $region28: #{multimodal_forward.1} parent=1 // pred_region
      _
    $region29: #{multimodal_forward.1} parent=1 // pred_fallthru
      _
    // Predicated region
    $region30: #{multimodal_forward.1} parent=1 // pred_check
      _
    $region31: #{multimodal_forward.1} parent=1 // pred_check_branch
      %61 = sbr.rel (0) target = $region33
    $region32: #{multimodal_forward.1} parent=1 // pred_region
      %s63 = ssub.s32 4096, 4096
      %64 = vsyncadd [#allocation9], %s63
      %s65 = sshll.u32 [#allocation8], 4
      %s66 = int_to_ptr.vmem [resolvable:$true] %s65
      %71 = dma.hbm_to_vmem [thread:$0]  %s7, 4096, %s66, [#allocation9], 64, 64, 4
    $region33: #{multimodal_forward.1} parent=1 // pred_fallthru
      _
    // Predicated region
    $region34: #{multimodal_forward.1} parent=1 // pred_check
      _
    $region35: #{multimodal_forward.1} parent=1 // pred_check_branch
      %73 = sbr.rel (0) target = $region37
    $region36: #{multimodal_forward.1} parent=1 // pred_region
      _
    $region37: #{multimodal_forward.1} parent=1 // pred_fallthru
      _
    // Predicated region
    $region38: #{multimodal_forward.1} parent=1 // pred_check
      _
    $region39: #{multimodal_forward.1} parent=1 // pred_check_branch
      %75 = sbr.rel (0) target = $region41
    $region40: #{multimodal_forward.1} parent=1 // pred_region
      %76 = dma.done [#allocation3], 12288
    $region41: #{multimodal_forward.1} parent=1 // pred_fallthru
      _
    // Predicated region
    $region42: #{multimodal_forward.1} parent=1 // pred_check
      _
    $region43: #{multimodal_forward.1} parent=1 // pred_check_branch
      %78 = sbr.rel (0) target = $region45
    $region44: #{multimodal_forward.1} parent=1 // pred_region
      %79 = dma.done [#allocation6], 12288
    $region45: #{multimodal_forward.1} parent=1 // pred_fallthru
      _
    // Predicated region
    $region46: #{multimodal_forward.1} parent=1 // pred_check
      _
    $region47: #{multimodal_forward.1} parent=1 // pred_check_branch
      %81 = sbr.rel (0) target = $region49
    $region48: #{multimodal_forward.1} parent=1 // pred_region
      %82 = dma.done [#allocation6], 1024
    $region49: #{multimodal_forward.1} parent=1 // pred_fallthru
      _
    // Predicated region
    $region50: #{multimodal_forward.1} parent=1 // pred_check
      _
    $region51: #{multimodal_forward.1} parent=1 // pred_check_branch
      %84 = sbr.rel (0) target = $region53
    $region52: #{multimodal_forward.1} parent=1 // pred_region
      %85 = dma.done [#allocation9], 4096
    $region53: #{multimodal_forward.1} parent=1 // pred_fallthru
      _
    %v87 = vld [vmem:[%s0] sm:$0x3]
    %v88 = vld [vmem:[%s1] sm:$0x3]
    %90 = vrot.lane.b32.xlu0 %v88, 64
    %v91 = vpop.permute.xlu0 %90
    %vm93 = vcmask 523264
    %v94 = vsel %vm93, %v87, %v91
    %v95 = vld [vmem:[%s2] sm:$0xf]
    %v96 = vld [vmem:[%s2 + $0x4] sm:$0xf]
    %v97 = vld [vmem:[%s2 + $0x8] sm:$0xf]
    %v98 = vld [vmem:[%s2 + $0xc] sm:$0xf]
    %v99 = vld [vmem:[%s2 + $0x10] sm:$0xf]
    %v100 = vld [vmem:[%s2 + $0x14] sm:$0xf]
    %v101 = vld [vmem:[%s2 + $0x18] sm:$0xf]
    %v102 = vld [vmem:[%s2 + $0x1c] sm:$0xf]
    %v103 = vld [vmem:[%s2 + $0x20] sm:$0xf]
    %v104 = vld [vmem:[%s2 + $0x24] sm:$0xf]
    %v105 = vld [vmem:[%s2 + $0x28] sm:$0xf]
    %v106 = vld [vmem:[%s2 + $0x2c] sm:$0xf]
    %v107 = vld [vmem:[%s2 + $0x30] sm:$0xf]
    %v108 = vld [vmem:[%s2 + $0x34] sm:$0xf]
    %v109 = vld [vmem:[%s2 + $0x38] sm:$0xf]
    %v110 = vld [vmem:[%s2 + $0x3c] sm:$0xf]
    %v111 = vpack.c.bf16 %v94, %v94
    %v112 = vld [vmem:[#allocation7] ss:$0 sm:$0xff]
    %v129 = vunpack.c.l.b16 %v95
    %v130 = vunpack.c.l.b16 %v96
    %v131 = vunpack.c.l.b16 %v97
    %v132 = vunpack.c.l.b16 %v98
    %v133 = vunpack.c.l.b16 %v99
    %v134 = vunpack.c.l.b16 %v100
    %v135 = vunpack.c.l.b16 %v101
    %v136 = vunpack.c.l.b16 %v102
    %v137 = vunpack.c.l.b16 %v103
    %v138 = vunpack.c.l.b16 %v104
    %v139 = vunpack.c.l.b16 %v105
    %v140 = vunpack.c.l.b16 %v106
    %v141 = vunpack.c.l.b16 %v107
    %v142 = vunpack.c.l.b16 %v108
    %v143 = vunpack.c.l.b16 %v109
    %v144 = vunpack.c.l.b16 %v110
    %v145 = vpack.c.b16 %v130, %v129
    %v146 = vpack.c.b16 %v132, %v131
    %v147 = vpack.c.b16 %v134, %v133
    %v148 = vpack.c.b16 %v136, %v135
    %v149 = vpack.c.b16 %v138, %v137
    %v150 = vpack.c.b16 %v140, %v139
    %v151 = vpack.c.b16 %v142, %v141
    %v152 = vpack.c.b16 %v144, %v143
    %161 = vmatprep.subr.bf16.mxu0 0
    %162 = vmatpush1.bf16.msra.mxu0 %v152
    %163 = vmatprep.subr.bf16.mxu0 0
    %164 = vmatpush1.bf16.msra.mxu0 %v151
    %165 = vmatprep.subr.bf16.mxu0 0
    %166 = vmatpush1.bf16.msra.mxu0 %v150
    %167 = vmatprep.subr.bf16.mxu0 0
    %168 = vmatpush1.bf16.msra.mxu0 %v149
    %169 = vmatprep.subr.bf16.mxu0 0
    %170 = vmatpush1.bf16.msra.mxu0 %v148
    %171 = vmatprep.subr.bf16.mxu0 0
    %172 = vmatpush1.bf16.msra.mxu0 %v147
    %173 = vmatprep.subr.bf16.mxu0 0
    %174 = vmatpush1.bf16.msra.mxu0 %v146
    %175 = vmatprep.subr.bf16.mxu0 0
    %176 = vmatpush1.bf16.msra.mxu0 %v145
    %177 = vmatprep.subr.bf16.mxu0 0
    %178 = vmatpush2.bf16.msra.mxu0 0
    %179 = vmatprep.subr.bf16.mxu0 0
    %180 = vmatpush2.bf16.msra.mxu0 0
    %181 = vmatprep.subr.bf16.mxu0 0
    %182 = vmatpush2.bf16.msra.mxu0 0
    %183 = vmatprep.subr.bf16.mxu0 0
    %184 = vmatpush2.bf16.msra.mxu0 0
    %185 = vmatprep.subr.bf16.mxu0 0
    %186 = vmatpush2.bf16.msra.mxu0 0
    %187 = vmatprep.subr.bf16.mxu0 0
    %188 = vmatpush2.bf16.msra.mxu0 0
    %189 = vmatprep.subr.bf16.mxu0 0
    %190 = vmatpush2.bf16.msra.mxu0 0
    %191 = vmatprep.subr.bf16.mxu0 0
    %192 = vmatpush2.bf16.msra.mxu0 0
    %193 = vmatprep.mubr.bf16.mxu0 0
    %194 = vmatmul.mubr.bf16.gmra.mxu0 %v111
    %v195 = vpop.f32.mrf.mxu0
    %v196 = vadd.f32 %v112, %v195
    %v197 = vpop.f32.mrf.mxu0
    %v198 = vpop.f32.mrf.mxu0
    %v199 = vpop.f32.mrf.mxu0
    %200 = vdwg.mxu0
    %v201 = vadd.f32 %v94, %v196
    %v202 = vld [vmem:[#allocation7 + $0x8] ss:$0 sm:$0xff]
    %v203 = vld [vmem:[#allocation7 + $0x10] ss:$0 sm:$0xff]
    %vm204 = vcmask 1041408
    %v205 = vsel %vm204, %v201, 0.0
    %206 = vadd.xlane.f32.xlu0 %v205
    %v207 = vpop.xlane.xlu0 %206
    %v208 = vmul.f32 %v201, %v201
    %v209 = vsel %vm204, %v208, 0.0
    %210 = vadd.xlane.f32.xlu0 %v209
    %v211 = vpop.xlane.xlu0 %210
    %v212 = vmul.f32 %v207, 0.0078125
    %v213 = vmul.f32 %v211, 0.0078125
    %v214 = vmul.f32 %v212, %v212
    %v215 = vsub.f32 %v213, %v214
    %v216 = vsub.f32 %v201, %v212
    %v217 = vadd.f32 %v215, 1e-05
    %v218 = vrsqrt.pop %v217
    %v219 = vmul.f32 %v216, %v218
    %v220 = vmul.f32 %v219, %v202
    %v221 = vadd.f32 %v220, %v203
    %v222 = vld [vmem:[#allocation2] sm:$0xff]
    %v223 = vld [vmem:[#allocation2 + $0x8] sm:$0xff]
    %v224 = vld [vmem:[#allocation2 + $0x10] sm:$0xff]
    %v225 = vld [vmem:[#allocation2 + $0x18] sm:$0xff]
    %v226 = vld [vmem:[#allocation2 + $0x20] sm:$0xff]
    %v227 = vld [vmem:[#allocation2 + $0x28] sm:$0xff]
    %v228 = vld [vmem:[#allocation2 + $0x30] sm:$0xff]
    %v229 = vld [vmem:[#allocation2 + $0x38] sm:$0xff]
    %v230 = vld [vmem:[#allocation2 + $0x40] sm:$0xff]
    %v231 = vld [vmem:[#allocation2 + $0x48] sm:$0xff]
    %v232 = vld [vmem:[#allocation2 + $0x50] sm:$0xff]
    %v233 = vld [vmem:[#allocation2 + $0x58] sm:$0xff]
    %v234 = vld [vmem:[#allocation2 + $0x60] sm:$0xff]
    %v235 = vld [vmem:[#allocation2 + $0x68] sm:$0xff]
    %v236 = vld [vmem:[#allocation2 + $0x70] sm:$0xff]
    %v237 = vld [vmem:[#allocation2 + $0x78] sm:$0xff]
    %v238 = vpack.c.bf16 %v221, %v221
    %s239 = scalar_lea.vmem [#allocation7], 48
    %v240 = vld [vmem:[%s239] ss:$8 sm:$0x3]
    %v242 = vlaneseq
    %v243 = vshrl.u32 %v242, 7
    %v244 = vsub.s32 0, %v243
    %v245 = vrot.slane %v240, %v244
    %v246 = vlaneseq
    %v247 = vshrl.u32 %v246, 7
    %v248 = vsub.s32 1, %v247
    %v249 = vrot.slane %v240, %v248
    %v268 = vunpack.c.l.b16 %v222
    %v269 = vunpack.c.h.b16 %v222
    %v270 = vunpack.c.l.b16 %v223
    %v271 = vunpack.c.h.b16 %v223
    %v272 = vunpack.c.l.b16 %v224
    %v273 = vunpack.c.h.b16 %v224
    %v274 = vunpack.c.l.b16 %v225
    %v275 = vunpack.c.h.b16 %v225
    %v276 = vunpack.c.l.b16 %v226
    %v277 = vunpack.c.h.b16 %v226
    %v278 = vunpack.c.l.b16 %v227
    %v279 = vunpack.c.h.b16 %v227
    %v280 = vunpack.c.l.b16 %v228
    %v281 = vunpack.c.h.b16 %v228
    %v282 = vunpack.c.l.b16 %v229
    %v283 = vunpack.c.h.b16 %v229
    %v284 = vunpack.c.l.b16 %v230
    %v285 = vunpack.c.h.b16 %v230
    %v286 = vunpack.c.l.b16 %v231
    %v287 = vunpack.c.h.b16 %v231
    %v288 = vunpack.c.l.b16 %v232
    %v289 = vunpack.c.h.b16 %v232
    %v290 = vunpack.c.l.b16 %v233
    %v291 = vunpack.c.h.b16 %v233
    %v292 = vunpack.c.l.b16 %v234
    %v293 = vunpack.c.h.b16 %v234
    %v294 = vunpack.c.l.b16 %v235
    %v295 = vunpack.c.h.b16 %v235
    %v296 = vunpack.c.l.b16 %v236
    %v297 = vunpack.c.h.b16 %v236
    %v298 = vunpack.c.l.b16 %v237
    %v299 = vunpack.c.h.b16 %v237
    %v300 = vpack.c.b16 %v270, %v268
    %v301 = vpack.c.b16 %v271, %v269
    %v302 = vpack.c.b16 %v274, %v272
    %v303 = vpack.c.b16 %v275, %v273
    %v304 = vpack.c.b16 %v278, %v276
    %v305 = vpack.c.b16 %v279, %v277
    %v306 = vpack.c.b16 %v282, %v280
    %v307 = vpack.c.b16 %v283, %v281
    %v308 = vpack.c.b16 %v286, %v284
    %v309 = vpack.c.b16 %v287, %v285
    %v310 = vpack.c.b16 %v290, %v288
    %v311 = vpack.c.b16 %v291, %v289
    %v312 = vpack.c.b16 %v294, %v292
    %v313 = vpack.c.b16 %v295, %v293
    %v314 = vpack.c.b16 %v298, %v296
    %v315 = vpack.c.b16 %v299, %v297
    %332 = vmatprep.subr.bf16.mxu0 %v315
    %333 = vmatpush1.bf16.msra.mxu0 %v314
    %334 = vmatprep.subr.bf16.mxu0 %v313
    %335 = vmatpush1.bf16.msra.mxu0 %v312
    %336 = vmatprep.subr.bf16.mxu0 %v311
    %337 = vmatpush1.bf16.msra.mxu0 %v310
    %338 = vmatprep.subr.bf16.mxu0 %v309
    %339 = vmatpush1.bf16.msra.mxu0 %v308
    %340 = vmatprep.subr.bf16.mxu0 %v307
    %341 = vmatpush1.bf16.msra.mxu0 %v306
    %342 = vmatprep.subr.bf16.mxu0 %v305
    %343 = vmatpush1.bf16.msra.mxu0 %v304
    %344 = vmatprep.subr.bf16.mxu0 %v303
    %345 = vmatpush1.bf16.msra.mxu0 %v302
    %346 = vmatprep.subr.bf16.mxu0 %v301
    %347 = vmatpush1.bf16.msra.mxu0 %v300
    %348 = vmatprep.subr.bf16.mxu0 0
    %349 = vmatpush2.bf16.msra.mxu0 0
    %350 = vmatprep.subr.bf16.mxu0 0
    %351 = vmatpush2.bf16.msra.mxu0 0
    %352 = vmatprep.subr.bf16.mxu0 0
    %353 = vmatpush2.bf16.msra.mxu0 0
    %354 = vmatprep.subr.bf16.mxu0 0
    %355 = vmatpush2.bf16.msra.mxu0 0
    %356 = vmatprep.subr.bf16.mxu0 0
    %357 = vmatpush2.bf16.msra.mxu0 0
    %358 = vmatprep.subr.bf16.mxu0 0
    %359 = vmatpush2.bf16.msra.mxu0 0
    %360 = vmatprep.subr.bf16.mxu0 0
    %361 = vmatpush2.bf16.msra.mxu0 0
    %362 = vmatprep.subr.bf16.mxu0 0
    %363 = vmatpush2.bf16.msra.mxu0 0
    %364 = vmatprep.mubr.bf16.mxu0 0
    %365 = vmatmul.mubr.bf16.gmra.mxu0 %v238
    %v366 = vpop.f32.mrf.mxu0
    %v367 = vadd.f32 %v245, %v366
    %v368 = vpop.f32.mrf.mxu0
    %v369 = vadd.f32 %v249, %v368
    %v370 = vpop.f32.mrf.mxu0
    %v371 = vpop.f32.mrf.mxu0
    %372 = vdwg.mxu0
    %v373 = vmax.f32 %v367, 0.0
    %v374 = vmax.f32 %v369, 0.0
    %v375 = vld [vmem:[#allocation5] sm:$0xf]
    %v376 = vld [vmem:[#allocation5 + $0x4] sm:$0xf]
    %v377 = vld [vmem:[#allocation5 + $0x8] sm:$0xf]
    %v378 = vld [vmem:[#allocation5 + $0xc] sm:$0xf]
    %v379 = vld [vmem:[#allocation5 + $0x10] sm:$0xf]
    %v380 = vld [vmem:[#allocation5 + $0x14] sm:$0xf]
    %v381 = vld [vmem:[#allocation5 + $0x18] sm:$0xf]
    %v382 = vld [vmem:[#allocation5 + $0x1c] sm:$0xf]
    %v383 = vld [vmem:[#allocation5 + $0x20] sm:$0xf]
    %v384 = vld [vmem:[#allocation5 + $0x24] sm:$0xf]
    %v385 = vld [vmem:[#allocation5 + $0x28] sm:$0xf]
    %v386 = vld [vmem:[#allocation5 + $0x2c] sm:$0xf]
    %v387 = vld [vmem:[#allocation5 + $0x30] sm:$0xf]
    %v388 = vld [vmem:[#allocation5 + $0x34] sm:$0xf]
    %v389 = vld [vmem:[#allocation5 + $0x38] sm:$0xf]
    %v390 = vld [vmem:[#allocation5 + $0x3c] sm:$0xf]
    %v391 = vld [vmem:[#allocation5 + $0x40] sm:$0xf]
    %v392 = vld [vmem:[#allocation5 + $0x44] sm:$0xf]
    %v393 = vld [vmem:[#allocation5 + $0x48] sm:$0xf]
    %v394 = vld [vmem:[#allocation5 + $0x4c] sm:$0xf]
    %v395 = vld [vmem:[#allocation5 + $0x50] sm:$0xf]
    %v396 = vld [vmem:[#allocation5 + $0x54] sm:$0xf]
    %v397 = vld [vmem:[#allocation5 + $0x58] sm:$0xf]
    %v398 = vld [vmem:[#allocation5 + $0x5c] sm:$0xf]
    %v399 = vld [vmem:[#allocation5 + $0x60] sm:$0xf]
    %v400 = vld [vmem:[#allocation5 + $0x64] sm:$0xf]
    %v401 = vld [vmem:[#allocation5 + $0x68] sm:$0xf]
    %v402 = vld [vmem:[#allocation5 + $0x6c] sm:$0xf]
    %v403 = vld [vmem:[#allocation5 + $0x70] sm:$0xf]
    %v404 = vld [vmem:[#allocation5 + $0x74] sm:$0xf]
    %v405 = vld [vmem:[#allocation5 + $0x78] sm:$0xf]
    %v406 = vld [vmem:[#allocation5 + $0x7c] sm:$0xf]
    %v407 = vpack.c.bf16 %v373, %v373
    %v408 = vpack.c.bf16 %v374, %v374
    %v409 = vld [vmem:[#allocation7 + $0x28] ss:$0 sm:$0xff]
    %v442 = vunpack.c.l.b16 %v375
    %v443 = vunpack.c.l.b16 %v376
    %v444 = vunpack.c.l.b16 %v377
    %v445 = vunpack.c.l.b16 %v378
    %v446 = vunpack.c.l.b16 %v379
    %v447 = vunpack.c.l.b16 %v380
    %v448 = vunpack.c.l.b16 %v381
    %v449 = vunpack.c.l.b16 %v382
    %v450 = vunpack.c.l.b16 %v383
    %v451 = vunpack.c.l.b16 %v384
    %v452 = vunpack.c.l.b16 %v385
    %v453 = vunpack.c.l.b16 %v386
    %v454 = vunpack.c.l.b16 %v387
    %v455 = vunpack.c.l.b16 %v388
    %v456 = vunpack.c.l.b16 %v389
    %v457 = vunpack.c.l.b16 %v390
    %v458 = vunpack.c.l.b16 %v391
    %v459 = vunpack.c.l.b16 %v392
    %v460 = vunpack.c.l.b16 %v393
    %v461 = vunpack.c.l.b16 %v394
    %v462 = vunpack.c.l.b16 %v395
    %v463 = vunpack.c.l.b16 %v396
    %v464 = vunpack.c.l.b16 %v397
    %v465 = vunpack.c.l.b16 %v398
    %v466 = vunpack.c.l.b16 %v399
    %v467 = vunpack.c.l.b16 %v400
    %v468 = vunpack.c.l.b16 %v401
    %v469 = vunpack.c.l.b16 %v402
    %v470 = vunpack.c.l.b16 %v403
    %v471 = vunpack.c.l.b16 %v404
    %v472 = vunpack.c.l.b16 %v405
    %v473 = vunpack.c.l.b16 %v406
    %v474 = vpack.c.b16 %v443, %v442
    %v475 = vpack.c.b16 %v445, %v444
    %v476 = vpack.c.b16 %v447, %v446
    %v477 = vpack.c.b16 %v449, %v448
    %v478 = vpack.c.b16 %v451, %v450
    %v479 = vpack.c.b16 %v453, %v452
    %v480 = vpack.c.b16 %v455, %v454
    %v481 = vpack.c.b16 %v457, %v456
    %v482 = vpack.c.b16 %v459, %v458
    %v483 = vpack.c.b16 %v461, %v460
    %v484 = vpack.c.b16 %v463, %v462
    %v485 = vpack.c.b16 %v465, %v464
    %v486 = vpack.c.b16 %v467, %v466
    %v487 = vpack.c.b16 %v469, %v468
    %v488 = vpack.c.b16 %v471, %v470
    %v489 = vpack.c.b16 %v473, %v472
    %506 = vmatprep.subr.bf16.mxu0 0
    %507 = vmatpush1.bf16.msra.mxu0 %v481
    %508 = vmatprep.subr.bf16.mxu0 0
    %509 = vmatpush1.bf16.msra.mxu0 %v480
    %510 = vmatprep.subr.bf16.mxu0 0
    %511 = vmatpush1.bf16.msra.mxu0 %v479
    %512 = vmatprep.subr.bf16.mxu0 0
    %513 = vmatpush1.bf16.msra.mxu0 %v478
    %514 = vmatprep.subr.bf16.mxu0 0
    %515 = vmatpush1.bf16.msra.mxu0 %v477
    %516 = vmatprep.subr.bf16.mxu0 0
    %517 = vmatpush1.bf16.msra.mxu0 %v476
    %518 = vmatprep.subr.bf16.mxu0 0
    %519 = vmatpush1.bf16.msra.mxu0 %v475
    %520 = vmatprep.subr.bf16.mxu0 0
    %521 = vmatpush1.bf16.msra.mxu0 %v474
    %522 = vmatprep.subr.bf16.mxu0 0
    %523 = vmatpush2.bf16.msra.mxu0 %v489
    %524 = vmatprep.subr.bf16.mxu0 0
    %525 = vmatpush2.bf16.msra.mxu0 %v488
    %526 = vmatprep.subr.bf16.mxu0 0
    %527 = vmatpush2.bf16.msra.mxu0 %v487
    %528 = vmatprep.subr.bf16.mxu0 0
    %529 = vmatpush2.bf16.msra.mxu0 %v486
    %530 = vmatprep.subr.bf16.mxu0 0
    %531 = vmatpush2.bf16.msra.mxu0 %v485
    %532 = vmatprep.subr.bf16.mxu0 0
    %533 = vmatpush2.bf16.msra.mxu0 %v484
    %534 = vmatprep.subr.bf16.mxu0 0
    %535 = vmatpush2.bf16.msra.mxu0 %v483
    %536 = vmatprep.subr.bf16.mxu0 0
    %537 = vmatpush2.bf16.msra.mxu0 %v482
    %538 = vmatprep.mubr.bf16.mxu0 %v408
    %539 = vmatmul.mubr.bf16.gmra.mxu0 %v407
    %v540 = vpop.f32.mrf.mxu0
    %v541 = vadd.f32 %v409, %v540
    %v542 = vpop.f32.mrf.mxu0
    %v543 = vpop.f32.mrf.mxu0
    %v544 = vpop.f32.mrf.mxu0
    %545 = vdwg.mxu0
    %v546 = vadd.f32 %v221, %v541
    %v547 = vld [vmem:[#allocation7 + $0x18] ss:$0 sm:$0xff]
    %v548 = vld [vmem:[#allocation7 + $0x20] ss:$0 sm:$0xff]
    %v549 = vsel %vm204, %v546, 0.0
    %550 = vadd.xlane.f32.xlu0 %v549
    %v551 = vpop.xlane.xlu0 %550
    %v552 = vmul.f32 %v546, %v546
    %v553 = vsel %vm204, %v552, 0.0
    %554 = vadd.xlane.f32.xlu0 %v553
    %v555 = vpop.xlane.xlu0 %554
    %v556 = vmul.f32 %v551, 0.0078125
    %v557 = vmul.f32 %v555, 0.0078125
    %v558 = vmul.f32 %v556, %v556
    %v559 = vsub.f32 %v557, %v558
    %v560 = vsub.f32 %v546, %v556
    %v561 = vadd.f32 %v559, 1e-05
    %v562 = vrsqrt.pop %v561
    %v563 = vmul.f32 %v560, %v562
    %v564 = vmul.f32 %v563, %v547
    %v565 = vadd.f32 %v564, %v548
    %s566 = scalar_lea.vmem %s2, 64
    %v567 = vld [vmem:[%s566] sm:$0xf]
    %v568 = vld [vmem:[%s566 + $0x4] sm:$0xf]
    %v569 = vld [vmem:[%s566 + $0x8] sm:$0xf]
    %v570 = vld [vmem:[%s566 + $0xc] sm:$0xf]
    %v571 = vld [vmem:[%s566 + $0x10] sm:$0xf]
    %v572 = vld [vmem:[%s566 + $0x14] sm:$0xf]
    %v573 = vld [vmem:[%s566 + $0x18] sm:$0xf]
    %v574 = vld [vmem:[%s566 + $0x1c] sm:$0xf]
    %v575 = vld [vmem:[%s566 + $0x20] sm:$0xf]
    %v576 = vld [vmem:[%s566 + $0x24] sm:$0xf]
    %v577 = vld [vmem:[%s566 + $0x28] sm:$0xf]
    %v578 = vld [vmem:[%s566 + $0x2c] sm:$0xf]
    %v579 = vld [vmem:[%s566 + $0x30] sm:$0xf]
    %v580 = vld [vmem:[%s566 + $0x34] sm:$0xf]
    %v581 = vld [vmem:[%s566 + $0x38] sm:$0xf]
    %v582 = vld [vmem:[%s566 + $0x3c] sm:$0xf]
    %v583 = vpack.c.bf16 %v565, %v565
    %v584 = vld [vmem:[#allocation7 + $0x1] ss:$0 sm:$0xff]
    %v601 = vunpack.c.l.b16 %v567
    %v602 = vunpack.c.l.b16 %v568
    %v603 = vunpack.c.l.b16 %v569
    %v604 = vunpack.c.l.b16 %v570
    %v605 = vunpack.c.l.b16 %v571
    %v606 = vunpack.c.l.b16 %v572
    %v607 = vunpack.c.l.b16 %v573
    %v608 = vunpack.c.l.b16 %v574
    %v609 = vunpack.c.l.b16 %v575
    %v610 = vunpack.c.l.b16 %v576
    %v611 = vunpack.c.l.b16 %v577
    %v612 = vunpack.c.l.b16 %v578
    %v613 = vunpack.c.l.b16 %v579
    %v614 = vunpack.c.l.b16 %v580
    %v615 = vunpack.c.l.b16 %v581
    %v616 = vunpack.c.l.b16 %v582
    %v617 = vpack.c.b16 %v602, %v601
    %v618 = vpack.c.b16 %v604, %v603
    %v619 = vpack.c.b16 %v606, %v605
    %v620 = vpack.c.b16 %v608, %v607
    %v621 = vpack.c.b16 %v610, %v609
    %v622 = vpack.c.b16 %v612, %v611
    %v623 = vpack.c.b16 %v614, %v613
    %v624 = vpack.c.b16 %v616, %v615
    %633 = vmatprep.subr.bf16.mxu0 0
    %634 = vmatpush1.bf16.msra.mxu0 %v624
    %635 = vmatprep.subr.bf16.mxu0 0
    %636 = vmatpush1.bf16.msra.mxu0 %v623
    %637 = vmatprep.subr.bf16.mxu0 0
    %638 = vmatpush1.bf16.msra.mxu0 %v622
    %639 = vmatprep.subr.bf16.mxu0 0
    %640 = vmatpush1.bf16.msra.mxu0 %v621
    %641 = vmatprep.subr.bf16.mxu0 0
    %642 = vmatpush1.bf16.msra.mxu0 %v620
    %643 = vmatprep.subr.bf16.mxu0 0
    %644 = vmatpush1.bf16.msra.mxu0 %v619
    %645 = vmatprep.subr.bf16.mxu0 0
    %646 = vmatpush1.bf16.msra.mxu0 %v618
    %647 = vmatprep.subr.bf16.mxu0 0
    %648 = vmatpush1.bf16.msra.mxu0 %v617
    %649 = vmatprep.subr.bf16.mxu0 0
    %650 = vmatpush2.bf16.msra.mxu0 0
    %651 = vmatprep.subr.bf16.mxu0 0
    %652 = vmatpush2.bf16.msra.mxu0 0
    %653 = vmatprep.subr.bf16.mxu0 0
    %654 = vmatpush2.bf16.msra.mxu0 0
    %655 = vmatprep.subr.bf16.mxu0 0
    %656 = vmatpush2.bf16.msra.mxu0 0
    %657 = vmatprep.subr.bf16.mxu0 0
    %658 = vmatpush2.bf16.msra.mxu0 0
    %659 = vmatprep.subr.bf16.mxu0 0
    %660 = vmatpush2.bf16.msra.mxu0 0
    %661 = vmatprep.subr.bf16.mxu0 0
    %662 = vmatpush2.bf16.msra.mxu0 0
    %663 = vmatprep.subr.bf16.mxu0 0
    %664 = vmatpush2.bf16.msra.mxu0 0
    %665 = vmatprep.mubr.bf16.mxu0 0
    %666 = vmatmul.mubr.bf16.gmra.mxu0 %v583
    %v667 = vpop.f32.mrf.mxu0
    %v668 = vadd.f32 %v584, %v667
    %v669 = vpop.f32.mrf.mxu0
    %v670 = vpop.f32.mrf.mxu0
    %v671 = vpop.f32.mrf.mxu0
    %672 = vdwg.mxu0
    %v673 = vadd.f32 %v565, %v668
    %v674 = vld [vmem:[#allocation7 + $0x9] ss:$0 sm:$0xff]
    %v675 = vld [vmem:[#allocation7 + $0x11] ss:$0 sm:$0xff]
    %v676 = vsel %vm204, %v673, 0.0
    %677 = vadd.xlane.f32.xlu0 %v676
    %v678 = vpop.xlane.xlu0 %677
    %v679 = vmul.f32 %v673, %v673
    %v680 = vsel %vm204, %v679, 0.0
    %681 = vadd.xlane.f32.xlu0 %v680
    %v682 = vpop.xlane.xlu0 %681
    %v683 = vmul.f32 %v678, 0.0078125
    %v684 = vmul.f32 %v682, 0.0078125
    %v685 = vmul.f32 %v683, %v683
    %v686 = vsub.f32 %v684, %v685
    %v687 = vsub.f32 %v673, %v683
    %v688 = vadd.f32 %v686, 1e-05
    %v689 = vrsqrt.pop %v688
    %v690 = vmul.f32 %v687, %v689
    %v691 = vmul.f32 %v690, %v674
    %v692 = vadd.f32 %v691, %v675
    %s693 = scalar_lea.vmem [#allocation2], 128
    %v694 = vld [vmem:[%s693] sm:$0xff]
    %v695 = vld [vmem:[%s693 + $0x8] sm:$0xff]
    %v696 = vld [vmem:[%s693 + $0x10] sm:$0xff]
    %v697 = vld [vmem:[%s693 + $0x18] sm:$0xff]
    %v698 = vld [vmem:[%s693 + $0x20] sm:$0xff]
    %v699 = vld [vmem:[%s693 + $0x28] sm:$0xff]
    %v700 = vld [vmem:[%s693 + $0x30] sm:$0xff]
    %v701 = vld [vmem:[%s693 + $0x38] sm:$0xff]
    %v702 = vld [vmem:[%s693 + $0x40] sm:$0xff]
    %v703 = vld [vmem:[%s693 + $0x48] sm:$0xff]
    %v704 = vld [vmem:[%s693 + $0x50] sm:$0xff]
    %v705 = vld [vmem:[%s693 + $0x58] sm:$0xff]
    %v706 = vld [vmem:[%s693 + $0x60] sm:$0xff]
    %v707 = vld [vmem:[%s693 + $0x68] sm:$0xff]
    %v708 = vld [vmem:[%s693 + $0x70] sm:$0xff]
    %v709 = vld [vmem:[%s693 + $0x78] sm:$0xff]
    %v710 = vpack.c.bf16 %v692, %v692
    %s711 = scalar_lea.vmem [#allocation7], 49
    %v712 = vld [vmem:[%s711] ss:$8 sm:$0x3]
    %v714 = vlaneseq
    %v715 = vshrl.u32 %v714, 7
    %v716 = vsub.s32 0, %v715
    %v717 = vrot.slane %v712, %v716
    %v718 = vlaneseq
    %v719 = vshrl.u32 %v718, 7
    %v720 = vsub.s32 1, %v719
    %v721 = vrot.slane %v712, %v720
    %v740 = vunpack.c.l.b16 %v694
    %v741 = vunpack.c.h.b16 %v694
    %v742 = vunpack.c.l.b16 %v695
    %v743 = vunpack.c.h.b16 %v695
    %v744 = vunpack.c.l.b16 %v696
    %v745 = vunpack.c.h.b16 %v696
    %v746 = vunpack.c.l.b16 %v697
    %v747 = vunpack.c.h.b16 %v697
    %v748 = vunpack.c.l.b16 %v698
    %v749 = vunpack.c.h.b16 %v698
    %v750 = vunpack.c.l.b16 %v699
    %v751 = vunpack.c.h.b16 %v699
    %v752 = vunpack.c.l.b16 %v700
    %v753 = vunpack.c.h.b16 %v700
    %v754 = vunpack.c.l.b16 %v701
    %v755 = vunpack.c.h.b16 %v701
    %v756 = vunpack.c.l.b16 %v702
    %v757 = vunpack.c.h.b16 %v702
    %v758 = vunpack.c.l.b16 %v703
    %v759 = vunpack.c.h.b16 %v703
    %v760 = vunpack.c.l.b16 %v704
    %v761 = vunpack.c.h.b16 %v704
    %v762 = vunpack.c.l.b16 %v705
    %v763 = vunpack.c.h.b16 %v705
    %v764 = vunpack.c.l.b16 %v706
    %v765 = vunpack.c.h.b16 %v706
    %v766 = vunpack.c.l.b16 %v707
    %v767 = vunpack.c.h.b16 %v707
    %v768 = vunpack.c.l.b16 %v708
    %v769 = vunpack.c.h.b16 %v708
    %v770 = vunpack.c.l.b16 %v709
    %v771 = vunpack.c.h.b16 %v709
    %v772 = vpack.c.b16 %v742, %v740
    %v773 = vpack.c.b16 %v743, %v741
    %v774 = vpack.c.b16 %v746, %v744
    %v775 = vpack.c.b16 %v747, %v745
    %v776 = vpack.c.b16 %v750, %v748
    %v777 = vpack.c.b16 %v751, %v749
    %v778 = vpack.c.b16 %v754, %v752
    %v779 = vpack.c.b16 %v755, %v753
    %v780 = vpack.c.b16 %v758, %v756
    %v781 = vpack.c.b16 %v759, %v757
    %v782 = vpack.c.b16 %v762, %v760
    %v783 = vpack.c.b16 %v763, %v761
    %v784 = vpack.c.b16 %v766, %v764
    %v785 = vpack.c.b16 %v767, %v765
    %v786 = vpack.c.b16 %v770, %v768
    %v787 = vpack.c.b16 %v771, %v769
    %804 = vmatprep.subr.bf16.mxu0 %v787
    %805 = vmatpush1.bf16.msra.mxu0 %v786
    %806 = vmatprep.subr.bf16.mxu0 %v785
    %807 = vmatpush1.bf16.msra.mxu0 %v784
    %808 = vmatprep.subr.bf16.mxu0 %v783
    %809 = vmatpush1.bf16.msra.mxu0 %v782
    %810 = vmatprep.subr.bf16.mxu0 %v781
    %811 = vmatpush1.bf16.msra.mxu0 %v780
    %812 = vmatprep.subr.bf16.mxu0 %v779
    %813 = vmatpush1.bf16.msra.mxu0 %v778
    %814 = vmatprep.subr.bf16.mxu0 %v777
    %815 = vmatpush1.bf16.msra.mxu0 %v776
    %816 = vmatprep.subr.bf16.mxu0 %v775
    %817 = vmatpush1.bf16.msra.mxu0 %v774
    %818 = vmatprep.subr.bf16.mxu0 %v773
    %819 = vmatpush1.bf16.msra.mxu0 %v772
    %820 = vmatprep.subr.bf16.mxu0 0
    %821 = vmatpush2.bf16.msra.mxu0 0
    %822 = vmatprep.subr.bf16.mxu0 0
    %823 = vmatpush2.bf16.msra.mxu0 0
    %824 = vmatprep.subr.bf16.mxu0 0
    %825 = vmatpush2.bf16.msra.mxu0 0
    %826 = vmatprep.subr.bf16.mxu0 0
    %827 = vmatpush2.bf16.msra.mxu0 0
    %828 = vmatprep.subr.bf16.mxu0 0
    %829 = vmatpush2.bf16.msra.mxu0 0
    %830 = vmatprep.subr.bf16.mxu0 0
    %831 = vmatpush2.bf16.msra.mxu0 0
    %832 = vmatprep.subr.bf16.mxu0 0
    %833 = vmatpush2.bf16.msra.mxu0 0
    %834 = vmatprep.subr.bf16.mxu0 0
    %835 = vmatpush2.bf16.msra.mxu0 0
    %836 = vmatprep.mubr.bf16.mxu0 0
    %837 = vmatmul.mubr.bf16.gmra.mxu0 %v710
    %v838 = vpop.f32.mrf.mxu0
    %v839 = vadd.f32 %v717, %v838
    %v840 = vpop.f32.mrf.mxu0
    %v841 = vadd.f32 %v721, %v840
    %v842 = vpop.f32.mrf.mxu0
    %v843 = vpop.f32.mrf.mxu0
    %844 = vdwg.mxu0
    %v845 = vmax.f32 %v839, 0.0
    %v846 = vmax.f32 %v841, 0.0
    %s847 = scalar_lea.vmem [#allocation5], 128
    %v848 = vld [vmem:[%s847] sm:$0xf]
    %v849 = vld [vmem:[%s847 + $0x4] sm:$0xf]
    %v850 = vld [vmem:[%s847 + $0x8] sm:$0xf]
    %v851 = vld [vmem:[%s847 + $0xc] sm:$0xf]
    %v852 = vld [vmem:[%s847 + $0x10] sm:$0xf]
    %v853 = vld [vmem:[%s847 + $0x14] sm:$0xf]
    %v854 = vld [vmem:[%s847 + $0x18] sm:$0xf]
    %v855 = vld [vmem:[%s847 + $0x1c] sm:$0xf]
    %v856 = vld [vmem:[%s847 + $0x20] sm:$0xf]
    %v857 = vld [vmem:[%s847 + $0x24] sm:$0xf]
    %v858 = vld [vmem:[%s847 + $0x28] sm:$0xf]
    %v859 = vld [vmem:[%s847 + $0x2c] sm:$0xf]
    %v860 = vld [vmem:[%s847 + $0x30] sm:$0xf]
    %v861 = vld [vmem:[%s847 + $0x34] sm:$0xf]
    %v862 = vld [vmem:[%s847 + $0x38] sm:$0xf]
    %v863 = vld [vmem:[%s847 + $0x3c] sm:$0xf]
    %v864 = vld [vmem:[%s847 + $0x40] sm:$0xf]
    %v865 = vld [vmem:[%s847 + $0x44] sm:$0xf]
    %v866 = vld [vmem:[%s847 + $0x48] sm:$0xf]
    %v867 = vld [vmem:[%s847 + $0x4c] sm:$0xf]
    %v868 = vld [vmem:[%s847 + $0x50] sm:$0xf]
    %v869 = vld [vmem:[%s847 + $0x54] sm:$0xf]
    %v870 = vld [vmem:[%s847 + $0x58] sm:$0xf]
    %v871 = vld [vmem:[%s847 + $0x5c] sm:$0xf]
    %v872 = vld [vmem:[%s847 + $0x60] sm:$0xf]
    %v873 = vld [vmem:[%s847 + $0x64] sm:$0xf]
    %v874 = vld [vmem:[%s847 + $0x68] sm:$0xf]
    %v875 = vld [vmem:[%s847 + $0x6c] sm:$0xf]
    %v876 = vld [vmem:[%s847 + $0x70] sm:$0xf]
    %v877 = vld [vmem:[%s847 + $0x74] sm:$0xf]
    %v878 = vld [vmem:[%s847 + $0x78] sm:$0xf]
    %v879 = vld [vmem:[%s847 + $0x7c] sm:$0xf]
    %v880 = vpack.c.bf16 %v845, %v845
    %v881 = vpack.c.bf16 %v846, %v846
    %v882 = vld [vmem:[#allocation7 + $0x29] ss:$0 sm:$0xff]
    %v915 = vunpack.c.l.b16 %v848
    %v916 = vunpack.c.l.b16 %v849
    %v917 = vunpack.c.l.b16 %v850
    %v918 = vunpack.c.l.b16 %v851
    %v919 = vunpack.c.l.b16 %v852
    %v920 = vunpack.c.l.b16 %v853
    %v921 = vunpack.c.l.b16 %v854
    %v922 = vunpack.c.l.b16 %v855
    %v923 = vunpack.c.l.b16 %v856
    %v924 = vunpack.c.l.b16 %v857
    %v925 = vunpack.c.l.b16 %v858
    %v926 = vunpack.c.l.b16 %v859
    %v927 = vunpack.c.l.b16 %v860
    %v928 = vunpack.c.l.b16 %v861
    %v929 = vunpack.c.l.b16 %v862
    %v930 = vunpack.c.l.b16 %v863
    %v931 = vunpack.c.l.b16 %v864
    %v932 = vunpack.c.l.b16 %v865
    %v933 = vunpack.c.l.b16 %v866
    %v934 = vunpack.c.l.b16 %v867
    %v935 = vunpack.c.l.b16 %v868
    %v936 = vunpack.c.l.b16 %v869
    %v937 = vunpack.c.l.b16 %v870
    %v938 = vunpack.c.l.b16 %v871
    %v939 = vunpack.c.l.b16 %v872
    %v940 = vunpack.c.l.b16 %v873
    %v941 = vunpack.c.l.b16 %v874
    %v942 = vunpack.c.l.b16 %v875
    %v943 = vunpack.c.l.b16 %v876
    %v944 = vunpack.c.l.b16 %v877
    %v945 = vunpack.c.l.b16 %v878
    %v946 = vunpack.c.l.b16 %v879
    %v947 = vpack.c.b16 %v916, %v915
    %v948 = vpack.c.b16 %v918, %v917
    %v949 = vpack.c.b16 %v920, %v919
    %v950 = vpack.c.b16 %v922, %v921
    %v951 = vpack.c.b16 %v924, %v923
    %v952 = vpack.c.b16 %v926, %v925
    %v953 = vpack.c.b16 %v928, %v927
    %v954 = vpack.c.b16 %v930, %v929
    %v955 = vpack.c.b16 %v932, %v931
    %v956 = vpack.c.b16 %v934, %v933
    %v957 = vpack.c.b16 %v936, %v935
    %v958 = vpack.c.b16 %v938, %v937
    %v959 = vpack.c.b16 %v940, %v939
    %v960 = vpack.c.b16 %v942, %v941
    %v961 = vpack.c.b16 %v944, %v943
    %v962 = vpack.c.b16 %v946, %v945
    %979 = vmatprep.subr.bf16.mxu0 0
    %980 = vmatpush1.bf16.msra.mxu0 %v954
    %981 = vmatprep.subr.bf16.mxu0 0
    %982 = vmatpush1.bf16.msra.mxu0 %v953
    %983 = vmatprep.subr.bf16.mxu0 0
    %984 = vmatpush1.bf16.msra.mxu0 %v952
    %985 = vmatprep.subr.bf16.mxu0 0
    %986 = vmatpush1.bf16.msra.mxu0 %v951
    %987 = vmatprep.subr.bf16.mxu0 0
    %988 = vmatpush1.bf16.msra.mxu0 %v950
    %989 = vmatprep.subr.bf16.mxu0 0
    %990 = vmatpush1.bf16.msra.mxu0 %v949
    %991 = vmatprep.subr.bf16.mxu0 0
    %992 = vmatpush1.bf16.msra.mxu0 %v948
    %993 = vmatprep.subr.bf16.mxu0 0
    %994 = vmatpush1.bf16.msra.mxu0 %v947
    %995 = vmatprep.subr.bf16.mxu0 0
    %996 = vmatpush2.bf16.msra.mxu0 %v962
    %997 = vmatprep.subr.bf16.mxu0 0
    %998 = vmatpush2.bf16.msra.mxu0 %v961
    %999 = vmatprep.subr.bf16.mxu0 0
    %1000 = vmatpush2.bf16.msra.mxu0 %v960
    %1001 = vmatprep.subr.bf16.mxu0 0
    %1002 = vmatpush2.bf16.msra.mxu0 %v959
    %1003 = vmatprep.subr.bf16.mxu0 0
    %1004 = vmatpush2.bf16.msra.mxu0 %v958
    %1005 = vmatprep.subr.bf16.mxu0 0
    %1006 = vmatpush2.bf16.msra.mxu0 %v957
    %1007 = vmatprep.subr.bf16.mxu0 0
    %1008 = vmatpush2.bf16.msra.mxu0 %v956
    %1009 = vmatprep.subr.bf16.mxu0 0
    %1010 = vmatpush2.bf16.msra.mxu0 %v955
    %1011 = vmatprep.mubr.bf16.mxu0 %v881
    %1012 = vmatmul.mubr.bf16.gmra.mxu0 %v880
    %v1013 = vpop.f32.mrf.mxu0
    %v1014 = vadd.f32 %v882, %v1013
    %v1015 = vpop.f32.mrf.mxu0
    %v1016 = vpop.f32.mrf.mxu0
    %v1017 = vpop.f32.mrf.mxu0
    %1018 = vdwg.mxu0
    %v1019 = vadd.f32 %v692, %v1014
    %v1020 = vld [vmem:[#allocation7 + $0x19] ss:$0 sm:$0xff]
    %v1021 = vld [vmem:[#allocation7 + $0x21] ss:$0 sm:$0xff]
    %v1022 = vsel %vm204, %v1019, 0.0
    %1023 = vadd.xlane.f32.xlu0 %v1022
    %v1024 = vpop.xlane.xlu0 %1023
    %v1025 = vmul.f32 %v1019, %v1019
    %v1026 = vsel %vm204, %v1025, 0.0
    %1027 = vadd.xlane.f32.xlu0 %v1026
    %v1028 = vpop.xlane.xlu0 %1027
    %v1029 = vmul.f32 %v1024, 0.0078125
    %v1030 = vmul.f32 %v1028, 0.0078125
    %v1031 = vmul.f32 %v1029, %v1029
    %v1032 = vsub.f32 %v1030, %v1031
    %v1033 = vsub.f32 %v1019, %v1029
    %v1034 = vadd.f32 %v1032, 1e-05
    %v1035 = vrsqrt.pop %v1034
    %v1036 = vmul.f32 %v1033, %v1035
    %v1037 = vmul.f32 %v1036, %v1020
    %v1038 = vadd.f32 %v1037, %v1021
    %s1039 = scalar_lea.vmem %s2, 128
    %v1040 = vld [vmem:[%s1039] sm:$0xf]
    %v1041 = vld [vmem:[%s1039 + $0x4] sm:$0xf]
    %v1042 = vld [vmem:[%s1039 + $0x8] sm:$0xf]
    %v1043 = vld [vmem:[%s1039 + $0xc] sm:$0xf]
    %v1044 = vld [vmem:[%s1039 + $0x10] sm:$0xf]
    %v1045 = vld [vmem:[%s1039 + $0x14] sm:$0xf]
    %v1046 = vld [vmem:[%s1039 + $0x18] sm:$0xf]
    %v1047 = vld [vmem:[%s1039 + $0x1c] sm:$0xf]
    %v1048 = vld [vmem:[%s1039 + $0x20] sm:$0xf]
    %v1049 = vld [vmem:[%s1039 + $0x24] sm:$0xf]
    %v1050 = vld [vmem:[%s1039 + $0x28] sm:$0xf]
    %v1051 = vld [vmem:[%s1039 + $0x2c] sm:$0xf]
    %v1052 = vld [vmem:[%s1039 + $0x30] sm:$0xf]
    %v1053 = vld [vmem:[%s1039 + $0x34] sm:$0xf]
    %v1054 = vld [vmem:[%s1039 + $0x38] sm:$0xf]
    %v1055 = vld [vmem:[%s1039 + $0x3c] sm:$0xf]
    %v1056 = vpack.c.bf16 %v1038, %v1038
    %v1057 = vld [vmem:[#allocation7 + $0x2] ss:$0 sm:$0xff]
    %v1074 = vunpack.c.l.b16 %v1040
    %v1075 = vunpack.c.l.b16 %v1041
    %v1076 = vunpack.c.l.b16 %v1042
    %v1077 = vunpack.c.l.b16 %v1043
    %v1078 = vunpack.c.l.b16 %v1044
    %v1079 = vunpack.c.l.b16 %v1045
    %v1080 = vunpack.c.l.b16 %v1046
    %v1081 = vunpack.c.l.b16 %v1047
    %v1082 = vunpack.c.l.b16 %v1048
    %v1083 = vunpack.c.l.b16 %v1049
    %v1084 = vunpack.c.l.b16 %v1050
    %v1085 = vunpack.c.l.b16 %v1051
    %v1086 = vunpack.c.l.b16 %v1052
    %v1087 = vunpack.c.l.b16 %v1053
    %v1088 = vunpack.c.l.b16 %v1054
    %v1089 = vunpack.c.l.b16 %v1055
    %v1090 = vpack.c.b16 %v1075, %v1074
    %v1091 = vpack.c.b16 %v1077, %v1076
    %v1092 = vpack.c.b16 %v1079, %v1078
    %v1093 = vpack.c.b16 %v1081, %v1080
    %v1094 = vpack.c.b16 %v1083, %v1082
    %v1095 = vpack.c.b16 %v1085, %v1084
    %v1096 = vpack.c.b16 %v1087, %v1086
    %v1097 = vpack.c.b16 %v1089, %v1088
    %1106 = vmatprep.subr.bf16.mxu0 0
    %1107 = vmatpush1.bf16.msra.mxu0 %v1097
    %1108 = vmatprep.subr.bf16.mxu0 0
    %1109 = vmatpush1.bf16.msra.mxu0 %v1096
    %1110 = vmatprep.subr.bf16.mxu0 0
    %1111 = vmatpush1.bf16.msra.mxu0 %v1095
    %1112 = vmatprep.subr.bf16.mxu0 0
    %1113 = vmatpush1.bf16.msra.mxu0 %v1094
    %1114 = vmatprep.subr.bf16.mxu0 0
    %1115 = vmatpush1.bf16.msra.mxu0 %v1093
    %1116 = vmatprep.subr.bf16.mxu0 0
    %1117 = vmatpush1.bf16.msra.mxu0 %v1092
    %1118 = vmatprep.subr.bf16.mxu0 0
    %1119 = vmatpush1.bf16.msra.mxu0 %v1091
    %1120 = vmatprep.subr.bf16.mxu0 0
    %1121 = vmatpush1.bf16.msra.mxu0 %v1090
    %1122 = vmatprep.subr.bf16.mxu0 0
    %1123 = vmatpush2.bf16.msra.mxu0 0
    %1124 = vmatprep.subr.bf16.mxu0 0
    %1125 = vmatpush2.bf16.msra.mxu0 0
    %1126 = vmatprep.subr.bf16.mxu0 0
    %1127 = vmatpush2.bf16.msra.mxu0 0
    %1128 = vmatprep.subr.bf16.mxu0 0
    %1129 = vmatpush2.bf16.msra.mxu0 0
    %1130 = vmatprep.subr.bf16.mxu0 0
    %1131 = vmatpush2.bf16.msra.mxu0 0
    %1132 = vmatprep.subr.bf16.mxu0 0
    %1133 = vmatpush2.bf16.msra.mxu0 0
    %1134 = vmatprep.subr.bf16.mxu0 0
    %1135 = vmatpush2.bf16.msra.mxu0 0
    %1136 = vmatprep.subr.bf16.mxu0 0
    %1137 = vmatpush2.bf16.msra.mxu0 0
    %1138 = vmatprep.mubr.bf16.mxu0 0
    %1139 = vmatmul.mubr.bf16.gmra.mxu0 %v1056
    %v1140 = vpop.f32.mrf.mxu0
    %v1141 = vadd.f32 %v1057, %v1140
    %v1142 = vpop.f32.mrf.mxu0
    %v1143 = vpop.f32.mrf.mxu0
    %v1144 = vpop.f32.mrf.mxu0
    %1145 = vdwg.mxu0
    %v1146 = vadd.f32 %v1038, %v1141
    %v1147 = vld [vmem:[#allocation7 + $0xa] ss:$0 sm:$0xff]
    %v1148 = vld [vmem:[#allocation7 + $0x12] ss:$0 sm:$0xff]
    %v1149 = vsel %vm204, %v1146, 0.0
    %1150 = vadd.xlane.f32.xlu0 %v1149
    %v1151 = vpop.xlane.xlu0 %1150
    %v1152 = vmul.f32 %v1146, %v1146
    %v1153 = vsel %vm204, %v1152, 0.0
    %1154 = vadd.xlane.f32.xlu0 %v1153
    %v1155 = vpop.xlane.xlu0 %1154
    %v1156 = vmul.f32 %v1151, 0.0078125
    %v1157 = vmul.f32 %v1155, 0.0078125
    %v1158 = vmul.f32 %v1156, %v1156
    %v1159 = vsub.f32 %v1157, %v1158
    %v1160 = vsub.f32 %v1146, %v1156
    %v1161 = vadd.f32 %v1159, 1e-05
    %v1162 = vrsqrt.pop %v1161
    %v1163 = vmul.f32 %v1160, %v1162
    %v1164 = vmul.f32 %v1163, %v1147
    %v1165 = vadd.f32 %v1164, %v1148
    %s1166 = scalar_lea.vmem [#allocation2], 256
    %v1167 = vld [vmem:[%s1166] sm:$0xff]
    %v1168 = vld [vmem:[%s1166 + $0x8] sm:$0xff]
    %v1169 = vld [vmem:[%s1166 + $0x10] sm:$0xff]
    %v1170 = vld [vmem:[%s1166 + $0x18] sm:$0xff]
    %v1171 = vld [vmem:[%s1166 + $0x20] sm:$0xff]
    %v1172 = vld [vmem:[%s1166 + $0x28] sm:$0xff]
    %v1173 = vld [vmem:[%s1166 + $0x30] sm:$0xff]
    %v1174 = vld [vmem:[%s1166 + $0x38] sm:$0xff]
    %v1175 = vld [vmem:[%s1166 + $0x40] sm:$0xff]
    %v1176 = vld [vmem:[%s1166 + $0x48] sm:$0xff]
    %v1177 = vld [vmem:[%s1166 + $0x50] sm:$0xff]
    %v1178 = vld [vmem:[%s1166 + $0x58] sm:$0xff]
    %v1179 = vld [vmem:[%s1166 + $0x60] sm:$0xff]
    %v1180 = vld [vmem:[%s1166 + $0x68] sm:$0xff]
    %v1181 = vld [vmem:[%s1166 + $0x70] sm:$0xff]
    %v1182 = vld [vmem:[%s1166 + $0x78] sm:$0xff]
    %v1183 = vpack.c.bf16 %v1165, %v1165
    %s1184 = scalar_lea.vmem [#allocation7], 50
    %v1185 = vld [vmem:[%s1184] ss:$8 sm:$0x3]
    %v1187 = vlaneseq
    %v1188 = vshrl.u32 %v1187, 7
    %v1189 = vsub.s32 0, %v1188
    %v1190 = vrot.slane %v1185, %v1189
    %v1191 = vlaneseq
    %v1192 = vshrl.u32 %v1191, 7
    %v1193 = vsub.s32 1, %v1192
    %v1194 = vrot.slane %v1185, %v1193
    %v1213 = vunpack.c.l.b16 %v1167
    %v1214 = vunpack.c.h.b16 %v1167
    %v1215 = vunpack.c.l.b16 %v1168
    %v1216 = vunpack.c.h.b16 %v1168
    %v1217 = vunpack.c.l.b16 %v1169
    %v1218 = vunpack.c.h.b16 %v1169
    %v1219 = vunpack.c.l.b16 %v1170
    %v1220 = vunpack.c.h.b16 %v1170
    %v1221 = vunpack.c.l.b16 %v1171
    %v1222 = vunpack.c.h.b16 %v1171
    %v1223 = vunpack.c.l.b16 %v1172
    %v1224 = vunpack.c.h.b16 %v1172
    %v1225 = vunpack.c.l.b16 %v1173
    %v1226 = vunpack.c.h.b16 %v1173
    %v1227 = vunpack.c.l.b16 %v1174
    %v1228 = vunpack.c.h.b16 %v1174
    %v1229 = vunpack.c.l.b16 %v1175
    %v1230 = vunpack.c.h.b16 %v1175
    %v1231 = vunpack.c.l.b16 %v1176
    %v1232 = vunpack.c.h.b16 %v1176
    %v1233 = vunpack.c.l.b16 %v1177
    %v1234 = vunpack.c.h.b16 %v1177
    %v1235 = vunpack.c.l.b16 %v1178
    %v1236 = vunpack.c.h.b16 %v1178
    %v1237 = vunpack.c.l.b16 %v1179
    %v1238 = vunpack.c.h.b16 %v1179
    %v1239 = vunpack.c.l.b16 %v1180
    %v1240 = vunpack.c.h.b16 %v1180
    %v1241 = vunpack.c.l.b16 %v1181
    %v1242 = vunpack.c.h.b16 %v1181
    %v1243 = vunpack.c.l.b16 %v1182
    %v1244 = vunpack.c.h.b16 %v1182
    %v1245 = vpack.c.b16 %v1215, %v1213
    %v1246 = vpack.c.b16 %v1216, %v1214
    %v1247 = vpack.c.b16 %v1219, %v1217
    %v1248 = vpack.c.b16 %v1220, %v1218
    %v1249 = vpack.c.b16 %v1223, %v1221
    %v1250 = vpack.c.b16 %v1224, %v1222
    %v1251 = vpack.c.b16 %v1227, %v1225
    %v1252 = vpack.c.b16 %v1228, %v1226
    %v1253 = vpack.c.b16 %v1231, %v1229
    %v1254 = vpack.c.b16 %v1232, %v1230
    %v1255 = vpack.c.b16 %v1235, %v1233
    %v1256 = vpack.c.b16 %v1236, %v1234
    %v1257 = vpack.c.b16 %v1239, %v1237
    %v1258 = vpack.c.b16 %v1240, %v1238
    %v1259 = vpack.c.b16 %v1243, %v1241
    %v1260 = vpack.c.b16 %v1244, %v1242
    %1277 = vmatprep.subr.bf16.mxu0 %v1260
    %1278 = vmatpush1.bf16.msra.mxu0 %v1259
    %1279 = vmatprep.subr.bf16.mxu0 %v1258
    %1280 = vmatpush1.bf16.msra.mxu0 %v1257
    %1281 = vmatprep.subr.bf16.mxu0 %v1256
    %1282 = vmatpush1.bf16.msra.mxu0 %v1255
    %1283 = vmatprep.subr.bf16.mxu0 %v1254
    %1284 = vmatpush1.bf16.msra.mxu0 %v1253
    %1285 = vmatprep.subr.bf16.mxu0 %v1252
    %1286 = vmatpush1.bf16.msra.mxu0 %v1251
    %1287 = vmatprep.subr.bf16.mxu0 %v1250
    %1288 = vmatpush1.bf16.msra.mxu0 %v1249
    %1289 = vmatprep.subr.bf16.mxu0 %v1248
    %1290 = vmatpush1.bf16.msra.mxu0 %v1247
    %1291 = vmatprep.subr.bf16.mxu0 %v1246
    %1292 = vmatpush1.bf16.msra.mxu0 %v1245
    %1293 = vmatprep.subr.bf16.mxu0 0
    %1294 = vmatpush2.bf16.msra.mxu0 0
    %1295 = vmatprep.subr.bf16.mxu0 0
    %1296 = vmatpush2.bf16.msra.mxu0 0
    %1297 = vmatprep.subr.bf16.mxu0 0
    %1298 = vmatpush2.bf16.msra.mxu0 0
    %1299 = vmatprep.subr.bf16.mxu0 0
    %1300 = vmatpush2.bf16.msra.mxu0 0
    %1301 = vmatprep.subr.bf16.mxu0 0
    %1302 = vmatpush2.bf16.msra.mxu0 0
    %1303 = vmatprep.subr.bf16.mxu0 0
    %1304 = vmatpush2.bf16.msra.mxu0 0
    %1305 = vmatprep.subr.bf16.mxu0 0
    %1306 = vmatpush2.bf16.msra.mxu0 0
    %1307 = vmatprep.subr.bf16.mxu0 0
    %1308 = vmatpush2.bf16.msra.mxu0 0
    %1309 = vmatprep.mubr.bf16.mxu0 0
    %1310 = vmatmul.mubr.bf16.gmra.mxu0 %v1183
    %v1311 = vpop.f32.mrf.mxu0
    %v1312 = vadd.f32 %v1190, %v1311
    %v1313 = vpop.f32.mrf.mxu0
    %v1314 = vadd.f32 %v1194, %v1313
    %v1315 = vpop.f32.mrf.mxu0
    %v1316 = vpop.f32.mrf.mxu0
    %1317 = vdwg.mxu0
    %v1318 = vmax.f32 %v1312, 0.0
    %v1319 = vmax.f32 %v1314, 0.0
    %s1320 = scalar_lea.vmem [#allocation5], 256
    %v1321 = vld [vmem:[%s1320] sm:$0xf]
    %v1322 = vld [vmem:[%s1320 + $0x4] sm:$0xf]
    %v1323 = vld [vmem:[%s1320 + $0x8] sm:$0xf]
    %v1324 = vld [vmem:[%s1320 + $0xc] sm:$0xf]
    %v1325 = vld [vmem:[%s1320 + $0x10] sm:$0xf]
    %v1326 = vld [vmem:[%s1320 + $0x14] sm:$0xf]
    %v1327 = vld [vmem:[%s1320 + $0x18] sm:$0xf]
    %v1328 = vld [vmem:[%s1320 + $0x1c] sm:$0xf]
    %v1329 = vld [vmem:[%s1320 + $0x20] sm:$0xf]
    %v1330 = vld [vmem:[%s1320 + $0x24] sm:$0xf]
    %v1331 = vld [vmem:[%s1320 + $0x28] sm:$0xf]
    %v1332 = vld [vmem:[%s1320 + $0x2c] sm:$0xf]
    %v1333 = vld [vmem:[%s1320 + $0x30] sm:$0xf]
    %v1334 = vld [vmem:[%s1320 + $0x34] sm:$0xf]
    %v1335 = vld [vmem:[%s1320 + $0x38] sm:$0xf]
    %v1336 = vld [vmem:[%s1320 + $0x3c] sm:$0xf]
    %v1337 = vld [vmem:[%s1320 + $0x40] sm:$0xf]
    %v1338 = vld [vmem:[%s1320 + $0x44] sm:$0xf]
    %v1339 = vld [vmem:[%s1320 + $0x48] sm:$0xf]
    %v1340 = vld [vmem:[%s1320 + $0x4c] sm:$0xf]
    %v1341 = vld [vmem:[%s1320 + $0x50] sm:$0xf]
    %v1342 = vld [vmem:[%s1320 + $0x54] sm:$0xf]
    %v1343 = vld [vmem:[%s1320 + $0x58] sm:$0xf]
    %v1344 = vld [vmem:[%s1320 + $0x5c] sm:$0xf]
    %v1345 = vld [vmem:[%s1320 + $0x60] sm:$0xf]
    %v1346 = vld [vmem:[%s1320 + $0x64] sm:$0xf]
    %v1347 = vld [vmem:[%s1320 + $0x68] sm:$0xf]
    %v1348 = vld [vmem:[%s1320 + $0x6c] sm:$0xf]
    %v1349 = vld [vmem:[%s1320 + $0x70] sm:$0xf]
    %v1350 = vld [vmem:[%s1320 + $0x74] sm:$0xf]
    %v1351 = vld [vmem:[%s1320 + $0x78] sm:$0xf]
    %v1352 = vld [vmem:[%s1320 + $0x7c] sm:$0xf]
    %v1353 = vpack.c.bf16 %v1318, %v1318
    %v1354 = vpack.c.bf16 %v1319, %v1319
    %v1355 = vld [vmem:[#allocation7 + $0x2a] ss:$0 sm:$0xff]
    %v1388 = vunpack.c.l.b16 %v1321
    %v1389 = vunpack.c.l.b16 %v1322
    %v1390 = vunpack.c.l.b16 %v1323
    %v1391 = vunpack.c.l.b16 %v1324
    %v1392 = vunpack.c.l.b16 %v1325
    %v1393 = vunpack.c.l.b16 %v1326
    %v1394 = vunpack.c.l.b16 %v1327
    %v1395 = vunpack.c.l.b16 %v1328
    %v1396 = vunpack.c.l.b16 %v1329
    %v1397 = vunpack.c.l.b16 %v1330
    %v1398 = vunpack.c.l.b16 %v1331
    %v1399 = vunpack.c.l.b16 %v1332
    %v1400 = vunpack.c.l.b16 %v1333
    %v1401 = vunpack.c.l.b16 %v1334
    %v1402 = vunpack.c.l.b16 %v1335
    %v1403 = vunpack.c.l.b16 %v1336
    %v1404 = vunpack.c.l.b16 %v1337
    %v1405 = vunpack.c.l.b16 %v1338
    %v1406 = vunpack.c.l.b16 %v1339
    %v1407 = vunpack.c.l.b16 %v1340
    %v1408 = vunpack.c.l.b16 %v1341
    %v1409 = vunpack.c.l.b16 %v1342
    %v1410 = vunpack.c.l.b16 %v1343
    %v1411 = vunpack.c.l.b16 %v1344
    %v1412 = vunpack.c.l.b16 %v1345
    %v1413 = vunpack.c.l.b16 %v1346
    %v1414 = vunpack.c.l.b16 %v1347
    %v1415 = vunpack.c.l.b16 %v1348
    %v1416 = vunpack.c.l.b16 %v1349
    %v1417 = vunpack.c.l.b16 %v1350
    %v1418 = vunpack.c.l.b16 %v1351
    %v1419 = vunpack.c.l.b16 %v1352
    %v1420 = vpack.c.b16 %v1389, %v1388
    %v1421 = vpack.c.b16 %v1391, %v1390
    %v1422 = vpack.c.b16 %v1393, %v1392
    %v1423 = vpack.c.b16 %v1395, %v1394
    %v1424 = vpack.c.b16 %v1397, %v1396
    %v1425 = vpack.c.b16 %v1399, %v1398
    %v1426 = vpack.c.b16 %v1401, %v1400
    %v1427 = vpack.c.b16 %v1403, %v1402
    %v1428 = vpack.c.b16 %v1405, %v1404
    %v1429 = vpack.c.b16 %v1407, %v1406
    %v1430 = vpack.c.b16 %v1409, %v1408
    %v1431 = vpack.c.b16 %v1411, %v1410
    %v1432 = vpack.c.b16 %v1413, %v1412
    %v1433 = vpack.c.b16 %v1415, %v1414
    %v1434 = vpack.c.b16 %v1417, %v1416
    %v1435 = vpack.c.b16 %v1419, %v1418
    %1452 = vmatprep.subr.bf16.mxu0 0
    %1453 = vmatpush1.bf16.msra.mxu0 %v1427
    %1454 = vmatprep.subr.bf16.mxu0 0
    %1455 = vmatpush1.bf16.msra.mxu0 %v1426
    %1456 = vmatprep.subr.bf16.mxu0 0
    %1457 = vmatpush1.bf16.msra.mxu0 %v1425
    %1458 = vmatprep.subr.bf16.mxu0 0
    %1459 = vmatpush1.bf16.msra.mxu0 %v1424
    %1460 = vmatprep.subr.bf16.mxu0 0
    %1461 = vmatpush1.bf16.msra.mxu0 %v1423
    %1462 = vmatprep.subr.bf16.mxu0 0
    %1463 = vmatpush1.bf16.msra.mxu0 %v1422
    %1464 = vmatprep.subr.bf16.mxu0 0
    %1465 = vmatpush1.bf16.msra.mxu0 %v1421
    %1466 = vmatprep.subr.bf16.mxu0 0
    %1467 = vmatpush1.bf16.msra.mxu0 %v1420
    %1468 = vmatprep.subr.bf16.mxu0 0
    %1469 = vmatpush2.bf16.msra.mxu0 %v1435
    %1470 = vmatprep.subr.bf16.mxu0 0
    %1471 = vmatpush2.bf16.msra.mxu0 %v1434
    %1472 = vmatprep.subr.bf16.mxu0 0
    %1473 = vmatpush2.bf16.msra.mxu0 %v1433
    %1474 = vmatprep.subr.bf16.mxu0 0
    %1475 = vmatpush2.bf16.msra.mxu0 %v1432
    %1476 = vmatprep.subr.bf16.mxu0 0
    %1477 = vmatpush2.bf16.msra.mxu0 %v1431
    %1478 = vmatprep.subr.bf16.mxu0 0
    %1479 = vmatpush2.bf16.msra.mxu0 %v1430
    %1480 = vmatprep.subr.bf16.mxu0 0
    %1481 = vmatpush2.bf16.msra.mxu0 %v1429
    %1482 = vmatprep.subr.bf16.mxu0 0
    %1483 = vmatpush2.bf16.msra.mxu0 %v1428
    %1484 = vmatprep.mubr.bf16.mxu0 %v1354
    %1485 = vmatmul.mubr.bf16.gmra.mxu0 %v1353
    %v1486 = vpop.f32.mrf.mxu0
    %v1487 = vadd.f32 %v1355, %v1486
    %v1488 = vpop.f32.mrf.mxu0
    %v1489 = vpop.f32.mrf.mxu0
    %v1490 = vpop.f32.mrf.mxu0
    %1491 = vdwg.mxu0
    %v1492 = vadd.f32 %v1165, %v1487
    %v1493 = vld [vmem:[#allocation7 + $0x1a] ss:$0 sm:$0xff]
    %v1494 = vld [vmem:[#allocation7 + $0x22] ss:$0 sm:$0xff]
    %v1495 = vsel %vm204, %v1492, 0.0
    %1496 = vadd.xlane.f32.xlu0 %v1495
    %v1497 = vpop.xlane.xlu0 %1496
    %v1498 = vmul.f32 %v1492, %v1492
    %v1499 = vsel %vm204, %v1498, 0.0
    %1500 = vadd.xlane.f32.xlu0 %v1499
    %v1501 = vpop.xlane.xlu0 %1500
    %v1502 = vmul.f32 %v1497, 0.0078125
    %v1503 = vmul.f32 %v1501, 0.0078125
    %v1504 = vmul.f32 %v1502, %v1502
    %v1505 = vsub.f32 %v1503, %v1504
    %v1506 = vsub.f32 %v1492, %v1502
    %v1507 = vadd.f32 %v1505, 1e-05
    %v1508 = vrsqrt.pop %v1507
    %v1509 = vmul.f32 %v1506, %v1508
    %v1510 = vmul.f32 %v1509, %v1493
    %v1511 = vadd.f32 %v1510, %v1494
    %s1512 = scalar_lea.vmem %s2, 192
    %v1513 = vld [vmem:[%s1512] sm:$0xf]
    %v1514 = vld [vmem:[%s1512 + $0x4] sm:$0xf]
    %v1515 = vld [vmem:[%s1512 + $0x8] sm:$0xf]
    %v1516 = vld [vmem:[%s1512 + $0xc] sm:$0xf]
    %v1517 = vld [vmem:[%s1512 + $0x10] sm:$0xf]
    %v1518 = vld [vmem:[%s1512 + $0x14] sm:$0xf]
    %v1519 = vld [vmem:[%s1512 + $0x18] sm:$0xf]
    %v1520 = vld [vmem:[%s1512 + $0x1c] sm:$0xf]
    %v1521 = vld [vmem:[%s1512 + $0x20] sm:$0xf]
    %v1522 = vld [vmem:[%s1512 + $0x24] sm:$0xf]
    %v1523 = vld [vmem:[%s1512 + $0x28] sm:$0xf]
    %v1524 = vld [vmem:[%s1512 + $0x2c] sm:$0xf]
    %v1525 = vld [vmem:[%s1512 + $0x30] sm:$0xf]
    %v1526 = vld [vmem:[%s1512 + $0x34] sm:$0xf]
    %v1527 = vld [vmem:[%s1512 + $0x38] sm:$0xf]
    %v1528 = vld [vmem:[%s1512 + $0x3c] sm:$0xf]
    %v1529 = vpack.c.bf16 %v1511, %v1511
    %v1530 = vld [vmem:[#allocation7 + $0x3] ss:$0 sm:$0xff]
    %v1547 = vunpack.c.l.b16 %v1513
    %v1548 = vunpack.c.l.b16 %v1514
    %v1549 = vunpack.c.l.b16 %v1515
    %v1550 = vunpack.c.l.b16 %v1516
    %v1551 = vunpack.c.l.b16 %v1517
    %v1552 = vunpack.c.l.b16 %v1518
    %v1553 = vunpack.c.l.b16 %v1519
    %v1554 = vunpack.c.l.b16 %v1520
    %v1555 = vunpack.c.l.b16 %v1521
    %v1556 = vunpack.c.l.b16 %v1522
    %v1557 = vunpack.c.l.b16 %v1523
    %v1558 = vunpack.c.l.b16 %v1524
    %v1559 = vunpack.c.l.b16 %v1525
    %v1560 = vunpack.c.l.b16 %v1526
    %v1561 = vunpack.c.l.b16 %v1527
    %v1562 = vunpack.c.l.b16 %v1528
    %v1563 = vpack.c.b16 %v1548, %v1547
    %v1564 = vpack.c.b16 %v1550, %v1549
    %v1565 = vpack.c.b16 %v1552, %v1551
    %v1566 = vpack.c.b16 %v1554, %v1553
    %v1567 = vpack.c.b16 %v1556, %v1555
    %v1568 = vpack.c.b16 %v1558, %v1557
    %v1569 = vpack.c.b16 %v1560, %v1559
    %v1570 = vpack.c.b16 %v1562, %v1561
    %1579 = vmatprep.subr.bf16.mxu0 0
    %1580 = vmatpush1.bf16.msra.mxu0 %v1570
    %1581 = vmatprep.subr.bf16.mxu0 0
    %1582 = vmatpush1.bf16.msra.mxu0 %v1569
    %1583 = vmatprep.subr.bf16.mxu0 0
    %1584 = vmatpush1.bf16.msra.mxu0 %v1568
    %1585 = vmatprep.subr.bf16.mxu0 0
    %1586 = vmatpush1.bf16.msra.mxu0 %v1567
    %1587 = vmatprep.subr.bf16.mxu0 0
    %1588 = vmatpush1.bf16.msra.mxu0 %v1566
    %1589 = vmatprep.subr.bf16.mxu0 0
    %1590 = vmatpush1.bf16.msra.mxu0 %v1565
    %1591 = vmatprep.subr.bf16.mxu0 0
    %1592 = vmatpush1.bf16.msra.mxu0 %v1564
    %1593 = vmatprep.subr.bf16.mxu0 0
    %1594 = vmatpush1.bf16.msra.mxu0 %v1563
    %1595 = vmatprep.subr.bf16.mxu0 0
    %1596 = vmatpush2.bf16.msra.mxu0 0
    %1597 = vmatprep.subr.bf16.mxu0 0
    %1598 = vmatpush2.bf16.msra.mxu0 0
    %1599 = vmatprep.subr.bf16.mxu0 0
    %1600 = vmatpush2.bf16.msra.mxu0 0
    %1601 = vmatprep.subr.bf16.mxu0 0
    %1602 = vmatpush2.bf16.msra.mxu0 0
    %1603 = vmatprep.subr.bf16.mxu0 0
    %1604 = vmatpush2.bf16.msra.mxu0 0
    %1605 = vmatprep.subr.bf16.mxu0 0
    %1606 = vmatpush2.bf16.msra.mxu0 0
    %1607 = vmatprep.subr.bf16.mxu0 0
    %1608 = vmatpush2.bf16.msra.mxu0 0
    %1609 = vmatprep.subr.bf16.mxu0 0
    %1610 = vmatpush2.bf16.msra.mxu0 0
    %1611 = vmatprep.mubr.bf16.mxu0 0
    %1612 = vmatmul.mubr.bf16.gmra.mxu0 %v1529
    %v1613 = vpop.f32.mrf.mxu0
    %v1614 = vadd.f32 %v1530, %v1613
    %v1615 = vpop.f32.mrf.mxu0
    %v1616 = vpop.f32.mrf.mxu0
    %v1617 = vpop.f32.mrf.mxu0
    %1618 = vdwg.mxu0
    %v1619 = vadd.f32 %v1511, %v1614
    %v1620 = vld [vmem:[#allocation7 + $0xb] ss:$0 sm:$0xff]
    %v1621 = vld [vmem:[#allocation7 + $0x13] ss:$0 sm:$0xff]
    %v1622 = vsel %vm204, %v1619, 0.0
    %1623 = vadd.xlane.f32.xlu0 %v1622
    %v1624 = vpop.xlane.xlu0 %1623
    %v1625 = vmul.f32 %v1619, %v1619
    %v1626 = vsel %vm204, %v1625, 0.0
    %1627 = vadd.xlane.f32.xlu0 %v1626
    %v1628 = vpop.xlane.xlu0 %1627
    %v1629 = vmul.f32 %v1624, 0.0078125
    %v1630 = vmul.f32 %v1628, 0.0078125
    %v1631 = vmul.f32 %v1629, %v1629
    %v1632 = vsub.f32 %v1630, %v1631
    %v1633 = vsub.f32 %v1619, %v1629
    %v1634 = vadd.f32 %v1632, 1e-05
    %v1635 = vrsqrt.pop %v1634
    %v1636 = vmul.f32 %v1633, %v1635
    %v1637 = vmul.f32 %v1636, %v1620
    %v1638 = vadd.f32 %v1637, %v1621
    %s1639 = scalar_lea.vmem [#allocation2], 384
    %v1640 = vld [vmem:[%s1639] sm:$0xff]
    %v1641 = vld [vmem:[%s1639 + $0x8] sm:$0xff]
    %v1642 = vld [vmem:[%s1639 + $0x10] sm:$0xff]
    %v1643 = vld [vmem:[%s1639 + $0x18] sm:$0xff]
    %v1644 = vld [vmem:[%s1639 + $0x20] sm:$0xff]
    %v1645 = vld [vmem:[%s1639 + $0x28] sm:$0xff]
    %v1646 = vld [vmem:[%s1639 + $0x30] sm:$0xff]
    %v1647 = vld [vmem:[%s1639 + $0x38] sm:$0xff]
    %v1648 = vld [vmem:[%s1639 + $0x40] sm:$0xff]
    %v1649 = vld [vmem:[%s1639 + $0x48] sm:$0xff]
    %v1650 = vld [vmem:[%s1639 + $0x50] sm:$0xff]
    %v1651 = vld [vmem:[%s1639 + $0x58] sm:$0xff]
    %v1652 = vld [vmem:[%s1639 + $0x60] sm:$0xff]
    %v1653 = vld [vmem:[%s1639 + $0x68] sm:$0xff]
    %v1654 = vld [vmem:[%s1639 + $0x70] sm:$0xff]
    %v1655 = vld [vmem:[%s1639 + $0x78] sm:$0xff]
    %v1656 = vpack.c.bf16 %v1638, %v1638
    %s1657 = scalar_lea.vmem [#allocation7], 51
    %v1658 = vld [vmem:[%s1657] ss:$8 sm:$0x3]
    %v1660 = vlaneseq
    %v1661 = vshrl.u32 %v1660, 7
    %v1662 = vsub.s32 0, %v1661
    %v1663 = vrot.slane %v1658, %v1662
    %v1664 = vlaneseq
    %v1665 = vshrl.u32 %v1664, 7
    %v1666 = vsub.s32 1, %v1665
    %v1667 = vrot.slane %v1658, %v1666
    %v1686 = vunpack.c.l.b16 %v1640
    %v1687 = vunpack.c.h.b16 %v1640
    %v1688 = vunpack.c.l.b16 %v1641
    %v1689 = vunpack.c.h.b16 %v1641
    %v1690 = vunpack.c.l.b16 %v1642
    %v1691 = vunpack.c.h.b16 %v1642
    %v1692 = vunpack.c.l.b16 %v1643
    %v1693 = vunpack.c.h.b16 %v1643
    %v1694 = vunpack.c.l.b16 %v1644
    %v1695 = vunpack.c.h.b16 %v1644
    %v1696 = vunpack.c.l.b16 %v1645
    %v1697 = vunpack.c.h.b16 %v1645
    %v1698 = vunpack.c.l.b16 %v1646
    %v1699 = vunpack.c.h.b16 %v1646
    %v1700 = vunpack.c.l.b16 %v1647
    %v1701 = vunpack.c.h.b16 %v1647
    %v1702 = vunpack.c.l.b16 %v1648
    %v1703 = vunpack.c.h.b16 %v1648
    %v1704 = vunpack.c.l.b16 %v1649
    %v1705 = vunpack.c.h.b16 %v1649
    %v1706 = vunpack.c.l.b16 %v1650
    %v1707 = vunpack.c.h.b16 %v1650
    %v1708 = vunpack.c.l.b16 %v1651
    %v1709 = vunpack.c.h.b16 %v1651
    %v1710 = vunpack.c.l.b16 %v1652
    %v1711 = vunpack.c.h.b16 %v1652
    %v1712 = vunpack.c.l.b16 %v1653
    %v1713 = vunpack.c.h.b16 %v1653
    %v1714 = vunpack.c.l.b16 %v1654
    %v1715 = vunpack.c.h.b16 %v1654
    %v1716 = vunpack.c.l.b16 %v1655
    %v1717 = vunpack.c.h.b16 %v1655
    %v1718 = vpack.c.b16 %v1688, %v1686
    %v1719 = vpack.c.b16 %v1689, %v1687
    %v1720 = vpack.c.b16 %v1692, %v1690
    %v1721 = vpack.c.b16 %v1693, %v1691
    %v1722 = vpack.c.b16 %v1696, %v1694
    %v1723 = vpack.c.b16 %v1697, %v1695
    %v1724 = vpack.c.b16 %v1700, %v1698
    %v1725 = vpack.c.b16 %v1701, %v1699
    %v1726 = vpack.c.b16 %v1704, %v1702
    %v1727 = vpack.c.b16 %v1705, %v1703
    %v1728 = vpack.c.b16 %v1708, %v1706
    %v1729 = vpack.c.b16 %v1709, %v1707
    %v1730 = vpack.c.b16 %v1712, %v1710
    %v1731 = vpack.c.b16 %v1713, %v1711
    %v1732 = vpack.c.b16 %v1716, %v1714
    %v1733 = vpack.c.b16 %v1717, %v1715
    %1750 = vmatprep.subr.bf16.mxu0 %v1733
    %1751 = vmatpush1.bf16.msra.mxu0 %v1732
    %1752 = vmatprep.subr.bf16.mxu0 %v1731
    %1753 = vmatpush1.bf16.msra.mxu0 %v1730
    %1754 = vmatprep.subr.bf16.mxu0 %v1729
    %1755 = vmatpush1.bf16.msra.mxu0 %v1728
    %1756 = vmatprep.subr.bf16.mxu0 %v1727
    %1757 = vmatpush1.bf16.msra.mxu0 %v1726
    %1758 = vmatprep.subr.bf16.mxu0 %v1725
    %1759 = vmatpush1.bf16.msra.mxu0 %v1724
    %1760 = vmatprep.subr.bf16.mxu0 %v1723
    %1761 = vmatpush1.bf16.msra.mxu0 %v1722
    %1762 = vmatprep.subr.bf16.mxu0 %v1721
    %1763 = vmatpush1.bf16.msra.mxu0 %v1720
    %1764 = vmatprep.subr.bf16.mxu0 %v1719
    %1765 = vmatpush1.bf16.msra.mxu0 %v1718
    %1766 = vmatprep.subr.bf16.mxu0 0
    %1767 = vmatpush2.bf16.msra.mxu0 0
    %1768 = vmatprep.subr.bf16.mxu0 0
    %1769 = vmatpush2.bf16.msra.mxu0 0
    %1770 = vmatprep.subr.bf16.mxu0 0
    %1771 = vmatpush2.bf16.msra.mxu0 0
    %1772 = vmatprep.subr.bf16.mxu0 0
    %1773 = vmatpush2.bf16.msra.mxu0 0
    %1774 = vmatprep.subr.bf16.mxu0 0
    %1775 = vmatpush2.bf16.msra.mxu0 0
    %1776 = vmatprep.subr.bf16.mxu0 0
    %1777 = vmatpush2.bf16.msra.mxu0 0
    %1778 = vmatprep.subr.bf16.mxu0 0
    %1779 = vmatpush2.bf16.msra.mxu0 0
    %1780 = vmatprep.subr.bf16.mxu0 0
    %1781 = vmatpush2.bf16.msra.mxu0 0
    %1782 = vmatprep.mubr.bf16.mxu0 0
    %1783 = vmatmul.mubr.bf16.gmra.mxu0 %v1656
    %v1784 = vpop.f32.mrf.mxu0
    %v1785 = vadd.f32 %v1663, %v1784
    %v1786 = vpop.f32.mrf.mxu0
    %v1787 = vadd.f32 %v1667, %v1786
    %v1788 = vpop.f32.mrf.mxu0
    %v1789 = vpop.f32.mrf.mxu0
    %1790 = vdwg.mxu0
    %v1791 = vmax.f32 %v1785, 0.0
    %v1792 = vmax.f32 %v1787, 0.0
    %s1793 = scalar_lea.vmem [#allocation5], 384
    %v1794 = vld [vmem:[%s1793] sm:$0xf]
    %v1795 = vld [vmem:[%s1793 + $0x4] sm:$0xf]
    %v1796 = vld [vmem:[%s1793 + $0x8] sm:$0xf]
    %v1797 = vld [vmem:[%s1793 + $0xc] sm:$0xf]
    %v1798 = vld [vmem:[%s1793 + $0x10] sm:$0xf]
    %v1799 = vld [vmem:[%s1793 + $0x14] sm:$0xf]
    %v1800 = vld [vmem:[%s1793 + $0x18] sm:$0xf]
    %v1801 = vld [vmem:[%s1793 + $0x1c] sm:$0xf]
    %v1802 = vld [vmem:[%s1793 + $0x20] sm:$0xf]
    %v1803 = vld [vmem:[%s1793 + $0x24] sm:$0xf]
    %v1804 = vld [vmem:[%s1793 + $0x28] sm:$0xf]
    %v1805 = vld [vmem:[%s1793 + $0x2c] sm:$0xf]
    %v1806 = vld [vmem:[%s1793 + $0x30] sm:$0xf]
    %v1807 = vld [vmem:[%s1793 + $0x34] sm:$0xf]
    %v1808 = vld [vmem:[%s1793 + $0x38] sm:$0xf]
    %v1809 = vld [vmem:[%s1793 + $0x3c] sm:$0xf]
    %v1810 = vld [vmem:[%s1793 + $0x40] sm:$0xf]
    %v1811 = vld [vmem:[%s1793 + $0x44] sm:$0xf]
    %v1812 = vld [vmem:[%s1793 + $0x48] sm:$0xf]
    %v1813 = vld [vmem:[%s1793 + $0x4c] sm:$0xf]
    %v1814 = vld [vmem:[%s1793 + $0x50] sm:$0xf]
    %v1815 = vld [vmem:[%s1793 + $0x54] sm:$0xf]
    %v1816 = vld [vmem:[%s1793 + $0x58] sm:$0xf]
    %v1817 = vld [vmem:[%s1793 + $0x5c] sm:$0xf]
    %v1818 = vld [vmem:[%s1793 + $0x60] sm:$0xf]
    %v1819 = vld [vmem:[%s1793 + $0x64] sm:$0xf]
    %v1820 = vld [vmem:[%s1793 + $0x68] sm:$0xf]
    %v1821 = vld [vmem:[%s1793 + $0x6c] sm:$0xf]
    %v1822 = vld [vmem:[%s1793 + $0x70] sm:$0xf]
    %v1823 = vld [vmem:[%s1793 + $0x74] sm:$0xf]
    %v1824 = vld [vmem:[%s1793 + $0x78] sm:$0xf]
    %v1825 = vld [vmem:[%s1793 + $0x7c] sm:$0xf]
    %v1826 = vpack.c.bf16 %v1791, %v1791
    %v1827 = vpack.c.bf16 %v1792, %v1792
    %v1828 = vld [vmem:[#allocation7 + $0x2b] ss:$0 sm:$0xff]
    %v1861 = vunpack.c.l.b16 %v1794
    %v1862 = vunpack.c.l.b16 %v1795
    %v1863 = vunpack.c.l.b16 %v1796
    %v1864 = vunpack.c.l.b16 %v1797
    %v1865 = vunpack.c.l.b16 %v1798
    %v1866 = vunpack.c.l.b16 %v1799
    %v1867 = vunpack.c.l.b16 %v1800
    %v1868 = vunpack.c.l.b16 %v1801
    %v1869 = vunpack.c.l.b16 %v1802
    %v1870 = vunpack.c.l.b16 %v1803
    %v1871 = vunpack.c.l.b16 %v1804
    %v1872 = vunpack.c.l.b16 %v1805
    %v1873 = vunpack.c.l.b16 %v1806
    %v1874 = vunpack.c.l.b16 %v1807
    %v1875 = vunpack.c.l.b16 %v1808
    %v1876 = vunpack.c.l.b16 %v1809
    %v1877 = vunpack.c.l.b16 %v1810
    %v1878 = vunpack.c.l.b16 %v1811
    %v1879 = vunpack.c.l.b16 %v1812
    %v1880 = vunpack.c.l.b16 %v1813
    %v1881 = vunpack.c.l.b16 %v1814
    %v1882 = vunpack.c.l.b16 %v1815
    %v1883 = vunpack.c.l.b16 %v1816
    %v1884 = vunpack.c.l.b16 %v1817
    %v1885 = vunpack.c.l.b16 %v1818
    %v1886 = vunpack.c.l.b16 %v1819
    %v1887 = vunpack.c.l.b16 %v1820
    %v1888 = vunpack.c.l.b16 %v1821
    %v1889 = vunpack.c.l.b16 %v1822
    %v1890 = vunpack.c.l.b16 %v1823
    %v1891 = vunpack.c.l.b16 %v1824
    %v1892 = vunpack.c.l.b16 %v1825
    %v1893 = vpack.c.b16 %v1862, %v1861
    %v1894 = vpack.c.b16 %v1864, %v1863
    %v1895 = vpack.c.b16 %v1866, %v1865
    %v1896 = vpack.c.b16 %v1868, %v1867
    %v1897 = vpack.c.b16 %v1870, %v1869
    %v1898 = vpack.c.b16 %v1872, %v1871
    %v1899 = vpack.c.b16 %v1874, %v1873
    %v1900 = vpack.c.b16 %v1876, %v1875
    %v1901 = vpack.c.b16 %v1878, %v1877
    %v1902 = vpack.c.b16 %v1880, %v1879
    %v1903 = vpack.c.b16 %v1882, %v1881
    %v1904 = vpack.c.b16 %v1884, %v1883
    %v1905 = vpack.c.b16 %v1886, %v1885
    %v1906 = vpack.c.b16 %v1888, %v1887
    %v1907 = vpack.c.b16 %v1890, %v1889
    %v1908 = vpack.c.b16 %v1892, %v1891
    %1925 = vmatprep.subr.bf16.mxu0 0
    %1926 = vmatpush1.bf16.msra.mxu0 %v1900
    %1927 = vmatprep.subr.bf16.mxu0 0
    %1928 = vmatpush1.bf16.msra.mxu0 %v1899
    %1929 = vmatprep.subr.bf16.mxu0 0
    %1930 = vmatpush1.bf16.msra.mxu0 %v1898
    %1931 = vmatprep.subr.bf16.mxu0 0
    %1932 = vmatpush1.bf16.msra.mxu0 %v1897
    %1933 = vmatprep.subr.bf16.mxu0 0
    %1934 = vmatpush1.bf16.msra.mxu0 %v1896
    %1935 = vmatprep.subr.bf16.mxu0 0
    %1936 = vmatpush1.bf16.msra.mxu0 %v1895
    %1937 = vmatprep.subr.bf16.mxu0 0
    %1938 = vmatpush1.bf16.msra.mxu0 %v1894
    %1939 = vmatprep.subr.bf16.mxu0 0
    %1940 = vmatpush1.bf16.msra.mxu0 %v1893
    %1941 = vmatprep.subr.bf16.mxu0 0
    %1942 = vmatpush2.bf16.msra.mxu0 %v1908
    %1943 = vmatprep.subr.bf16.mxu0 0
    %1944 = vmatpush2.bf16.msra.mxu0 %v1907
    %1945 = vmatprep.subr.bf16.mxu0 0
    %1946 = vmatpush2.bf16.msra.mxu0 %v1906
    %1947 = vmatprep.subr.bf16.mxu0 0
    %1948 = vmatpush2.bf16.msra.mxu0 %v1905
    %1949 = vmatprep.subr.bf16.mxu0 0
    %1950 = vmatpush2.bf16.msra.mxu0 %v1904
    %1951 = vmatprep.subr.bf16.mxu0 0
    %1952 = vmatpush2.bf16.msra.mxu0 %v1903
    %1953 = vmatprep.subr.bf16.mxu0 0
    %1954 = vmatpush2.bf16.msra.mxu0 %v1902
    %1955 = vmatprep.subr.bf16.mxu0 0
    %1956 = vmatpush2.bf16.msra.mxu0 %v1901
    %1957 = vmatprep.mubr.bf16.mxu0 %v1827
    %1958 = vmatmul.mubr.bf16.gmra.mxu0 %v1826
    %v1959 = vpop.f32.mrf.mxu0
    %v1960 = vadd.f32 %v1828, %v1959
    %v1961 = vpop.f32.mrf.mxu0
    %v1962 = vpop.f32.mrf.mxu0
    %v1963 = vpop.f32.mrf.mxu0
    %1964 = vdwg.mxu0
    %v1965 = vadd.f32 %v1638, %v1960
    %v1966 = vld [vmem:[#allocation7 + $0x1b] ss:$0 sm:$0xff]
    %v1967 = vld [vmem:[#allocation7 + $0x23] ss:$0 sm:$0xff]
    %v1968 = vsel %vm204, %v1965, 0.0
    %1969 = vadd.xlane.f32.xlu0 %v1968
    %v1970 = vpop.xlane.xlu0 %1969
    %v1971 = vmul.f32 %v1965, %v1965
    %v1972 = vsel %vm204, %v1971, 0.0
    %1973 = vadd.xlane.f32.xlu0 %v1972
    %v1974 = vpop.xlane.xlu0 %1973
    %v1975 = vmul.f32 %v1970, 0.0078125
    %v1976 = vmul.f32 %v1974, 0.0078125
    %v1977 = vmul.f32 %v1975, %v1975
    %v1978 = vsub.f32 %v1976, %v1977
    %v1979 = vsub.f32 %v1965, %v1975
    %v1980 = vadd.f32 %v1978, 1e-05
    %v1981 = vrsqrt.pop %v1980
    %v1982 = vmul.f32 %v1979, %v1981
    %v1983 = vmul.f32 %v1982, %v1966
    %v1984 = vadd.f32 %v1983, %v1967
    %s1985 = scalar_lea.vmem %s2, 256
    %v1986 = vld [vmem:[%s1985] sm:$0xf]
    %v1987 = vld [vmem:[%s1985 + $0x4] sm:$0xf]
    %v1988 = vld [vmem:[%s1985 + $0x8] sm:$0xf]
    %v1989 = vld [vmem:[%s1985 + $0xc] sm:$0xf]
    %v1990 = vld [vmem:[%s1985 + $0x10] sm:$0xf]
    %v1991 = vld [vmem:[%s1985 + $0x14] sm:$0xf]
    %v1992 = vld [vmem:[%s1985 + $0x18] sm:$0xf]
    %v1993 = vld [vmem:[%s1985 + $0x1c] sm:$0xf]
    %v1994 = vld [vmem:[%s1985 + $0x20] sm:$0xf]
    %v1995 = vld [vmem:[%s1985 + $0x24] sm:$0xf]
    %v1996 = vld [vmem:[%s1985 + $0x28] sm:$0xf]
    %v1997 = vld [vmem:[%s1985 + $0x2c] sm:$0xf]
    %v1998 = vld [vmem:[%s1985 + $0x30] sm:$0xf]
    %v1999 = vld [vmem:[%s1985 + $0x34] sm:$0xf]
    %v2000 = vld [vmem:[%s1985 + $0x38] sm:$0xf]
    %v2001 = vld [vmem:[%s1985 + $0x3c] sm:$0xf]
    %v2002 = vpack.c.bf16 %v1984, %v1984
    %v2003 = vld [vmem:[#allocation7 + $0x4] ss:$0 sm:$0xff]
    %v2020 = vunpack.c.l.b16 %v1986
    %v2021 = vunpack.c.l.b16 %v1987
    %v2022 = vunpack.c.l.b16 %v1988
    %v2023 = vunpack.c.l.b16 %v1989
    %v2024 = vunpack.c.l.b16 %v1990
    %v2025 = vunpack.c.l.b16 %v1991
    %v2026 = vunpack.c.l.b16 %v1992
    %v2027 = vunpack.c.l.b16 %v1993
    %v2028 = vunpack.c.l.b16 %v1994
    %v2029 = vunpack.c.l.b16 %v1995
    %v2030 = vunpack.c.l.b16 %v1996
    %v2031 = vunpack.c.l.b16 %v1997
    %v2032 = vunpack.c.l.b16 %v1998
    %v2033 = vunpack.c.l.b16 %v1999
    %v2034 = vunpack.c.l.b16 %v2000
    %v2035 = vunpack.c.l.b16 %v2001
    %v2036 = vpack.c.b16 %v2021, %v2020
    %v2037 = vpack.c.b16 %v2023, %v2022
    %v2038 = vpack.c.b16 %v2025, %v2024
    %v2039 = vpack.c.b16 %v2027, %v2026
    %v2040 = vpack.c.b16 %v2029, %v2028
    %v2041 = vpack.c.b16 %v2031, %v2030
    %v2042 = vpack.c.b16 %v2033, %v2032
    %v2043 = vpack.c.b16 %v2035, %v2034
    %2052 = vmatprep.subr.bf16.mxu0 0
    %2053 = vmatpush1.bf16.msra.mxu0 %v2043
    %2054 = vmatprep.subr.bf16.mxu0 0
    %2055 = vmatpush1.bf16.msra.mxu0 %v2042
    %2056 = vmatprep.subr.bf16.mxu0 0
    %2057 = vmatpush1.bf16.msra.mxu0 %v2041
    %2058 = vmatprep.subr.bf16.mxu0 0
    %2059 = vmatpush1.bf16.msra.mxu0 %v2040
    %2060 = vmatprep.subr.bf16.mxu0 0
    %2061 = vmatpush1.bf16.msra.mxu0 %v2039
    %2062 = vmatprep.subr.bf16.mxu0 0
    %2063 = vmatpush1.bf16.msra.mxu0 %v2038
    %2064 = vmatprep.subr.bf16.mxu0 0
    %2065 = vmatpush1.bf16.msra.mxu0 %v2037
    %2066 = vmatprep.subr.bf16.mxu0 0
    %2067 = vmatpush1.bf16.msra.mxu0 %v2036
    %2068 = vmatprep.subr.bf16.mxu0 0
    %2069 = vmatpush2.bf16.msra.mxu0 0
    %2070 = vmatprep.subr.bf16.mxu0 0
    %2071 = vmatpush2.bf16.msra.mxu0 0
    %2072 = vmatprep.subr.bf16.mxu0 0
    %2073 = vmatpush2.bf16.msra.mxu0 0
    %2074 = vmatprep.subr.bf16.mxu0 0
    %2075 = vmatpush2.bf16.msra.mxu0 0
    %2076 = vmatprep.subr.bf16.mxu0 0
    %2077 = vmatpush2.bf16.msra.mxu0 0
    %2078 = vmatprep.subr.bf16.mxu0 0
    %2079 = vmatpush2.bf16.msra.mxu0 0
    %2080 = vmatprep.subr.bf16.mxu0 0
    %2081 = vmatpush2.bf16.msra.mxu0 0
    %2082 = vmatprep.subr.bf16.mxu0 0
    %2083 = vmatpush2.bf16.msra.mxu0 0
    %2084 = vmatprep.mubr.bf16.mxu0 0
    %2085 = vmatmul.mubr.bf16.gmra.mxu0 %v2002
    %v2086 = vpop.f32.mrf.mxu0
    %v2087 = vadd.f32 %v2003, %v2086
    %v2088 = vpop.f32.mrf.mxu0
    %v2089 = vpop.f32.mrf.mxu0
    %v2090 = vpop.f32.mrf.mxu0
    %2091 = vdwg.mxu0
    %v2092 = vadd.f32 %v1984, %v2087
    %v2093 = vld [vmem:[#allocation7 + $0xc] ss:$0 sm:$0xff]
    %v2094 = vld [vmem:[#allocation7 + $0x14] ss:$0 sm:$0xff]
    %v2095 = vsel %vm204, %v2092, 0.0
    %2096 = vadd.xlane.f32.xlu0 %v2095
    %v2097 = vpop.xlane.xlu0 %2096
    %v2098 = vmul.f32 %v2092, %v2092
    %v2099 = vsel %vm204, %v2098, 0.0
    %2100 = vadd.xlane.f32.xlu0 %v2099
    %v2101 = vpop.xlane.xlu0 %2100
    %v2102 = vmul.f32 %v2097, 0.0078125
    %v2103 = vmul.f32 %v2101, 0.0078125
    %v2104 = vmul.f32 %v2102, %v2102
    %v2105 = vsub.f32 %v2103, %v2104
    %v2106 = vsub.f32 %v2092, %v2102
    %v2107 = vadd.f32 %v2105, 1e-05
    %v2108 = vrsqrt.pop %v2107
    %v2109 = vmul.f32 %v2106, %v2108
    %v2110 = vmul.f32 %v2109, %v2093
    %v2111 = vadd.f32 %v2110, %v2094
    %s2112 = scalar_lea.vmem [#allocation2], 512
    %v2113 = vld [vmem:[%s2112] sm:$0xff]
    %v2114 = vld [vmem:[%s2112 + $0x8] sm:$0xff]
    %v2115 = vld [vmem:[%s2112 + $0x10] sm:$0xff]
    %v2116 = vld [vmem:[%s2112 + $0x18] sm:$0xff]
    %v2117 = vld [vmem:[%s2112 + $0x20] sm:$0xff]
    %v2118 = vld [vmem:[%s2112 + $0x28] sm:$0xff]
    %v2119 = vld [vmem:[%s2112 + $0x30] sm:$0xff]
    %v2120 = vld [vmem:[%s2112 + $0x38] sm:$0xff]
    %v2121 = vld [vmem:[%s2112 + $0x40] sm:$0xff]
    %v2122 = vld [vmem:[%s2112 + $0x48] sm:$0xff]
    %v2123 = vld [vmem:[%s2112 + $0x50] sm:$0xff]
    %v2124 = vld [vmem:[%s2112 + $0x58] sm:$0xff]
    %v2125 = vld [vmem:[%s2112 + $0x60] sm:$0xff]
    %v2126 = vld [vmem:[%s2112 + $0x68] sm:$0xff]
    %v2127 = vld [vmem:[%s2112 + $0x70] sm:$0xff]
    %v2128 = vld [vmem:[%s2112 + $0x78] sm:$0xff]
    %v2129 = vpack.c.bf16 %v2111, %v2111
    %s2130 = scalar_lea.vmem [#allocation7], 52
    %v2131 = vld [vmem:[%s2130] ss:$8 sm:$0x3]
    %v2133 = vlaneseq
    %v2134 = vshrl.u32 %v2133, 7
    %v2135 = vsub.s32 0, %v2134
    %v2136 = vrot.slane %v2131, %v2135
    %v2137 = vlaneseq
    %v2138 = vshrl.u32 %v2137, 7
    %v2139 = vsub.s32 1, %v2138
    %v2140 = vrot.slane %v2131, %v2139
    %v2159 = vunpack.c.l.b16 %v2113
    %v2160 = vunpack.c.h.b16 %v2113
    %v2161 = vunpack.c.l.b16 %v2114
    %v2162 = vunpack.c.h.b16 %v2114
    %v2163 = vunpack.c.l.b16 %v2115
    %v2164 = vunpack.c.h.b16 %v2115
    %v2165 = vunpack.c.l.b16 %v2116
    %v2166 = vunpack.c.h.b16 %v2116
    %v2167 = vunpack.c.l.b16 %v2117
    %v2168 = vunpack.c.h.b16 %v2117
    %v2169 = vunpack.c.l.b16 %v2118
    %v2170 = vunpack.c.h.b16 %v2118
    %v2171 = vunpack.c.l.b16 %v2119
    %v2172 = vunpack.c.h.b16 %v2119
    %v2173 = vunpack.c.l.b16 %v2120
    %v2174 = vunpack.c.h.b16 %v2120
    %v2175 = vunpack.c.l.b16 %v2121
    %v2176 = vunpack.c.h.b16 %v2121
    %v2177 = vunpack.c.l.b16 %v2122
    %v2178 = vunpack.c.h.b16 %v2122
    %v2179 = vunpack.c.l.b16 %v2123
    %v2180 = vunpack.c.h.b16 %v2123
    %v2181 = vunpack.c.l.b16 %v2124
    %v2182 = vunpack.c.h.b16 %v2124
    %v2183 = vunpack.c.l.b16 %v2125
    %v2184 = vunpack.c.h.b16 %v2125
    %v2185 = vunpack.c.l.b16 %v2126
    %v2186 = vunpack.c.h.b16 %v2126
    %v2187 = vunpack.c.l.b16 %v2127
    %v2188 = vunpack.c.h.b16 %v2127
    %v2189 = vunpack.c.l.b16 %v2128
    %v2190 = vunpack.c.h.b16 %v2128
    %v2191 = vpack.c.b16 %v2161, %v2159
    %v2192 = vpack.c.b16 %v2162, %v2160
    %v2193 = vpack.c.b16 %v2165, %v2163
    %v2194 = vpack.c.b16 %v2166, %v2164
    %v2195 = vpack.c.b16 %v2169, %v2167
    %v2196 = vpack.c.b16 %v2170, %v2168
    %v2197 = vpack.c.b16 %v2173, %v2171
    %v2198 = vpack.c.b16 %v2174, %v2172
    %v2199 = vpack.c.b16 %v2177, %v2175
    %v2200 = vpack.c.b16 %v2178, %v2176
    %v2201 = vpack.c.b16 %v2181, %v2179
    %v2202 = vpack.c.b16 %v2182, %v2180
    %v2203 = vpack.c.b16 %v2185, %v2183
    %v2204 = vpack.c.b16 %v2186, %v2184
    %v2205 = vpack.c.b16 %v2189, %v2187
    %v2206 = vpack.c.b16 %v2190, %v2188
    %2223 = vmatprep.subr.bf16.mxu0 %v2206
    %2224 = vmatpush1.bf16.msra.mxu0 %v2205
    %2225 = vmatprep.subr.bf16.mxu0 %v2204
    %2226 = vmatpush1.bf16.msra.mxu0 %v2203
    %2227 = vmatprep.subr.bf16.mxu0 %v2202
    %2228 = vmatpush1.bf16.msra.mxu0 %v2201
    %2229 = vmatprep.subr.bf16.mxu0 %v2200
    %2230 = vmatpush1.bf16.msra.mxu0 %v2199
    %2231 = vmatprep.subr.bf16.mxu0 %v2198
    %2232 = vmatpush1.bf16.msra.mxu0 %v2197
    %2233 = vmatprep.subr.bf16.mxu0 %v2196
    %2234 = vmatpush1.bf16.msra.mxu0 %v2195
    %2235 = vmatprep.subr.bf16.mxu0 %v2194
    %2236 = vmatpush1.bf16.msra.mxu0 %v2193
    %2237 = vmatprep.subr.bf16.mxu0 %v2192
    %2238 = vmatpush1.bf16.msra.mxu0 %v2191
    %2239 = vmatprep.subr.bf16.mxu0 0
    %2240 = vmatpush2.bf16.msra.mxu0 0
    %2241 = vmatprep.subr.bf16.mxu0 0
    %2242 = vmatpush2.bf16.msra.mxu0 0
    %2243 = vmatprep.subr.bf16.mxu0 0
    %2244 = vmatpush2.bf16.msra.mxu0 0
    %2245 = vmatprep.subr.bf16.mxu0 0
    %2246 = vmatpush2.bf16.msra.mxu0 0
    %2247 = vmatprep.subr.bf16.mxu0 0
    %2248 = vmatpush2.bf16.msra.mxu0 0
    %2249 = vmatprep.subr.bf16.mxu0 0
    %2250 = vmatpush2.bf16.msra.mxu0 0
    %2251 = vmatprep.subr.bf16.mxu0 0
    %2252 = vmatpush2.bf16.msra.mxu0 0
    %2253 = vmatprep.subr.bf16.mxu0 0
    %2254 = vmatpush2.bf16.msra.mxu0 0
    %2255 = vmatprep.mubr.bf16.mxu0 0
    %2256 = vmatmul.mubr.bf16.gmra.mxu0 %v2129
    %v2257 = vpop.f32.mrf.mxu0
    %v2258 = vadd.f32 %v2136, %v2257
    %v2259 = vpop.f32.mrf.mxu0
    %v2260 = vadd.f32 %v2140, %v2259
    %v2261 = vpop.f32.mrf.mxu0
    %v2262 = vpop.f32.mrf.mxu0
    %2263 = vdwg.mxu0
    %v2264 = vmax.f32 %v2258, 0.0
    %v2265 = vmax.f32 %v2260, 0.0
    %s2266 = scalar_lea.vmem [#allocation5], 512
    %v2267 = vld [vmem:[%s2266] sm:$0xf]
    %v2268 = vld [vmem:[%s2266 + $0x4] sm:$0xf]
    %v2269 = vld [vmem:[%s2266 + $0x8] sm:$0xf]
    %v2270 = vld [vmem:[%s2266 + $0xc] sm:$0xf]
    %v2271 = vld [vmem:[%s2266 + $0x10] sm:$0xf]
    %v2272 = vld [vmem:[%s2266 + $0x14] sm:$0xf]
    %v2273 = vld [vmem:[%s2266 + $0x18] sm:$0xf]
    %v2274 = vld [vmem:[%s2266 + $0x1c] sm:$0xf]
    %v2275 = vld [vmem:[%s2266 + $0x20] sm:$0xf]
    %v2276 = vld [vmem:[%s2266 + $0x24] sm:$0xf]
    %v2277 = vld [vmem:[%s2266 + $0x28] sm:$0xf]
    %v2278 = vld [vmem:[%s2266 + $0x2c] sm:$0xf]
    %v2279 = vld [vmem:[%s2266 + $0x30] sm:$0xf]
    %v2280 = vld [vmem:[%s2266 + $0x34] sm:$0xf]
    %v2281 = vld [vmem:[%s2266 + $0x38] sm:$0xf]
    %v2282 = vld [vmem:[%s2266 + $0x3c] sm:$0xf]
    %v2283 = vld [vmem:[%s2266 + $0x40] sm:$0xf]
    %v2284 = vld [vmem:[%s2266 + $0x44] sm:$0xf]
    %v2285 = vld [vmem:[%s2266 + $0x48] sm:$0xf]
    %v2286 = vld [vmem:[%s2266 + $0x4c] sm:$0xf]
    %v2287 = vld [vmem:[%s2266 + $0x50] sm:$0xf]
    %v2288 = vld [vmem:[%s2266 + $0x54] sm:$0xf]
    %v2289 = vld [vmem:[%s2266 + $0x58] sm:$0xf]
    %v2290 = vld [vmem:[%s2266 + $0x5c] sm:$0xf]
    %v2291 = vld [vmem:[%s2266 + $0x60] sm:$0xf]
    %v2292 = vld [vmem:[%s2266 + $0x64] sm:$0xf]
    %v2293 = vld [vmem:[%s2266 + $0x68] sm:$0xf]
    %v2294 = vld [vmem:[%s2266 + $0x6c] sm:$0xf]
    %v2295 = vld [vmem:[%s2266 + $0x70] sm:$0xf]
    %v2296 = vld [vmem:[%s2266 + $0x74] sm:$0xf]
    %v2297 = vld [vmem:[%s2266 + $0x78] sm:$0xf]
    %v2298 = vld [vmem:[%s2266 + $0x7c] sm:$0xf]
    %v2299 = vpack.c.bf16 %v2264, %v2264
    %v2300 = vpack.c.bf16 %v2265, %v2265
    %v2301 = vld [vmem:[#allocation7 + $0x2c] ss:$0 sm:$0xff]
    %v2334 = vunpack.c.l.b16 %v2267
    %v2335 = vunpack.c.l.b16 %v2268
    %v2336 = vunpack.c.l.b16 %v2269
    %v2337 = vunpack.c.l.b16 %v2270
    %v2338 = vunpack.c.l.b16 %v2271
    %v2339 = vunpack.c.l.b16 %v2272
    %v2340 = vunpack.c.l.b16 %v2273
    %v2341 = vunpack.c.l.b16 %v2274
    %v2342 = vunpack.c.l.b16 %v2275
    %v2343 = vunpack.c.l.b16 %v2276
    %v2344 = vunpack.c.l.b16 %v2277
    %v2345 = vunpack.c.l.b16 %v2278
    %v2346 = vunpack.c.l.b16 %v2279
    %v2347 = vunpack.c.l.b16 %v2280
    %v2348 = vunpack.c.l.b16 %v2281
    %v2349 = vunpack.c.l.b16 %v2282
    %v2350 = vunpack.c.l.b16 %v2283
    %v2351 = vunpack.c.l.b16 %v2284
    %v2352 = vunpack.c.l.b16 %v2285
    %v2353 = vunpack.c.l.b16 %v2286
    %v2354 = vunpack.c.l.b16 %v2287
    %v2355 = vunpack.c.l.b16 %v2288
    %v2356 = vunpack.c.l.b16 %v2289
    %v2357 = vunpack.c.l.b16 %v2290
    %v2358 = vunpack.c.l.b16 %v2291
    %v2359 = vunpack.c.l.b16 %v2292
    %v2360 = vunpack.c.l.b16 %v2293
    %v2361 = vunpack.c.l.b16 %v2294
    %v2362 = vunpack.c.l.b16 %v2295
    %v2363 = vunpack.c.l.b16 %v2296
    %v2364 = vunpack.c.l.b16 %v2297
    %v2365 = vunpack.c.l.b16 %v2298
    %v2366 = vpack.c.b16 %v2335, %v2334
    %v2367 = vpack.c.b16 %v2337, %v2336
    %v2368 = vpack.c.b16 %v2339, %v2338
    %v2369 = vpack.c.b16 %v2341, %v2340
    %v2370 = vpack.c.b16 %v2343, %v2342
    %v2371 = vpack.c.b16 %v2345, %v2344
    %v2372 = vpack.c.b16 %v2347, %v2346
    %v2373 = vpack.c.b16 %v2349, %v2348
    %v2374 = vpack.c.b16 %v2351, %v2350
    %v2375 = vpack.c.b16 %v2353, %v2352
    %v2376 = vpack.c.b16 %v2355, %v2354
    %v2377 = vpack.c.b16 %v2357, %v2356
    %v2378 = vpack.c.b16 %v2359, %v2358
    %v2379 = vpack.c.b16 %v2361, %v2360
    %v2380 = vpack.c.b16 %v2363, %v2362
    %v2381 = vpack.c.b16 %v2365, %v2364
    %2398 = vmatprep.subr.bf16.mxu0 0
    %2399 = vmatpush1.bf16.msra.mxu0 %v2373
    %2400 = vmatprep.subr.bf16.mxu0 0
    %2401 = vmatpush1.bf16.msra.mxu0 %v2372
    %2402 = vmatprep.subr.bf16.mxu0 0
    %2403 = vmatpush1.bf16.msra.mxu0 %v2371
    %2404 = vmatprep.subr.bf16.mxu0 0
    %2405 = vmatpush1.bf16.msra.mxu0 %v2370
    %2406 = vmatprep.subr.bf16.mxu0 0
    %2407 = vmatpush1.bf16.msra.mxu0 %v2369
    %2408 = vmatprep.subr.bf16.mxu0 0
    %2409 = vmatpush1.bf16.msra.mxu0 %v2368
    %2410 = vmatprep.subr.bf16.mxu0 0
    %2411 = vmatpush1.bf16.msra.mxu0 %v2367
    %2412 = vmatprep.subr.bf16.mxu0 0
    %2413 = vmatpush1.bf16.msra.mxu0 %v2366
    %2414 = vmatprep.subr.bf16.mxu0 0
    %2415 = vmatpush2.bf16.msra.mxu0 %v2381
    %2416 = vmatprep.subr.bf16.mxu0 0
    %2417 = vmatpush2.bf16.msra.mxu0 %v2380
    %2418 = vmatprep.subr.bf16.mxu0 0
    %2419 = vmatpush2.bf16.msra.mxu0 %v2379
    %2420 = vmatprep.subr.bf16.mxu0 0
    %2421 = vmatpush2.bf16.msra.mxu0 %v2378
    %2422 = vmatprep.subr.bf16.mxu0 0
    %2423 = vmatpush2.bf16.msra.mxu0 %v2377
    %2424 = vmatprep.subr.bf16.mxu0 0
    %2425 = vmatpush2.bf16.msra.mxu0 %v2376
    %2426 = vmatprep.subr.bf16.mxu0 0
    %2427 = vmatpush2.bf16.msra.mxu0 %v2375
    %2428 = vmatprep.subr.bf16.mxu0 0
    %2429 = vmatpush2.bf16.msra.mxu0 %v2374
    %2430 = vmatprep.mubr.bf16.mxu0 %v2300
    %2431 = vmatmul.mubr.bf16.gmra.mxu0 %v2299
    %v2432 = vpop.f32.mrf.mxu0
    %v2433 = vadd.f32 %v2301, %v2432
    %v2434 = vpop.f32.mrf.mxu0
    %v2435 = vpop.f32.mrf.mxu0
    %v2436 = vpop.f32.mrf.mxu0
    %2437 = vdwg.mxu0
    %v2438 = vadd.f32 %v2111, %v2433
    %v2439 = vld [vmem:[#allocation7 + $0x1c] ss:$0 sm:$0xff]
    %v2440 = vld [vmem:[#allocation7 + $0x24] ss:$0 sm:$0xff]
    %v2441 = vsel %vm204, %v2438, 0.0
    %2442 = vadd.xlane.f32.xlu0 %v2441
    %v2443 = vpop.xlane.xlu0 %2442
    %v2444 = vmul.f32 %v2438, %v2438
    %v2445 = vsel %vm204, %v2444, 0.0
    %2446 = vadd.xlane.f32.xlu0 %v2445
    %v2447 = vpop.xlane.xlu0 %2446
    %v2448 = vmul.f32 %v2443, 0.0078125
    %v2449 = vmul.f32 %v2447, 0.0078125
    %v2450 = vmul.f32 %v2448, %v2448
    %v2451 = vsub.f32 %v2449, %v2450
    %v2452 = vsub.f32 %v2438, %v2448
    %v2453 = vadd.f32 %v2451, 1e-05
    %v2454 = vrsqrt.pop %v2453
    %v2455 = vmul.f32 %v2452, %v2454
    %v2456 = vmul.f32 %v2455, %v2439
    %v2457 = vadd.f32 %v2456, %v2440
    %s2458 = scalar_lea.vmem %s2, 320
    %v2459 = vld [vmem:[%s2458] sm:$0xf]
    %v2460 = vld [vmem:[%s2458 + $0x4] sm:$0xf]
    %v2461 = vld [vmem:[%s2458 + $0x8] sm:$0xf]
    %v2462 = vld [vmem:[%s2458 + $0xc] sm:$0xf]
    %v2463 = vld [vmem:[%s2458 + $0x10] sm:$0xf]
    %v2464 = vld [vmem:[%s2458 + $0x14] sm:$0xf]
    %v2465 = vld [vmem:[%s2458 + $0x18] sm:$0xf]
    %v2466 = vld [vmem:[%s2458 + $0x1c] sm:$0xf]
    %v2467 = vld [vmem:[%s2458 + $0x20] sm:$0xf]
    %v2468 = vld [vmem:[%s2458 + $0x24] sm:$0xf]
    %v2469 = vld [vmem:[%s2458 + $0x28] sm:$0xf]
    %v2470 = vld [vmem:[%s2458 + $0x2c] sm:$0xf]
    %v2471 = vld [vmem:[%s2458 + $0x30] sm:$0xf]
    %v2472 = vld [vmem:[%s2458 + $0x34] sm:$0xf]
    %v2473 = vld [vmem:[%s2458 + $0x38] sm:$0xf]
    %v2474 = vld [vmem:[%s2458 + $0x3c] sm:$0xf]
    %v2475 = vpack.c.bf16 %v2457, %v2457
    %v2476 = vld [vmem:[#allocation7 + $0x5] ss:$0 sm:$0xff]
    %v2493 = vunpack.c.l.b16 %v2459
    %v2494 = vunpack.c.l.b16 %v2460
    %v2495 = vunpack.c.l.b16 %v2461
    %v2496 = vunpack.c.l.b16 %v2462
    %v2497 = vunpack.c.l.b16 %v2463
    %v2498 = vunpack.c.l.b16 %v2464
    %v2499 = vunpack.c.l.b16 %v2465
    %v2500 = vunpack.c.l.b16 %v2466
    %v2501 = vunpack.c.l.b16 %v2467
    %v2502 = vunpack.c.l.b16 %v2468
    %v2503 = vunpack.c.l.b16 %v2469
    %v2504 = vunpack.c.l.b16 %v2470
    %v2505 = vunpack.c.l.b16 %v2471
    %v2506 = vunpack.c.l.b16 %v2472
    %v2507 = vunpack.c.l.b16 %v2473
    %v2508 = vunpack.c.l.b16 %v2474
    %v2509 = vpack.c.b16 %v2494, %v2493
    %v2510 = vpack.c.b16 %v2496, %v2495
    %v2511 = vpack.c.b16 %v2498, %v2497
    %v2512 = vpack.c.b16 %v2500, %v2499
    %v2513 = vpack.c.b16 %v2502, %v2501
    %v2514 = vpack.c.b16 %v2504, %v2503
    %v2515 = vpack.c.b16 %v2506, %v2505
    %v2516 = vpack.c.b16 %v2508, %v2507
    %2525 = vmatprep.subr.bf16.mxu0 0
    %2526 = vmatpush1.bf16.msra.mxu0 %v2516
    %2527 = vmatprep.subr.bf16.mxu0 0
    %2528 = vmatpush1.bf16.msra.mxu0 %v2515
    %2529 = vmatprep.subr.bf16.mxu0 0
    %2530 = vmatpush1.bf16.msra.mxu0 %v2514
    %2531 = vmatprep.subr.bf16.mxu0 0
    %2532 = vmatpush1.bf16.msra.mxu0 %v2513
    %2533 = vmatprep.subr.bf16.mxu0 0
    %2534 = vmatpush1.bf16.msra.mxu0 %v2512
    %2535 = vmatprep.subr.bf16.mxu0 0
    %2536 = vmatpush1.bf16.msra.mxu0 %v2511
    %2537 = vmatprep.subr.bf16.mxu0 0
    %2538 = vmatpush1.bf16.msra.mxu0 %v2510
    %2539 = vmatprep.subr.bf16.mxu0 0
    %2540 = vmatpush1.bf16.msra.mxu0 %v2509
    %2541 = vmatprep.subr.bf16.mxu0 0
    %2542 = vmatpush2.bf16.msra.mxu0 0
    %2543 = vmatprep.subr.bf16.mxu0 0
    %2544 = vmatpush2.bf16.msra.mxu0 0
    %2545 = vmatprep.subr.bf16.mxu0 0
    %2546 = vmatpush2.bf16.msra.mxu0 0
    %2547 = vmatprep.subr.bf16.mxu0 0
    %2548 = vmatpush2.bf16.msra.mxu0 0
    %2549 = vmatprep.subr.bf16.mxu0 0
    %2550 = vmatpush2.bf16.msra.mxu0 0
    %2551 = vmatprep.subr.bf16.mxu0 0
    %2552 = vmatpush2.bf16.msra.mxu0 0
    %2553 = vmatprep.subr.bf16.mxu0 0
    %2554 = vmatpush2.bf16.msra.mxu0 0
    %2555 = vmatprep.subr.bf16.mxu0 0
    %2556 = vmatpush2.bf16.msra.mxu0 0
    %2557 = vmatprep.mubr.bf16.mxu0 0
    %2558 = vmatmul.mubr.bf16.gmra.mxu0 %v2475
    %v2559 = vpop.f32.mrf.mxu0
    %v2560 = vadd.f32 %v2476, %v2559
    %v2561 = vpop.f32.mrf.mxu0
    %v2562 = vpop.f32.mrf.mxu0
    %v2563 = vpop.f32.mrf.mxu0
    %2564 = vdwg.mxu0
    %v2565 = vadd.f32 %v2457, %v2560
    %v2566 = vld [vmem:[#allocation7 + $0xd] ss:$0 sm:$0xff]
    %v2567 = vld [vmem:[#allocation7 + $0x15] ss:$0 sm:$0xff]
    %v2568 = vsel %vm204, %v2565, 0.0
    %2569 = vadd.xlane.f32.xlu0 %v2568
    %v2570 = vpop.xlane.xlu0 %2569
    %v2571 = vmul.f32 %v2565, %v2565
    %v2572 = vsel %vm204, %v2571, 0.0
    %2573 = vadd.xlane.f32.xlu0 %v2572
    %v2574 = vpop.xlane.xlu0 %2573
    %v2575 = vmul.f32 %v2570, 0.0078125
    %v2576 = vmul.f32 %v2574, 0.0078125
    %v2577 = vmul.f32 %v2575, %v2575
    %v2578 = vsub.f32 %v2576, %v2577
    %v2579 = vsub.f32 %v2565, %v2575
    %v2580 = vadd.f32 %v2578, 1e-05
    %v2581 = vrsqrt.pop %v2580
    %v2582 = vmul.f32 %v2579, %v2581
    %v2583 = vmul.f32 %v2582, %v2566
    %v2584 = vadd.f32 %v2583, %v2567
    %s2585 = scalar_lea.vmem [#allocation2], 640
    %v2586 = vld [vmem:[%s2585] sm:$0xff]
    %v2587 = vld [vmem:[%s2585 + $0x8] sm:$0xff]
    %v2588 = vld [vmem:[%s2585 + $0x10] sm:$0xff]
    %v2589 = vld [vmem:[%s2585 + $0x18] sm:$0xff]
    %v2590 = vld [vmem:[%s2585 + $0x20] sm:$0xff]
    %v2591 = vld [vmem:[%s2585 + $0x28] sm:$0xff]
    %v2592 = vld [vmem:[%s2585 + $0x30] sm:$0xff]
    %v2593 = vld [vmem:[%s2585 + $0x38] sm:$0xff]
    %v2594 = vld [vmem:[%s2585 + $0x40] sm:$0xff]
    %v2595 = vld [vmem:[%s2585 + $0x48] sm:$0xff]
    %v2596 = vld [vmem:[%s2585 + $0x50] sm:$0xff]
    %v2597 = vld [vmem:[%s2585 + $0x58] sm:$0xff]
    %v2598 = vld [vmem:[%s2585 + $0x60] sm:$0xff]
    %v2599 = vld [vmem:[%s2585 + $0x68] sm:$0xff]
    %v2600 = vld [vmem:[%s2585 + $0x70] sm:$0xff]
    %v2601 = vld [vmem:[%s2585 + $0x78] sm:$0xff]
    %v2602 = vpack.c.bf16 %v2584, %v2584
    %s2603 = scalar_lea.vmem [#allocation7], 53
    %v2604 = vld [vmem:[%s2603] ss:$8 sm:$0x3]
    %v2606 = vlaneseq
    %v2607 = vshrl.u32 %v2606, 7
    %v2608 = vsub.s32 0, %v2607
    %v2609 = vrot.slane %v2604, %v2608
    %v2610 = vlaneseq
    %v2611 = vshrl.u32 %v2610, 7
    %v2612 = vsub.s32 1, %v2611
    %v2613 = vrot.slane %v2604, %v2612
    %v2632 = vunpack.c.l.b16 %v2586
    %v2633 = vunpack.c.h.b16 %v2586
    %v2634 = vunpack.c.l.b16 %v2587
    %v2635 = vunpack.c.h.b16 %v2587
    %v2636 = vunpack.c.l.b16 %v2588
    %v2637 = vunpack.c.h.b16 %v2588
    %v2638 = vunpack.c.l.b16 %v2589
    %v2639 = vunpack.c.h.b16 %v2589
    %v2640 = vunpack.c.l.b16 %v2590
    %v2641 = vunpack.c.h.b16 %v2590
    %v2642 = vunpack.c.l.b16 %v2591
    %v2643 = vunpack.c.h.b16 %v2591
    %v2644 = vunpack.c.l.b16 %v2592
    %v2645 = vunpack.c.h.b16 %v2592
    %v2646 = vunpack.c.l.b16 %v2593
    %v2647 = vunpack.c.h.b16 %v2593
    %v2648 = vunpack.c.l.b16 %v2594
    %v2649 = vunpack.c.h.b16 %v2594
    %v2650 = vunpack.c.l.b16 %v2595
    %v2651 = vunpack.c.h.b16 %v2595
    %v2652 = vunpack.c.l.b16 %v2596
    %v2653 = vunpack.c.h.b16 %v2596
    %v2654 = vunpack.c.l.b16 %v2597
    %v2655 = vunpack.c.h.b16 %v2597
    %v2656 = vunpack.c.l.b16 %v2598
    %v2657 = vunpack.c.h.b16 %v2598
    %v2658 = vunpack.c.l.b16 %v2599
    %v2659 = vunpack.c.h.b16 %v2599
    %v2660 = vunpack.c.l.b16 %v2600
    %v2661 = vunpack.c.h.b16 %v2600
    %v2662 = vunpack.c.l.b16 %v2601
    %v2663 = vunpack.c.h.b16 %v2601
    %v2664 = vpack.c.b16 %v2634, %v2632
    %v2665 = vpack.c.b16 %v2635, %v2633
    %v2666 = vpack.c.b16 %v2638, %v2636
    %v2667 = vpack.c.b16 %v2639, %v2637
    %v2668 = vpack.c.b16 %v2642, %v2640
    %v2669 = vpack.c.b16 %v2643, %v2641
    %v2670 = vpack.c.b16 %v2646, %v2644
    %v2671 = vpack.c.b16 %v2647, %v2645
    %v2672 = vpack.c.b16 %v2650, %v2648
    %v2673 = vpack.c.b16 %v2651, %v2649
    %v2674 = vpack.c.b16 %v2654, %v2652
    %v2675 = vpack.c.b16 %v2655, %v2653
    %v2676 = vpack.c.b16 %v2658, %v2656
    %v2677 = vpack.c.b16 %v2659, %v2657
    %v2678 = vpack.c.b16 %v2662, %v2660
    %v2679 = vpack.c.b16 %v2663, %v2661
    %2696 = vmatprep.subr.bf16.mxu0 %v2679
    %2697 = vmatpush1.bf16.msra.mxu0 %v2678
    %2698 = vmatprep.subr.bf16.mxu0 %v2677
    %2699 = vmatpush1.bf16.msra.mxu0 %v2676
    %2700 = vmatprep.subr.bf16.mxu0 %v2675
    %2701 = vmatpush1.bf16.msra.mxu0 %v2674
    %2702 = vmatprep.subr.bf16.mxu0 %v2673
    %2703 = vmatpush1.bf16.msra.mxu0 %v2672
    %2704 = vmatprep.subr.bf16.mxu0 %v2671
    %2705 = vmatpush1.bf16.msra.mxu0 %v2670
    %2706 = vmatprep.subr.bf16.mxu0 %v2669
    %2707 = vmatpush1.bf16.msra.mxu0 %v2668
    %2708 = vmatprep.subr.bf16.mxu0 %v2667
    %2709 = vmatpush1.bf16.msra.mxu0 %v2666
    %2710 = vmatprep.subr.bf16.mxu0 %v2665
    %2711 = vmatpush1.bf16.msra.mxu0 %v2664
    %2712 = vmatprep.subr.bf16.mxu0 0
    %2713 = vmatpush2.bf16.msra.mxu0 0
    %2714 = vmatprep.subr.bf16.mxu0 0
    %2715 = vmatpush2.bf16.msra.mxu0 0
    %2716 = vmatprep.subr.bf16.mxu0 0
    %2717 = vmatpush2.bf16.msra.mxu0 0
    %2718 = vmatprep.subr.bf16.mxu0 0
    %2719 = vmatpush2.bf16.msra.mxu0 0
    %2720 = vmatprep.subr.bf16.mxu0 0
    %2721 = vmatpush2.bf16.msra.mxu0 0
    %2722 = vmatprep.subr.bf16.mxu0 0
    %2723 = vmatpush2.bf16.msra.mxu0 0
    %2724 = vmatprep.subr.bf16.mxu0 0
    %2725 = vmatpush2.bf16.msra.mxu0 0
    %2726 = vmatprep.subr.bf16.mxu0 0
    %2727 = vmatpush2.bf16.msra.mxu0 0
    %2728 = vmatprep.mubr.bf16.mxu0 0
    %2729 = vmatmul.mubr.bf16.gmra.mxu0 %v2602
    %v2730 = vpop.f32.mrf.mxu0
    %v2731 = vadd.f32 %v2609, %v2730
    %v2732 = vpop.f32.mrf.mxu0
    %v2733 = vadd.f32 %v2613, %v2732
    %v2734 = vpop.f32.mrf.mxu0
    %v2735 = vpop.f32.mrf.mxu0
    %2736 = vdwg.mxu0
    %v2737 = vmax.f32 %v2731, 0.0
    %v2738 = vmax.f32 %v2733, 0.0
    %s2739 = scalar_lea.vmem [#allocation5], 640
    %v2740 = vld [vmem:[%s2739] sm:$0xf]
    %v2741 = vld [vmem:[%s2739 + $0x4] sm:$0xf]
    %v2742 = vld [vmem:[%s2739 + $0x8] sm:$0xf]
    %v2743 = vld [vmem:[%s2739 + $0xc] sm:$0xf]
    %v2744 = vld [vmem:[%s2739 + $0x10] sm:$0xf]
    %v2745 = vld [vmem:[%s2739 + $0x14] sm:$0xf]
    %v2746 = vld [vmem:[%s2739 + $0x18] sm:$0xf]
    %v2747 = vld [vmem:[%s2739 + $0x1c] sm:$0xf]
    %v2748 = vld [vmem:[%s2739 + $0x20] sm:$0xf]
    %v2749 = vld [vmem:[%s2739 + $0x24] sm:$0xf]
    %v2750 = vld [vmem:[%s2739 + $0x28] sm:$0xf]
    %v2751 = vld [vmem:[%s2739 + $0x2c] sm:$0xf]
    %v2752 = vld [vmem:[%s2739 + $0x30] sm:$0xf]
    %v2753 = vld [vmem:[%s2739 + $0x34] sm:$0xf]
    %v2754 = vld [vmem:[%s2739 + $0x38] sm:$0xf]
    %v2755 = vld [vmem:[%s2739 + $0x3c] sm:$0xf]
    %v2756 = vld [vmem:[%s2739 + $0x40] sm:$0xf]
    %v2757 = vld [vmem:[%s2739 + $0x44] sm:$0xf]
    %v2758 = vld [vmem:[%s2739 + $0x48] sm:$0xf]
    %v2759 = vld [vmem:[%s2739 + $0x4c] sm:$0xf]
    %v2760 = vld [vmem:[%s2739 + $0x50] sm:$0xf]
    %v2761 = vld [vmem:[%s2739 + $0x54] sm:$0xf]
    %v2762 = vld [vmem:[%s2739 + $0x58] sm:$0xf]
    %v2763 = vld [vmem:[%s2739 + $0x5c] sm:$0xf]
    %v2764 = vld [vmem:[%s2739 + $0x60] sm:$0xf]
    %v2765 = vld [vmem:[%s2739 + $0x64] sm:$0xf]
    %v2766 = vld [vmem:[%s2739 + $0x68] sm:$0xf]
    %v2767 = vld [vmem:[%s2739 + $0x6c] sm:$0xf]
    %v2768 = vld [vmem:[%s2739 + $0x70] sm:$0xf]
    %v2769 = vld [vmem:[%s2739 + $0x74] sm:$0xf]
    %v2770 = vld [vmem:[%s2739 + $0x78] sm:$0xf]
    %v2771 = vld [vmem:[%s2739 + $0x7c] sm:$0xf]
    %v2772 = vpack.c.bf16 %v2737, %v2737
    %v2773 = vpack.c.bf16 %v2738, %v2738
    %v2774 = vld [vmem:[#allocation7 + $0x2d] ss:$0 sm:$0xff]
    %v2807 = vunpack.c.l.b16 %v2740
    %v2808 = vunpack.c.l.b16 %v2741
    %v2809 = vunpack.c.l.b16 %v2742
    %v2810 = vunpack.c.l.b16 %v2743
    %v2811 = vunpack.c.l.b16 %v2744
    %v2812 = vunpack.c.l.b16 %v2745
    %v2813 = vunpack.c.l.b16 %v2746
    %v2814 = vunpack.c.l.b16 %v2747
    %v2815 = vunpack.c.l.b16 %v2748
    %v2816 = vunpack.c.l.b16 %v2749
    %v2817 = vunpack.c.l.b16 %v2750
    %v2818 = vunpack.c.l.b16 %v2751
    %v2819 = vunpack.c.l.b16 %v2752
    %v2820 = vunpack.c.l.b16 %v2753
    %v2821 = vunpack.c.l.b16 %v2754
    %v2822 = vunpack.c.l.b16 %v2755
    %v2823 = vunpack.c.l.b16 %v2756
    %v2824 = vunpack.c.l.b16 %v2757
    %v2825 = vunpack.c.l.b16 %v2758
    %v2826 = vunpack.c.l.b16 %v2759
    %v2827 = vunpack.c.l.b16 %v2760
    %v2828 = vunpack.c.l.b16 %v2761
    %v2829 = vunpack.c.l.b16 %v2762
    %v2830 = vunpack.c.l.b16 %v2763
    %v2831 = vunpack.c.l.b16 %v2764
    %v2832 = vunpack.c.l.b16 %v2765
    %v2833 = vunpack.c.l.b16 %v2766
    %v2834 = vunpack.c.l.b16 %v2767
    %v2835 = vunpack.c.l.b16 %v2768
    %v2836 = vunpack.c.l.b16 %v2769
    %v2837 = vunpack.c.l.b16 %v2770
    %v2838 = vunpack.c.l.b16 %v2771
    %v2839 = vpack.c.b16 %v2808, %v2807
    %v2840 = vpack.c.b16 %v2810, %v2809
    %v2841 = vpack.c.b16 %v2812, %v2811
    %v2842 = vpack.c.b16 %v2814, %v2813
    %v2843 = vpack.c.b16 %v2816, %v2815
    %v2844 = vpack.c.b16 %v2818, %v2817
    %v2845 = vpack.c.b16 %v2820, %v2819
    %v2846 = vpack.c.b16 %v2822, %v2821
    %v2847 = vpack.c.b16 %v2824, %v2823
    %v2848 = vpack.c.b16 %v2826, %v2825
    %v2849 = vpack.c.b16 %v2828, %v2827
    %v2850 = vpack.c.b16 %v2830, %v2829
    %v2851 = vpack.c.b16 %v2832, %v2831
    %v2852 = vpack.c.b16 %v2834, %v2833
    %v2853 = vpack.c.b16 %v2836, %v2835
    %v2854 = vpack.c.b16 %v2838, %v2837
    %2871 = vmatprep.subr.bf16.mxu0 0
    %2872 = vmatpush1.bf16.msra.mxu0 %v2846
    %2873 = vmatprep.subr.bf16.mxu0 0
    %2874 = vmatpush1.bf16.msra.mxu0 %v2845
    %2875 = vmatprep.subr.bf16.mxu0 0
    %2876 = vmatpush1.bf16.msra.mxu0 %v2844
    %2877 = vmatprep.subr.bf16.mxu0 0
    %2878 = vmatpush1.bf16.msra.mxu0 %v2843
    %2879 = vmatprep.subr.bf16.mxu0 0
    %2880 = vmatpush1.bf16.msra.mxu0 %v2842
    %2881 = vmatprep.subr.bf16.mxu0 0
    %2882 = vmatpush1.bf16.msra.mxu0 %v2841
    %2883 = vmatprep.subr.bf16.mxu0 0
    %2884 = vmatpush1.bf16.msra.mxu0 %v2840
    %2885 = vmatprep.subr.bf16.mxu0 0
    %2886 = vmatpush1.bf16.msra.mxu0 %v2839
    %2887 = vmatprep.subr.bf16.mxu0 0
    %2888 = vmatpush2.bf16.msra.mxu0 %v2854
    %2889 = vmatprep.subr.bf16.mxu0 0
    %2890 = vmatpush2.bf16.msra.mxu0 %v2853
    %2891 = vmatprep.subr.bf16.mxu0 0
    %2892 = vmatpush2.bf16.msra.mxu0 %v2852
    %2893 = vmatprep.subr.bf16.mxu0 0
    %2894 = vmatpush2.bf16.msra.mxu0 %v2851
    %2895 = vmatprep.subr.bf16.mxu0 0
    %2896 = vmatpush2.bf16.msra.mxu0 %v2850
    %2897 = vmatprep.subr.bf16.mxu0 0
    %2898 = vmatpush2.bf16.msra.mxu0 %v2849
    %2899 = vmatprep.subr.bf16.mxu0 0
    %2900 = vmatpush2.bf16.msra.mxu0 %v2848
    %2901 = vmatprep.subr.bf16.mxu0 0
    %2902 = vmatpush2.bf16.msra.mxu0 %v2847
    %2903 = vmatprep.mubr.bf16.mxu0 %v2773
    %2904 = vmatmul.mubr.bf16.gmra.mxu0 %v2772
    %v2905 = vpop.f32.mrf.mxu0
    %v2906 = vadd.f32 %v2774, %v2905
    %v2907 = vpop.f32.mrf.mxu0
    %v2908 = vpop.f32.mrf.mxu0
    %v2909 = vpop.f32.mrf.mxu0
    %2910 = vdwg.mxu0
    %v2911 = vadd.f32 %v2584, %v2906
    %v2912 = vld [vmem:[#allocation7 + $0x1d] ss:$0 sm:$0xff]
    %v2913 = vld [vmem:[#allocation7 + $0x25] ss:$0 sm:$0xff]
    %v2914 = vsel %vm204, %v2911, 0.0
    %2915 = vadd.xlane.f32.xlu0 %v2914
    %v2916 = vpop.xlane.xlu0 %2915
    %v2917 = vmul.f32 %v2911, %v2911
    %v2918 = vsel %vm204, %v2917, 0.0
    %2919 = vadd.xlane.f32.xlu0 %v2918
    %v2920 = vpop.xlane.xlu0 %2919
    %v2921 = vmul.f32 %v2916, 0.0078125
    %v2922 = vmul.f32 %v2920, 0.0078125
    %v2923 = vmul.f32 %v2921, %v2921
    %v2924 = vsub.f32 %v2922, %v2923
    %v2925 = vsub.f32 %v2911, %v2921
    %v2926 = vadd.f32 %v2924, 1e-05
    %v2927 = vrsqrt.pop %v2926
    %v2928 = vmul.f32 %v2925, %v2927
    %v2929 = vmul.f32 %v2928, %v2912
    %v2930 = vadd.f32 %v2929, %v2913
    %v2931 = vld [vmem:[%s6] sm:$0xff]
    %v2932 = vld [vmem:[%s6 + $0x8] sm:$0xff]
    %v2933 = vld [vmem:[%s6 + $0x10] sm:$0xff]
    %v2934 = vld [vmem:[%s6 + $0x18] sm:$0xff]
    %v2935 = vld [vmem:[%s6 + $0x20] sm:$0xff]
    %v2936 = vld [vmem:[%s6 + $0x28] sm:$0xff]
    %v2937 = vld [vmem:[%s6 + $0x30] sm:$0xff]
    %v2938 = vld [vmem:[%s6 + $0x38] sm:$0xff]
    %v2939 = vld [vmem:[%s6 + $0x40] sm:$0xff]
    %v2940 = vld [vmem:[%s6 + $0x48] sm:$0xff]
    %v2941 = vld [vmem:[%s6 + $0x50] sm:$0xff]
    %v2942 = vld [vmem:[%s6 + $0x58] sm:$0xff]
    %v2943 = vld [vmem:[%s6 + $0x60] sm:$0xff]
    %v2944 = vld [vmem:[%s6 + $0x68] sm:$0xff]
    %v2945 = vld [vmem:[%s6 + $0x70] sm:$0xff]
    %v2946 = vld [vmem:[%s6 + $0x78] sm:$0xff]
    %v2947 = vld [vmem:[%s6 + $0x80] sm:$0xff]
    %v2948 = vld [vmem:[%s6 + $0x88] sm:$0xff]
    %v2949 = vld [vmem:[%s6 + $0x90] sm:$0xff]
    %v2950 = vld [vmem:[%s6 + $0x98] sm:$0xff]
    %v2951 = vld [vmem:[%s6 + $0xa0] sm:$0xff]
    %v2952 = vld [vmem:[%s6 + $0xa8] sm:$0xff]
    %v2953 = vld [vmem:[%s6 + $0xb0] sm:$0xff]
    %v2954 = vld [vmem:[%s6 + $0xb8] sm:$0xff]
    %v2955 = vld [vmem:[%s6 + $0xc0] sm:$0xff]
    %v2956 = vld [vmem:[%s6 + $0xc8] sm:$0xff]
    %v2957 = vld [vmem:[%s6 + $0xd0] sm:$0xff]
    %v2958 = vld [vmem:[%s6 + $0xd8] sm:$0xff]
    %v2959 = vld [vmem:[%s6 + $0xe0] sm:$0xff]
    %v2960 = vld [vmem:[%s6 + $0xe8] sm:$0xff]
    %v2961 = vld [vmem:[%s6 + $0xf0] sm:$0xff]
    %v2962 = vld [vmem:[%s6 + $0xf8] sm:$0xff]
    %v2963 = vpack.c.bf16 %v2930, %v2930
    %v2964 = vld [vmem:[%s8] sm:$0xf]
    %v2966 = vlaneseq
    %v2967 = vshrl.u32 %v2966, 7
    %v2968 = vsub.s32 0, %v2967
    %v2969 = vrot.slane %v2964, %v2968
    %v2970 = vlaneseq
    %v2971 = vshrl.u32 %v2970, 7
    %v2972 = vsub.s32 1, %v2971
    %v2973 = vrot.slane %v2964, %v2972
    %v2974 = vlaneseq
    %v2975 = vshrl.u32 %v2974, 7
    %v2976 = vsub.s32 2, %v2975
    %v2977 = vrot.slane %v2964, %v2976
    %v2978 = vlaneseq
    %v2979 = vshrl.u32 %v2978, 7
    %v2980 = vsub.s32 3, %v2979
    %v2981 = vrot.slane %v2964, %v2980
    %v3018 = vunpack.c.l.b16 %v2931
    %v3019 = vunpack.c.h.b16 %v2931
    %v3020 = vunpack.c.l.b16 %v2932
    %v3021 = vunpack.c.h.b16 %v2932
    %v3022 = vunpack.c.l.b16 %v2933
    %v3023 = vunpack.c.h.b16 %v2933
    %v3024 = vunpack.c.l.b16 %v2934
    %v3025 = vunpack.c.h.b16 %v2934
    %v3026 = vunpack.c.l.b16 %v2935
    %v3027 = vunpack.c.h.b16 %v2935
    %v3028 = vunpack.c.l.b16 %v2936
    %v3029 = vunpack.c.h.b16 %v2936
    %v3030 = vunpack.c.l.b16 %v2937
    %v3031 = vunpack.c.h.b16 %v2937
    %v3032 = vunpack.c.l.b16 %v2938
    %v3033 = vunpack.c.h.b16 %v2938
    %v3034 = vunpack.c.l.b16 %v2939
    %v3035 = vunpack.c.h.b16 %v2939
    %v3036 = vunpack.c.l.b16 %v2940
    %v3037 = vunpack.c.h.b16 %v2940
    %v3038 = vunpack.c.l.b16 %v2941
    %v3039 = vunpack.c.h.b16 %v2941
    %v3040 = vunpack.c.l.b16 %v2942
    %v3041 = vunpack.c.h.b16 %v2942
    %v3042 = vunpack.c.l.b16 %v2943
    %v3043 = vunpack.c.h.b16 %v2943
    %v3044 = vunpack.c.l.b16 %v2944
    %v3045 = vunpack.c.h.b16 %v2944
    %v3046 = vunpack.c.l.b16 %v2945
    %v3047 = vunpack.c.h.b16 %v2945
    %v3048 = vunpack.c.l.b16 %v2946
    %v3049 = vunpack.c.h.b16 %v2946
    %v3050 = vunpack.c.l.b16 %v2947
    %v3051 = vunpack.c.h.b16 %v2947
    %v3052 = vunpack.c.l.b16 %v2948
    %v3053 = vunpack.c.h.b16 %v2948
    %v3054 = vunpack.c.l.b16 %v2949
    %v3055 = vunpack.c.h.b16 %v2949
    %v3056 = vunpack.c.l.b16 %v2950
    %v3057 = vunpack.c.h.b16 %v2950
    %v3058 = vunpack.c.l.b16 %v2951
    %v3059 = vunpack.c.h.b16 %v2951
    %v3060 = vunpack.c.l.b16 %v2952
    %v3061 = vunpack.c.h.b16 %v2952
    %v3062 = vunpack.c.l.b16 %v2953
    %v3063 = vunpack.c.h.b16 %v2953
    %v3064 = vunpack.c.l.b16 %v2954
    %v3065 = vunpack.c.h.b16 %v2954
    %v3066 = vunpack.c.l.b16 %v2955
    %v3067 = vunpack.c.h.b16 %v2955
    %v3068 = vunpack.c.l.b16 %v2956
    %v3069 = vunpack.c.h.b16 %v2956
    %v3070 = vunpack.c.l.b16 %v2957
    %v3071 = vunpack.c.h.b16 %v2957
    %v3072 = vunpack.c.l.b16 %v2958
    %v3073 = vunpack.c.h.b16 %v2958
    %v3074 = vunpack.c.l.b16 %v2959
    %v3075 = vunpack.c.h.b16 %v2959
    %v3076 = vunpack.c.l.b16 %v2960
    %v3077 = vunpack.c.h.b16 %v2960
    %v3078 = vunpack.c.l.b16 %v2961
    %v3079 = vunpack.c.h.b16 %v2961
    %v3080 = vunpack.c.l.b16 %v2962
    %v3081 = vunpack.c.h.b16 %v2962
    %v3082 = vpack.c.b16 %v3022, %v3018
    %v3083 = vpack.c.b16 %v3023, %v3019
    %v3084 = vpack.c.b16 %v3024, %v3020
    %v3085 = vpack.c.b16 %v3025, %v3021
    %v3086 = vpack.c.b16 %v3030, %v3026
    %v3087 = vpack.c.b16 %v3031, %v3027
    %v3088 = vpack.c.b16 %v3032, %v3028
    %v3089 = vpack.c.b16 %v3033, %v3029
    %v3090 = vpack.c.b16 %v3038, %v3034
    %v3091 = vpack.c.b16 %v3039, %v3035
    %v3092 = vpack.c.b16 %v3040, %v3036
    %v3093 = vpack.c.b16 %v3041, %v3037
    %v3094 = vpack.c.b16 %v3046, %v3042
    %v3095 = vpack.c.b16 %v3047, %v3043
    %v3096 = vpack.c.b16 %v3048, %v3044
    %v3097 = vpack.c.b16 %v3049, %v3045
    %v3098 = vpack.c.b16 %v3054, %v3050
    %v3099 = vpack.c.b16 %v3055, %v3051
    %v3100 = vpack.c.b16 %v3056, %v3052
    %v3101 = vpack.c.b16 %v3057, %v3053
    %v3102 = vpack.c.b16 %v3062, %v3058
    %v3103 = vpack.c.b16 %v3063, %v3059
    %v3104 = vpack.c.b16 %v3064, %v3060
    %v3105 = vpack.c.b16 %v3065, %v3061
    %v3106 = vpack.c.b16 %v3070, %v3066
    %v3107 = vpack.c.b16 %v3071, %v3067
    %v3108 = vpack.c.b16 %v3072, %v3068
    %v3109 = vpack.c.b16 %v3073, %v3069
    %v3110 = vpack.c.b16 %v3078, %v3074
    %v3111 = vpack.c.b16 %v3079, %v3075
    %v3112 = vpack.c.b16 %v3080, %v3076
    %v3113 = vpack.c.b16 %v3081, %v3077
    %3146 = vmatprep.subr.bf16.mxu0 %v3111
    %3147 = vmatpush1.bf16.msra.mxu0 %v3110
    %3148 = vmatprep.subr.bf16.mxu0 %v3107
    %3149 = vmatpush1.bf16.msra.mxu0 %v3106
    %3150 = vmatprep.subr.bf16.mxu0 %v3103
    %3151 = vmatpush1.bf16.msra.mxu0 %v3102
    %3152 = vmatprep.subr.bf16.mxu0 %v3099
    %3153 = vmatpush1.bf16.msra.mxu0 %v3098
    %3154 = vmatprep.subr.bf16.mxu0 %v3095
    %3155 = vmatpush1.bf16.msra.mxu0 %v3094
    %3156 = vmatprep.subr.bf16.mxu0 %v3091
    %3157 = vmatpush1.bf16.msra.mxu0 %v3090
    %3158 = vmatprep.subr.bf16.mxu0 %v3087
    %3159 = vmatpush1.bf16.msra.mxu0 %v3086
    %3160 = vmatprep.subr.bf16.mxu0 %v3083
    %3161 = vmatpush1.bf16.msra.mxu0 %v3082
    %3162 = vmatprep.subr.bf16.mxu0 0
    %3163 = vmatpush2.bf16.msra.mxu0 0
    %3164 = vmatprep.subr.bf16.mxu0 0
    %3165 = vmatpush2.bf16.msra.mxu0 0
    %3166 = vmatprep.subr.bf16.mxu0 0
    %3167 = vmatpush2.bf16.msra.mxu0 0
    %3168 = vmatprep.subr.bf16.mxu0 0
    %3169 = vmatpush2.bf16.msra.mxu0 0
    %3170 = vmatprep.subr.bf16.mxu0 0
    %3171 = vmatpush2.bf16.msra.mxu0 0
    %3172 = vmatprep.subr.bf16.mxu0 0
    %3173 = vmatpush2.bf16.msra.mxu0 0
    %3174 = vmatprep.subr.bf16.mxu0 0
    %3175 = vmatpush2.bf16.msra.mxu0 0
    %3176 = vmatprep.subr.bf16.mxu0 0
    %3177 = vmatpush2.bf16.msra.mxu0 0
    %3178 = vmatprep.mubr.bf16.mxu0 0
    %3179 = vmatmul.mubr.bf16.gmra.mxu0 %v2963
    %v3180 = vpop.f32.mrf.mxu0
    %v3181 = vadd.f32 %v2969, %v3180
    %v3182 = vpop.f32.mrf.mxu0
    %v3183 = vadd.f32 %v2973, %v3182
    %v3184 = vpop.f32.mrf.mxu0
    %v3185 = vpop.f32.mrf.mxu0
    %3186 = vdwg.mxu0
    %3187 = vmatprep.subr.bf16.mxu0 %v3113
    %3188 = vmatpush1.bf16.msra.mxu0 %v3112
    %3189 = vmatprep.subr.bf16.mxu0 %v3109
    %3190 = vmatpush1.bf16.msra.mxu0 %v3108
    %3191 = vmatprep.subr.bf16.mxu0 %v3105
    %3192 = vmatpush1.bf16.msra.mxu0 %v3104
    %3193 = vmatprep.subr.bf16.mxu0 %v3101
    %3194 = vmatpush1.bf16.msra.mxu0 %v3100
    %3195 = vmatprep.subr.bf16.mxu0 %v3097
    %3196 = vmatpush1.bf16.msra.mxu0 %v3096
    %3197 = vmatprep.subr.bf16.mxu0 %v3093
    %3198 = vmatpush1.bf16.msra.mxu0 %v3092
    %3199 = vmatprep.subr.bf16.mxu0 %v3089
    %3200 = vmatpush1.bf16.msra.mxu0 %v3088
    %3201 = vmatprep.subr.bf16.mxu0 %v3085
    %3202 = vmatpush1.bf16.msra.mxu0 %v3084
    %3203 = vmatprep.subr.bf16.mxu0 0
    %3204 = vmatpush2.bf16.msra.mxu0 0
    %3205 = vmatprep.subr.bf16.mxu0 0
    %3206 = vmatpush2.bf16.msra.mxu0 0
    %3207 = vmatprep.subr.bf16.mxu0 0
    %3208 = vmatpush2.bf16.msra.mxu0 0
    %3209 = vmatprep.subr.bf16.mxu0 0
    %3210 = vmatpush2.bf16.msra.mxu0 0
    %3211 = vmatprep.subr.bf16.mxu0 0
    %3212 = vmatpush2.bf16.msra.mxu0 0
    %3213 = vmatprep.subr.bf16.mxu0 0
    %3214 = vmatpush2.bf16.msra.mxu0 0
    %3215 = vmatprep.subr.bf16.mxu0 0
    %3216 = vmatpush2.bf16.msra.mxu0 0
    %3217 = vmatprep.subr.bf16.mxu0 0
    %3218 = vmatpush2.bf16.msra.mxu0 0
    %3219 = vmatprep.mubr.bf16.mxu0 0
    %3220 = vmatmul.mubr.bf16.gmra.mxu0 %v2963
    %v3221 = vpop.f32.mrf.mxu0
    %v3222 = vadd.f32 %v2977, %v3221
    %v3223 = vpop.f32.mrf.mxu0
    %v3224 = vadd.f32 %v2981, %v3223
    %v3225 = vpop.f32.mrf.mxu0
    %v3226 = vpop.f32.mrf.mxu0
    %3227 = vdwg.mxu0
    %v3228 = vmax.f32 %v3181, 0.0
    %v3229 = vmax.f32 %v3183, 0.0
    %v3230 = vmax.f32 %v3222, 0.0
    %v3231 = vmax.f32 %v3224, 0.0
    %v3232 = vld [vmem:[#allocation8] sm:$0xf]
    %v3233 = vld [vmem:[#allocation8 + $0x4] sm:$0xf]
    %v3234 = vld [vmem:[#allocation8 + $0x8] sm:$0xf]
    %v3235 = vld [vmem:[#allocation8 + $0xc] sm:$0xf]
    %v3236 = vld [vmem:[#allocation8 + $0x10] sm:$0xf]
    %v3237 = vld [vmem:[#allocation8 + $0x14] sm:$0xf]
    %v3238 = vld [vmem:[#allocation8 + $0x18] sm:$0xf]
    %v3239 = vld [vmem:[#allocation8 + $0x1c] sm:$0xf]
    %v3240 = vld [vmem:[#allocation8 + $0x20] sm:$0xf]
    %v3241 = vld [vmem:[#allocation8 + $0x24] sm:$0xf]
    %v3242 = vld [vmem:[#allocation8 + $0x28] sm:$0xf]
    %v3243 = vld [vmem:[#allocation8 + $0x2c] sm:$0xf]
    %v3244 = vld [vmem:[#allocation8 + $0x30] sm:$0xf]
    %v3245 = vld [vmem:[#allocation8 + $0x34] sm:$0xf]
    %v3246 = vld [vmem:[#allocation8 + $0x38] sm:$0xf]
    %v3247 = vld [vmem:[#allocation8 + $0x3c] sm:$0xf]
    %v3248 = vld [vmem:[#allocation8 + $0x40] sm:$0xf]
    %v3249 = vld [vmem:[#allocation8 + $0x44] sm:$0xf]
    %v3250 = vld [vmem:[#allocation8 + $0x48] sm:$0xf]
    %v3251 = vld [vmem:[#allocation8 + $0x4c] sm:$0xf]
    %v3252 = vld [vmem:[#allocation8 + $0x50] sm:$0xf]
    %v3253 = vld [vmem:[#allocation8 + $0x54] sm:$0xf]
    %v3254 = vld [vmem:[#allocation8 + $0x58] sm:$0xf]
    %v3255 = vld [vmem:[#allocation8 + $0x5c] sm:$0xf]
    %v3256 = vld [vmem:[#allocation8 + $0x60] sm:$0xf]
    %v3257 = vld [vmem:[#allocation8 + $0x64] sm:$0xf]
    %v3258 = vld [vmem:[#allocation8 + $0x68] sm:$0xf]
    %v3259 = vld [vmem:[#allocation8 + $0x6c] sm:$0xf]
    %v3260 = vld [vmem:[#allocation8 + $0x70] sm:$0xf]
    %v3261 = vld [vmem:[#allocation8 + $0x74] sm:$0xf]
    %v3262 = vld [vmem:[#allocation8 + $0x78] sm:$0xf]
    %v3263 = vld [vmem:[#allocation8 + $0x7c] sm:$0xf]
    %v3264 = vld [vmem:[#allocation8 + $0x80] sm:$0xf]
    %v3265 = vld [vmem:[#allocation8 + $0x84] sm:$0xf]
    %v3266 = vld [vmem:[#allocation8 + $0x88] sm:$0xf]
    %v3267 = vld [vmem:[#allocation8 + $0x8c] sm:$0xf]
    %v3268 = vld [vmem:[#allocation8 + $0x90] sm:$0xf]
    %v3269 = vld [vmem:[#allocation8 + $0x94] sm:$0xf]
    %v3270 = vld [vmem:[#allocation8 + $0x98] sm:$0xf]
    %v3271 = vld [vmem:[#allocation8 + $0x9c] sm:$0xf]
    %v3272 = vld [vmem:[#allocation8 + $0xa0] sm:$0xf]
    %v3273 = vld [vmem:[#allocation8 + $0xa4] sm:$0xf]
    %v3274 = vld [vmem:[#allocation8 + $0xa8] sm:$0xf]
    %v3275 = vld [vmem:[#allocation8 + $0xac] sm:$0xf]
    %v3276 = vld [vmem:[#allocation8 + $0xb0] sm:$0xf]
    %v3277 = vld [vmem:[#allocation8 + $0xb4] sm:$0xf]
    %v3278 = vld [vmem:[#allocation8 + $0xb8] sm:$0xf]
    %v3279 = vld [vmem:[#allocation8 + $0xbc] sm:$0xf]
    %v3280 = vld [vmem:[#allocation8 + $0xc0] sm:$0xf]
    %v3281 = vld [vmem:[#allocation8 + $0xc4] sm:$0xf]
    %v3282 = vld [vmem:[#allocation8 + $0xc8] sm:$0xf]
    %v3283 = vld [vmem:[#allocation8 + $0xcc] sm:$0xf]
    %v3284 = vld [vmem:[#allocation8 + $0xd0] sm:$0xf]
    %v3285 = vld [vmem:[#allocation8 + $0xd4] sm:$0xf]
    %v3286 = vld [vmem:[#allocation8 + $0xd8] sm:$0xf]
    %v3287 = vld [vmem:[#allocation8 + $0xdc] sm:$0xf]
    %v3288 = vld [vmem:[#allocation8 + $0xe0] sm:$0xf]
    %v3289 = vld [vmem:[#allocation8 + $0xe4] sm:$0xf]
    %v3290 = vld [vmem:[#allocation8 + $0xe8] sm:$0xf]
    %v3291 = vld [vmem:[#allocation8 + $0xec] sm:$0xf]
    %v3292 = vld [vmem:[#allocation8 + $0xf0] sm:$0xf]
    %v3293 = vld [vmem:[#allocation8 + $0xf4] sm:$0xf]
    %v3294 = vld [vmem:[#allocation8 + $0xf8] sm:$0xf]
    %v3295 = vld [vmem:[#allocation8 + $0xfc] sm:$0xf]
    %v3296 = vpack.c.bf16 %v3228, %v3228
    %v3297 = vpack.c.bf16 %v3229, %v3229
    %v3298 = vpack.c.bf16 %v3230, %v3230
    %v3299 = vpack.c.bf16 %v3231, %v3231
    %v3300 = vld [vmem:[%s8 + $0x4] sm:$0x1]
    %v3302 = vlaneseq
    %v3303 = vshrl.u32 %v3302, 7
    %v3304 = vsub.s32 0, %v3303
    %v3305 = vrot.slane %v3300, %v3304
    %v3371 = vunpack.c.l.b16 %v3232
    %v3372 = vunpack.c.l.b16 %v3233
    %v3373 = vunpack.c.l.b16 %v3234
    %v3374 = vunpack.c.l.b16 %v3235
    %v3375 = vunpack.c.l.b16 %v3236
    %v3376 = vunpack.c.l.b16 %v3237
    %v3377 = vunpack.c.l.b16 %v3238
    %v3378 = vunpack.c.l.b16 %v3239
    %v3379 = vunpack.c.l.b16 %v3240
    %v3380 = vunpack.c.l.b16 %v3241
    %v3381 = vunpack.c.l.b16 %v3242
    %v3382 = vunpack.c.l.b16 %v3243
    %v3383 = vunpack.c.l.b16 %v3244
    %v3384 = vunpack.c.l.b16 %v3245
    %v3385 = vunpack.c.l.b16 %v3246
    %v3386 = vunpack.c.l.b16 %v3247
    %v3387 = vunpack.c.l.b16 %v3248
    %v3388 = vunpack.c.l.b16 %v3249
    %v3389 = vunpack.c.l.b16 %v3250
    %v3390 = vunpack.c.l.b16 %v3251
    %v3391 = vunpack.c.l.b16 %v3252
    %v3392 = vunpack.c.l.b16 %v3253
    %v3393 = vunpack.c.l.b16 %v3254
    %v3394 = vunpack.c.l.b16 %v3255
    %v3395 = vunpack.c.l.b16 %v3256
    %v3396 = vunpack.c.l.b16 %v3257
    %v3397 = vunpack.c.l.b16 %v3258
    %v3398 = vunpack.c.l.b16 %v3259
    %v3399 = vunpack.c.l.b16 %v3260
    %v3400 = vunpack.c.l.b16 %v3261
    %v3401 = vunpack.c.l.b16 %v3262
    %v3402 = vunpack.c.l.b16 %v3263
    %v3403 = vunpack.c.l.b16 %v3264
    %v3404 = vunpack.c.l.b16 %v3265
    %v3405 = vunpack.c.l.b16 %v3266
    %v3406 = vunpack.c.l.b16 %v3267
    %v3407 = vunpack.c.l.b16 %v3268
    %v3408 = vunpack.c.l.b16 %v3269
    %v3409 = vunpack.c.l.b16 %v3270
    %v3410 = vunpack.c.l.b16 %v3271
    %v3411 = vunpack.c.l.b16 %v3272
    %v3412 = vunpack.c.l.b16 %v3273
    %v3413 = vunpack.c.l.b16 %v3274
    %v3414 = vunpack.c.l.b16 %v3275
    %v3415 = vunpack.c.l.b16 %v3276
    %v3416 = vunpack.c.l.b16 %v3277
    %v3417 = vunpack.c.l.b16 %v3278
    %v3418 = vunpack.c.l.b16 %v3279
    %v3419 = vunpack.c.l.b16 %v3280
    %v3420 = vunpack.c.l.b16 %v3281
    %v3421 = vunpack.c.l.b16 %v3282
    %v3422 = vunpack.c.l.b16 %v3283
    %v3423 = vunpack.c.l.b16 %v3284
    %v3424 = vunpack.c.l.b16 %v3285
    %v3425 = vunpack.c.l.b16 %v3286
    %v3426 = vunpack.c.l.b16 %v3287
    %v3427 = vunpack.c.l.b16 %v3288
    %v3428 = vunpack.c.l.b16 %v3289
    %v3429 = vunpack.c.l.b16 %v3290
    %v3430 = vunpack.c.l.b16 %v3291
    %v3431 = vunpack.c.l.b16 %v3292
    %v3432 = vunpack.c.l.b16 %v3293
    %v3433 = vunpack.c.l.b16 %v3294
    %v3434 = vunpack.c.l.b16 %v3295
    %v3435 = vpack.c.b16 %v3372, %v3371
    %v3436 = vpack.c.b16 %v3374, %v3373
    %v3437 = vpack.c.b16 %v3376, %v3375
    %v3438 = vpack.c.b16 %v3378, %v3377
    %v3439 = vpack.c.b16 %v3380, %v3379
    %v3440 = vpack.c.b16 %v3382, %v3381
    %v3441 = vpack.c.b16 %v3384, %v3383
    %v3442 = vpack.c.b16 %v3386, %v3385
    %v3443 = vpack.c.b16 %v3388, %v3387
    %v3444 = vpack.c.b16 %v3390, %v3389
    %v3445 = vpack.c.b16 %v3392, %v3391
    %v3446 = vpack.c.b16 %v3394, %v3393
    %v3447 = vpack.c.b16 %v3396, %v3395
    %v3448 = vpack.c.b16 %v3398, %v3397
    %v3449 = vpack.c.b16 %v3400, %v3399
    %v3450 = vpack.c.b16 %v3402, %v3401
    %v3451 = vpack.c.b16 %v3404, %v3403
    %v3452 = vpack.c.b16 %v3406, %v3405
    %v3453 = vpack.c.b16 %v3408, %v3407
    %v3454 = vpack.c.b16 %v3410, %v3409
    %v3455 = vpack.c.b16 %v3412, %v3411
    %v3456 = vpack.c.b16 %v3414, %v3413
    %v3457 = vpack.c.b16 %v3416, %v3415
    %v3458 = vpack.c.b16 %v3418, %v3417
    %v3459 = vpack.c.b16 %v3420, %v3419
    %v3460 = vpack.c.b16 %v3422, %v3421
    %v3461 = vpack.c.b16 %v3424, %v3423
    %v3462 = vpack.c.b16 %v3426, %v3425
    %v3463 = vpack.c.b16 %v3428, %v3427
    %v3464 = vpack.c.b16 %v3430, %v3429
    %v3465 = vpack.c.b16 %v3432, %v3431
    %v3466 = vpack.c.b16 %v3434, %v3433
    %3499 = vmatprep.subr.bf16.mxu0 0
    %3500 = vmatpush1.bf16.msra.mxu0 %v3442
    %3501 = vmatprep.subr.bf16.mxu0 0
    %3502 = vmatpush1.bf16.msra.mxu0 %v3441
    %3503 = vmatprep.subr.bf16.mxu0 0
    %3504 = vmatpush1.bf16.msra.mxu0 %v3440
    %3505 = vmatprep.subr.bf16.mxu0 0
    %3506 = vmatpush1.bf16.msra.mxu0 %v3439
    %3507 = vmatprep.subr.bf16.mxu0 0
    %3508 = vmatpush1.bf16.msra.mxu0 %v3438
    %3509 = vmatprep.subr.bf16.mxu0 0
    %3510 = vmatpush1.bf16.msra.mxu0 %v3437
    %3511 = vmatprep.subr.bf16.mxu0 0
    %3512 = vmatpush1.bf16.msra.mxu0 %v3436
    %3513 = vmatprep.subr.bf16.mxu0 0
    %3514 = vmatpush1.bf16.msra.mxu0 %v3435
    %3515 = vmatprep.subr.bf16.mxu0 0
    %3516 = vmatpush2.bf16.msra.mxu0 %v3450
    %3517 = vmatprep.subr.bf16.mxu0 0
    %3518 = vmatpush2.bf16.msra.mxu0 %v3449
    %3519 = vmatprep.subr.bf16.mxu0 0
    %3520 = vmatpush2.bf16.msra.mxu0 %v3448
    %3521 = vmatprep.subr.bf16.mxu0 0
    %3522 = vmatpush2.bf16.msra.mxu0 %v3447
    %3523 = vmatprep.subr.bf16.mxu0 0
    %3524 = vmatpush2.bf16.msra.mxu0 %v3446
    %3525 = vmatprep.subr.bf16.mxu0 0
    %3526 = vmatpush2.bf16.msra.mxu0 %v3445
    %3527 = vmatprep.subr.bf16.mxu0 0
    %3528 = vmatpush2.bf16.msra.mxu0 %v3444
    %3529 = vmatprep.subr.bf16.mxu0 0
    %3530 = vmatpush2.bf16.msra.mxu0 %v3443
    %3531 = vmatprep.mubr.bf16.mxu0 %v3297
    %3532 = vmatmul.mubr.bf16.gmra.mxu0 %v3296
    %v3533 = vpop.f32.mrf.mxu0
    %v3534 = vadd.f32 %v3305, %v3533
    %v3535 = vpop.f32.mrf.mxu0
    %v3536 = vpop.f32.mrf.mxu0
    %v3537 = vpop.f32.mrf.mxu0
    %3538 = vdwg.mxu0
    %3539 = vmatprep.subr.bf16.mxu0 0
    %3540 = vmatpush1.bf16.msra.mxu0 %v3458
    %3541 = vmatprep.subr.bf16.mxu0 0
    %3542 = vmatpush1.bf16.msra.mxu0 %v3457
    %3543 = vmatprep.subr.bf16.mxu0 0
    %3544 = vmatpush1.bf16.msra.mxu0 %v3456
    %3545 = vmatprep.subr.bf16.mxu0 0
    %3546 = vmatpush1.bf16.msra.mxu0 %v3455
    %3547 = vmatprep.subr.bf16.mxu0 0
    %3548 = vmatpush1.bf16.msra.mxu0 %v3454
    %3549 = vmatprep.subr.bf16.mxu0 0
    %3550 = vmatpush1.bf16.msra.mxu0 %v3453
    %3551 = vmatprep.subr.bf16.mxu0 0
    %3552 = vmatpush1.bf16.msra.mxu0 %v3452
    %3553 = vmatprep.subr.bf16.mxu0 0
    %3554 = vmatpush1.bf16.msra.mxu0 %v3451
    %3555 = vmatprep.subr.bf16.mxu0 0
    %3556 = vmatpush2.bf16.msra.mxu0 %v3466
    %3557 = vmatprep.subr.bf16.mxu0 0
    %3558 = vmatpush2.bf16.msra.mxu0 %v3465
    %3559 = vmatprep.subr.bf16.mxu0 0
    %3560 = vmatpush2.bf16.msra.mxu0 %v3464
    %3561 = vmatprep.subr.bf16.mxu0 0
    %3562 = vmatpush2.bf16.msra.mxu0 %v3463
    %3563 = vmatprep.subr.bf16.mxu0 0
    %3564 = vmatpush2.bf16.msra.mxu0 %v3462
    %3565 = vmatprep.subr.bf16.mxu0 0
    %3566 = vmatpush2.bf16.msra.mxu0 %v3461
    %3567 = vmatprep.subr.bf16.mxu0 0
    %3568 = vmatpush2.bf16.msra.mxu0 %v3460
    %3569 = vmatprep.subr.bf16.mxu0 0
    %3570 = vmatpush2.bf16.msra.mxu0 %v3459
    %3571 = vmatprep.mubr.bf16.mxu0 %v3299
    %3572 = vmatmul.mubr.bf16.gmra.mxu0 %v3298
    %v3573 = vpop.f32.mrf.mxu0
    %v3574 = vadd.f32 %v3534, %v3573
    %v3575 = vpop.f32.mrf.mxu0
    %v3576 = vpop.f32.mrf.mxu0
    %v3577 = vpop.f32.mrf.mxu0
    %3578 = vdwg.mxu0
    %v3579 = vsel %vm204, %v3574, -inf
    %3580 = vmax.xlane.f32.xlu0 %v3579
    %v3581 = vpop.xlane.xlu0 %3580
    %v3582 = vsub.f32 %v3574, %v3581
    %v3583 = vmul.f32 %v3582, 1.442695
    %v3584 = vpow.pop %v3583
    %v3585 = vsel %vm204, %v3584, 0.0
    %3586 = vadd.xlane.f32.xlu0 %v3585
    %v3587 = vpop.xlane.xlu0 %3586
    %v3588 = vrcp.pop %v3587
    %v3589 = vmul.f32 %v3584, %v3588
    %3590 = vst [vmem:[#allocation10] sm:$0x3] %v3589
    // Predicated region
    $region54: #{multimodal_forward.1} parent=1 // pred_check
      _
    $region55: #{multimodal_forward.1} parent=1 // pred_check_branch
      %3592 = sbr.rel (0) target = $region57
    $region56: #{multimodal_forward.1} parent=1 // pred_region
      %s3594 = ssub.s32 32, 32
      %3595 = vsyncadd [#allocation4], %s3594
      %s3597 = sshll.u32 [#allocation10], 4
      %s3598 = int_to_ptr.vmem [resolvable:$true] %s3597
      %3600 = dma.vmem_to_hbm [thread:$0]  %s3598, 32, %s9, [#allocation4]
    $region57: #{multimodal_forward.1} parent=1 // pred_fallthru
      _
    // Predicated region
    $region58: #{multimodal_forward.1} parent=1 // pred_check
      _
    $region59: #{multimodal_forward.1} parent=1 // pred_check_branch
      %3602 = sbr.rel (0) target = $region61
    $region60: #{multimodal_forward.1} parent=1 // pred_region
      %3603 = dma.done [#allocation4], 32
    $region61: #{multimodal_forward.1} parent=1 // pred_fallthru
      _
    %3604 = vsyncpa [#allocation3], 1
    %3605 = vsyncpa [#allocation6], 1
    %3606 = vsyncpa [#allocation9], 1
    %3607 = vsyncpa [#allocation4], 1

</llo_original>
